<compile_context>
chip_gen: v7x
topology: tpu7x:2x2x1
jax: 0.10.0
libtpu: 0.0.40
codegen_flags: <defaults>
</compile_context>

<pallas_src>
import functools

import jax
import jax.numpy as jnp
from jax.experimental import pallas as pl
from jax.experimental.pallas import tpu as pltpu

LN_EPS = 1e-5


def _layernorm(y, gamma, beta):
    mu = jnp.mean(y, axis=-1, keepdims=True)
    var = jnp.mean((y - mu) ** 2, axis=-1, keepdims=True)
    return (y - mu) * jax.lax.rsqrt(var + LN_EPS) * gamma + beta


def encoder_kernel(x_ref, wqkv_ref, wu_ref, bu_ref, g1_ref, be1_ref,
                   w1_ref, b1_ref, w2_ref, b2_ref, g2_ref, be2_ref,
                   o_ref, *, seqs, seq_len, k_dim, heads, batched_heads):
    n_rows = seqs * seq_len
    hk = heads * k_dim

    x = x_ref[...]                                  # (n_rows, K) f32 residual path
    xb = x.astype(jnp.bfloat16)

    # Fused QKV projection: one (N, K) @ (K, 3*H*K) MXU matmul, f32 accumulation.
    # The attention scale is already folded into the q columns of wqkv.
    qkv = jnp.dot(xb, wqkv_ref[...], preferred_element_type=jnp.float32)
    q = qkv[:, :hk].astype(jnp.bfloat16)
    k = qkv[:, hk:2 * hk].astype(jnp.bfloat16)
    v = qkv[:, 2 * hk:].astype(jnp.bfloat16)

    if batched_heads:
        # Preferred path: (seq, head) as dot_general batch dims — no per-head
        # slice/concat relayout copies, one transpose for the head merge.
        q4 = q.reshape(seqs, seq_len, heads, k_dim)
        k4 = k.reshape(seqs, seq_len, heads, k_dim)
        v4 = v.reshape(seqs, seq_len, heads, k_dim)

        s = jnp.einsum("sthd,suhd->shtu", q4, k4,
                       preferred_element_type=jnp.float32)        # (s,h,T,T) f32
        s = s - jnp.max(s, axis=-1, keepdims=True)
        e = jnp.exp(s)
        # Unnormalized P·V, then scale by 1/rowsum over the head dim (O(T*D)).
        o4 = jnp.einsum("shtu,suhd->shtd", e.astype(jnp.bfloat16), v4,
                        preferred_element_type=jnp.float32)       # (s,h,T,D) f32
        inv = pl.reciprocal(jnp.sum(e, axis=-1), approx=True)     # (s,h,T)
        o4 = o4 * inv[..., None]
        # Merge heads back to token-major rows: one transpose + one reshape.
        att = jnp.transpose(o4, (0, 2, 1, 3)).reshape(n_rows, hk)
    else:
        # Fallback (previously validated lowering): single leading batch dim
        # G = seqs*heads built via lane slices + leading-dim concat.
        def split_heads(a):
            parts = [a[:, h * k_dim:(h + 1) * k_dim].reshape(seqs, 1, seq_len, k_dim)
                     for h in range(heads)]
            return jnp.concatenate(parts, axis=1).reshape(seqs * heads, seq_len, k_dim)

        q3, k3, v3 = split_heads(q), split_heads(k), split_heads(v)
        s = jnp.einsum("gtk,gsk->gts", q3, k3, preferred_element_type=jnp.float32)
        s = s - jnp.max(s, axis=-1, keepdims=True)
        e = jnp.exp(s)
        o3 = jnp.einsum("gts,gsk->gtk", e.astype(jnp.bfloat16), v3,
                        preferred_element_type=jnp.float32)       # (G,T,D)
        o3 = o3 * pl.reciprocal(jnp.sum(e, axis=-1, keepdims=True), approx=True)
        o5 = o3.reshape(seqs, heads, seq_len, k_dim)
        att = jnp.concatenate([o5[:, h] for h in range(heads)], axis=-1)
        att = att.reshape(n_rows, hk)

    # Unify heads.
    attended = jnp.dot(att.astype(jnp.bfloat16), wu_ref[...],
                       preferred_element_type=jnp.float32) + bu_ref[...]

    # Residual + LayerNorm 1 (f32).
    y = _layernorm(attended + x, g1_ref[...], be1_ref[...])

    # FFN: Linear(K -> 4K), ReLU, Linear(4K -> K).
    h1 = jnp.dot(y.astype(jnp.bfloat16), w1_ref[...],
                 preferred_element_type=jnp.float32) + b1_ref[...]
    h1 = jnp.maximum(h1, 0.0)
    ff = jnp.dot(h1.astype(jnp.bfloat16), w2_ref[...],
                 preferred_element_type=jnp.float32) + b2_ref[...]

    # Residual + LayerNorm 2.
    o_ref[...] = _layernorm(ff + y, g2_ref[...], be2_ref[...])


def _vmem_limit_bytes():
    """Scoped-VMEM limit sized to the chip generation.

    ~7/8 of physical VMEM capped at 100 MiB -> ~100 MiB on v5e/v6e (128 MiB),
    ~56 MiB on v7x (64 MiB/TC).  Falls back to a conservative 48 MiB.
    """
    try:
        cap = pltpu.get_tpu_info().vmem_capacity_bytes
        return int(min(cap * 7 // 8, 100 * 1024 * 1024))
    except Exception:
        return 48 * 1024 * 1024


def _pick_seqs(batch, seq_len, k_dim, heads, tile_budget_bytes, target_rows=2048):
    """Whole sequences per grid step.

    Largest legal row tile whose estimated working set fits the VMEM budget,
    preferring >= 2 grid steps so ("parallel",) can shard across v7x's two cores.
    """
    hk = heads * k_dim
    # Per-row working set: f32 x/qkv/att/y/h1/ff + bf16 copies of the matmul operands.
    per_row = 4 * (k_dim + 3 * hk + hk + k_dim + 4 * k_dim + k_dim) \
        + 2 * (k_dim + 3 * hk + hk + 4 * k_dim)
    # Per-sequence score/exp tensors: heads * T * T, f32 s + bf16 e.
    per_seq = seq_len * per_row + heads * seq_len * seq_len * (4 + 2)

    candidates = []
    for s in range(1, batch + 1):
        if batch % s:
            continue
        rows = s * seq_len
        if rows % 8 != 0 and rows != batch * seq_len:
            continue                       # keep the row tile sublane-aligned
        if rows <= target_rows and s * per_seq <= tile_budget_bytes:
            candidates.append(s)
    if not candidates:
        candidates = [1] if (seq_len % 8 == 0 or batch == 1) else [batch]
    multi = [s for s in candidates if batch // s >= 2]
    return max(multi) if multi else max(candidates)


def _encoder_call(x2, weights, *, B, T, K, HK, seqs, vmem_limit,
                  batched_heads, single_buffer_weights):
    rows = seqs * T
    grid = B // seqs
    heads = HK // K

    kern = functools.partial(encoder_kernel, seqs=seqs, seq_len=T, k_dim=K,
                             heads=heads, batched_heads=batched_heads)

    weight_kwargs = {}
    if single_buffer_weights:
        # Constant-index blocks never change; a single buffer halves their VMEM.
        weight_kwargs = dict(pipeline_mode=pl.Buffered(1))

    def full(shape):
        return pl.BlockSpec(shape, lambda i: (0,) * len(shape), **weight_kwargs)

    in_specs = [
        pl.BlockSpec((rows, K), lambda i: (i, 0)),   # x row tile
        full((K, 3 * HK)),                           # fused wqkv (scale folded)
        full((HK, K)),                               # wu
        full((1, K)),                                # bu
        full((1, K)), full((1, K)),                  # ln1 gamma / beta
        full((K, 4 * K)), full((1, 4 * K)),          # fc1 w / b
        full((4 * K, K)), full((1, K)),              # fc2 w / b
        full((1, K)), full((1, K)),                  # ln2 gamma / beta
    ]

    return pl.pallas_call(
        kern,
        out_shape=jax.ShapeDtypeStruct((B * T, K), jnp.float32),
        grid_spec=pltpu.PrefetchScalarGridSpec(
            num_scalar_prefetch=0,
            grid=(grid,),
            in_specs=in_specs,
            out_specs=pl.BlockSpec((rows, K), lambda i: (i, 0)),
        ),
        compiler_params=pltpu.CompilerParams(
            dimension_semantics=("parallel",),
            vmem_limit_bytes=vmem_limit,
        ),
    )(x2, *weights)


def transformer_encoder(x, params):
    B, T, K = x.shape
    HK = params["wq"].shape[-1]
    H = HK // K

    # Fold the full 1/sqrt(K) attention scale into the q columns (f32, then bf16).
    wq_scaled = params["wq"] * (float(K) ** -0.5)
    wqkv = jnp.concatenate([wq_scaled, params["wk"], params["wv"]],
                           axis=-1).astype(jnp.bfloat16)
    weights = (wqkv, params["wu"].astype(jnp.bfloat16), params["bu"],
               params["g1"], params["be1"],
               params["w1"].astype(jnp.bfloat16), params["b1"],
               params["w2"].astype(jnp.bfloat16), params["b2"],
               params["g2"], params["be2"])

    vmem_limit = _vmem_limit_bytes()
    seqs = _pick_seqs(B, T, K, H, tile_budget_bytes=vmem_limit // 3)

    x2 = x.reshape(B * T, K)

    # Preferred configuration first; degrade gracefully if this Mosaic build does
    # not lower multi-batch-dim dot_general / 4D transposes or Buffered(1).
    # TODO(synk): drop the fallback tiers once the target toolchain is pinned.
    attempts = ((True, True), (True, False), (False, True), (False, False))
    last_err = None
    for batched_heads, single_buf in attempts:
        try:
            out2 = _encoder_call(x2, weights, B=B, T=T, K=K, HK=HK, seqs=seqs,
                                 vmem_limit=vmem_limit,
                                 batched_heads=batched_heads,
                                 single_buffer_weights=single_buf)
            out2 = jax.block_until_ready(out2)
            return out2.reshape(B, T, K)
        except Exception as e:  # lowering support varies across Mosaic versions
            last_err = e
    raise last_err


def reference_forward(x, p):
    """Pure-JAX (f32) replica of the PyTorch forward, for validation."""
    B, T, K = x.shape
    HK = p["wq"].shape[-1]
    H = HK // K
    scale = float(K) ** (-0.25)

    q = (x @ p["wq"]).reshape(B, T, H, K).transpose(0, 2, 1, 3) * scale
    k = (x @ p["wk"]).reshape(B, T, H, K).transpose(0, 2, 1, 3) * scale
    v = (x @ p["wv"]).reshape(B, T, H, K).transpose(0, 2, 1, 3)
    dot = jnp.einsum("bhtk,bhsk->bhts", q, k)
    att = jax.nn.softmax(dot, axis=-1)
    out = jnp.einsum("bhts,bhsk->bhtk", att, v)
    out = out.transpose(0, 2, 1, 3).reshape(B, T, H * K)
    attended = out @ p["wu"] + p["bu"]

    def ln(y, g, b):
        mu = jnp.mean(y, axis=-1, keepdims=True)
        var = jnp.mean((y - mu) ** 2, axis=-1, keepdims=True)
        return (y - mu) / jnp.sqrt(var + LN_EPS) * g + b

    y = ln(attended + x, p["g1"], p["be1"])
    h1 = jax.nn.relu(y @ p["w1"] + p["b1"])
    ff = h1 @ p["w2"] + p["b2"]
    return ln(ff + y, p["g2"], p["be2"])


def init_params(key, k, heads):
    hk = k * heads
    keys = jax.random.split(key, 8)
    s = 0.05
    return {
        # PyTorch Linear stores (out, in); here weights are pre-transposed to (in, out).
        "wq": jax.random.normal(keys[0], (k, hk), jnp.float32) * s,
        "wk": jax.random.normal(keys[1], (k, hk), jnp.float32) * s,
        "wv": jax.random.normal(keys[2], (k, hk), jnp.float32) * s,
        "wu": jax.random.normal(keys[3], (hk, k), jnp.float32) * s,
        "bu": jax.random.normal(keys[4], (1, k), jnp.float32) * s,
        "g1": jnp.ones((1, k), jnp.float32),
        "be1": jnp.zeros((1, k), jnp.float32),
        "w1": jax.random.normal(keys[5], (k, 4 * k), jnp.float32) * s,
        "b1": jax.random.normal(keys[6], (1, 4 * k), jnp.float32) * s,
        "w2": jax.random.normal(keys[7], (4 * k, k), jnp.float32) * s,
        "b2": jnp.zeros((1, k), jnp.float32),
        "g2": jnp.ones((1, k), jnp.float32),
        "be2": jnp.zeros((1, k), jnp.float32),
    }


if __name__ == "__main__":
    B, T, K, HEADS = 2, 8, 32, 4

    key = jax.random.PRNGKey(0)
    kx, kp = jax.random.split(key)
    x = jax.random.normal(kx, (B, T, K), jnp.float32)
    params = init_params(kp, K, HEADS)

    out = transformer_encoder(x, params)
    out = jax.block_until_ready(out)

    ref = reference_forward(x, params)
    assert out.shape == (B, T, K)
    # bf16 matmul operands (f32 accumulation) + approx reciprocal -> looser tolerance
    # than the f32 reference.
    assert jnp.allclose(out, ref, atol=5e-2, rtol=5e-2), (
        f"max abs err {jnp.max(jnp.abs(out - ref))}")

    print("KERNEL_OK")
</pallas_src>

<mosaic_0001>
module attributes {stable_mosaic.version = 11 : i64} {
  func.func @encoder_kernel(%arg0: i32, %arg1: memref<8x32xf32, #tpu.memory_space<vmem>>, %arg2: memref<32x384xbf16, #tpu.memory_space<vmem>>, %arg3: memref<128x32xbf16, #tpu.memory_space<vmem>>, %arg4: memref<1x32xf32, #tpu.memory_space<vmem>>, %arg5: memref<1x32xf32, #tpu.memory_space<vmem>>, %arg6: memref<1x32xf32, #tpu.memory_space<vmem>>, %arg7: memref<32x128xbf16, #tpu.memory_space<vmem>>, %arg8: memref<1x128xf32, #tpu.memory_space<vmem>>, %arg9: memref<128x32xbf16, #tpu.memory_space<vmem>>, %arg10: memref<1x32xf32, #tpu.memory_space<vmem>>, %arg11: memref<1x32xf32, #tpu.memory_space<vmem>>, %arg12: memref<1x32xf32, #tpu.memory_space<vmem>>, %arg13: memref<8x32xf32, #tpu.memory_space<vmem>>) attributes {dimension_semantics = [#tpu.dimension_semantics<parallel>], iteration_bounds = array<i64: 2>, scalar_prefetch = 0 : i64, scratch_operands = 0 : i64, tpu.core_type = #tpu.core_type<tc>, window_params = [{transform_indices = @transform_0, window_bounds = array<i64: 8, 32>}, {pipeline_mode = #tpu.pipeline_mode<synchronous>, transform_indices = @transform_1, window_bounds = array<i64: 32, 384>}, {pipeline_mode = #tpu.pipeline_mode<synchronous>, transform_indices = @transform_2, window_bounds = array<i64: 128, 32>}, {pipeline_mode = #tpu.pipeline_mode<synchronous>, transform_indices = @transform_3, window_bounds = array<i64: 1, 32>}, {pipeline_mode = #tpu.pipeline_mode<synchronous>, transform_indices = @transform_4, window_bounds = array<i64: 1, 32>}, {pipeline_mode = #tpu.pipeline_mode<synchronous>, transform_indices = @transform_5, window_bounds = array<i64: 1, 32>}, {pipeline_mode = #tpu.pipeline_mode<synchronous>, transform_indices = @transform_6, window_bounds = array<i64: 32, 128>}, {pipeline_mode = #tpu.pipeline_mode<synchronous>, transform_indices = @transform_7, window_bounds = array<i64: 1, 128>}, {pipeline_mode = #tpu.pipeline_mode<synchronous>, transform_indices = @transform_8, window_bounds = array<i64: 128, 32>}, {pipeline_mode = #tpu.pipeline_mode<synchronous>, transform_indices = @transform_9, window_bounds = array<i64: 1, 32>}, {pipeline_mode = #tpu.pipeline_mode<synchronous>, transform_indices = @transform_10, window_bounds = array<i64: 1, 32>}, {pipeline_mode = #tpu.pipeline_mode<synchronous>, transform_indices = @transform_11, window_bounds = array<i64: 1, 32>}, {transform_indices = @transform_12, window_bounds = array<i64: 8, 32>}]} {
    %c0 = arith.constant 0 : index
    %c0_0 = arith.constant 0 : index
    %0 = vector.load %arg1[%c0, %c0_0] : memref<8x32xf32, #tpu.memory_space<vmem>>, vector<8x32xf32>
    %1 = arith.truncf %0 : vector<8x32xf32> to vector<8x32xbf16>
    %c0_1 = arith.constant 0 : index
    %c0_2 = arith.constant 0 : index
    %2 = vector.load %arg2[%c0_1, %c0_2] : memref<32x384xbf16, #tpu.memory_space<vmem>>, vector<32x384xbf16>
    %cst = arith.constant dense<0.000000e+00> : vector<8x384xf32>
    %3 = tpu.matmul %1, %2, %cst {dimension_numbers = #tpu.dot_dimension_numbers<[1], [0], [0], [1], [0, 0, 1, 1], [], []>} : vector<8x32xbf16>, vector<32x384xbf16>, vector<8x384xf32> -> vector<8x384xf32>
    %4 = vector.extract_strided_slice %3 {offsets = [0, 0], sizes = [8, 128], strides = [1, 1]} : vector<8x384xf32> to vector<8x128xf32>
    %5 = arith.truncf %4 : vector<8x128xf32> to vector<8x128xbf16>
    %6 = vector.extract_strided_slice %3 {offsets = [0, 128], sizes = [8, 128], strides = [1, 1]} : vector<8x384xf32> to vector<8x128xf32>
    %7 = arith.truncf %6 : vector<8x128xf32> to vector<8x128xbf16>
    %8 = vector.extract_strided_slice %3 {offsets = [0, 256], sizes = [8, 128], strides = [1, 1]} : vector<8x384xf32> to vector<8x128xf32>
    %9 = arith.truncf %8 : vector<8x128xf32> to vector<8x128xbf16>
    %10 = vector.extract_strided_slice %5 {offsets = [0, 0], sizes = [8, 32], strides = [1, 1]} : vector<8x128xbf16> to vector<8x32xbf16>
    %11 = vector.shape_cast %10 : vector<8x32xbf16> to vector<1x1x8x32xbf16>
    %12 = vector.extract_strided_slice %5 {offsets = [0, 32], sizes = [8, 32], strides = [1, 1]} : vector<8x128xbf16> to vector<8x32xbf16>
    %13 = vector.shape_cast %12 : vector<8x32xbf16> to vector<1x1x8x32xbf16>
    %14 = vector.extract_strided_slice %5 {offsets = [0, 64], sizes = [8, 32], strides = [1, 1]} : vector<8x128xbf16> to vector<8x32xbf16>
    %15 = vector.shape_cast %14 : vector<8x32xbf16> to vector<1x1x8x32xbf16>
    %16 = vector.extract_strided_slice %5 {offsets = [0, 96], sizes = [8, 32], strides = [1, 1]} : vector<8x128xbf16> to vector<8x32xbf16>
    %17 = vector.shape_cast %16 : vector<8x32xbf16> to vector<1x1x8x32xbf16>
    %18 = tpu.concatenate %11, %13, %15, %17 in 1 : vector<1x1x8x32xbf16>, vector<1x1x8x32xbf16>, vector<1x1x8x32xbf16>, vector<1x1x8x32xbf16> -> vector<1x4x8x32xbf16>
    %19 = vector.shape_cast %18 : vector<1x4x8x32xbf16> to vector<4x8x32xbf16>
    %20 = vector.extract_strided_slice %7 {offsets = [0, 0], sizes = [8, 32], strides = [1, 1]} : vector<8x128xbf16> to vector<8x32xbf16>
    %21 = vector.shape_cast %20 : vector<8x32xbf16> to vector<1x1x8x32xbf16>
    %22 = vector.extract_strided_slice %7 {offsets = [0, 32], sizes = [8, 32], strides = [1, 1]} : vector<8x128xbf16> to vector<8x32xbf16>
    %23 = vector.shape_cast %22 : vector<8x32xbf16> to vector<1x1x8x32xbf16>
    %24 = vector.extract_strided_slice %7 {offsets = [0, 64], sizes = [8, 32], strides = [1, 1]} : vector<8x128xbf16> to vector<8x32xbf16>
    %25 = vector.shape_cast %24 : vector<8x32xbf16> to vector<1x1x8x32xbf16>
    %26 = vector.extract_strided_slice %7 {offsets = [0, 96], sizes = [8, 32], strides = [1, 1]} : vector<8x128xbf16> to vector<8x32xbf16>
    %27 = vector.shape_cast %26 : vector<8x32xbf16> to vector<1x1x8x32xbf16>
    %28 = tpu.concatenate %21, %23, %25, %27 in 1 : vector<1x1x8x32xbf16>, vector<1x1x8x32xbf16>, vector<1x1x8x32xbf16>, vector<1x1x8x32xbf16> -> vector<1x4x8x32xbf16>
    %29 = vector.shape_cast %28 : vector<1x4x8x32xbf16> to vector<4x8x32xbf16>
    %30 = vector.extract_strided_slice %9 {offsets = [0, 0], sizes = [8, 32], strides = [1, 1]} : vector<8x128xbf16> to vector<8x32xbf16>
    %31 = vector.shape_cast %30 : vector<8x32xbf16> to vector<1x1x8x32xbf16>
    %32 = vector.extract_strided_slice %9 {offsets = [0, 32], sizes = [8, 32], strides = [1, 1]} : vector<8x128xbf16> to vector<8x32xbf16>
    %33 = vector.shape_cast %32 : vector<8x32xbf16> to vector<1x1x8x32xbf16>
    %34 = vector.extract_strided_slice %9 {offsets = [0, 64], sizes = [8, 32], strides = [1, 1]} : vector<8x128xbf16> to vector<8x32xbf16>
    %35 = vector.shape_cast %34 : vector<8x32xbf16> to vector<1x1x8x32xbf16>
    %36 = vector.extract_strided_slice %9 {offsets = [0, 96], sizes = [8, 32], strides = [1, 1]} : vector<8x128xbf16> to vector<8x32xbf16>
    %37 = vector.shape_cast %36 : vector<8x32xbf16> to vector<1x1x8x32xbf16>
    %38 = tpu.concatenate %31, %33, %35, %37 in 1 : vector<1x1x8x32xbf16>, vector<1x1x8x32xbf16>, vector<1x1x8x32xbf16>, vector<1x1x8x32xbf16> -> vector<1x4x8x32xbf16>
    %39 = vector.shape_cast %38 : vector<1x4x8x32xbf16> to vector<4x8x32xbf16>
    "tpu.trace_start"() <{level = 10 : i32, message = "gtk,gsk->gts"}> : () -> ()
    %cst_3 = arith.constant dense<0.000000e+00> : vector<4x8x8xf32>
    %40 = tpu.matmul %19, %29, %cst_3 {dimension_numbers = #tpu.dot_dimension_numbers<[2], [2], [1], [1], [0, 0, 0, 1, 1, 1], [0], [0]>} : vector<4x8x32xbf16>, vector<4x8x32xbf16>, vector<4x8x8xf32> -> vector<4x8x8xf32>
    "tpu.trace_stop"() : () -> ()
    %cst_4 = arith.constant dense<0xFF800000> : vector<4x8xf32>
    %41 = vector.multi_reduction <maximumf>, %40, %cst_4 [2] : vector<4x8x8xf32> to vector<4x8xf32>
    %42 = vector.shape_cast %41 : vector<4x8xf32> to vector<4x8x1xf32>
    %43 = vector.broadcast %42 : vector<4x8x1xf32> to vector<4x8x8xf32>
    %44 = arith.subf %40, %43 : vector<4x8x8xf32>
    %45 = math.exp %44 : vector<4x8x8xf32>
    %46 = arith.truncf %45 : vector<4x8x8xf32> to vector<4x8x8xbf16>
    "tpu.trace_start"() <{level = 10 : i32, message = "gts,gsk->gtk"}> : () -> ()
    %cst_5 = arith.constant dense<0.000000e+00> : vector<4x8x32xf32>
    %47 = tpu.matmul %46, %39, %cst_5 {dimension_numbers = #tpu.dot_dimension_numbers<[2], [1], [1], [2], [0, 0, 0, 1, 1, 2], [0], [0]>} : vector<4x8x8xbf16>, vector<4x8x32xbf16>, vector<4x8x32xf32> -> vector<4x8x32xf32>
    "tpu.trace_stop"() : () -> ()
    %cst_6 = arith.constant dense<0.000000e+00> : vector<4x8xf32>
    %48 = vector.multi_reduction <add>, %45, %cst_6 [2] : vector<4x8x8xf32> to vector<4x8xf32>
    %49 = vector.shape_cast %48 : vector<4x8xf32> to vector<4x8x1xf32>
    %50 = tpu.reciprocal %49 {approx = true} : vector<4x8x1xf32> -> vector<4x8x1xf32>
    %51 = vector.broadcast %50 : vector<4x8x1xf32> to vector<4x8x32xf32>
    %52 = arith.mulf %47, %51 : vector<4x8x32xf32>
    %53 = vector.shape_cast %52 : vector<4x8x32xf32> to vector<1x4x8x32xf32>
    %54 = vector.extract_strided_slice %53 {offsets = [0, 0, 0, 0], sizes = [1, 1, 8, 32], strides = [1, 1, 1, 1]} : vector<1x4x8x32xf32> to vector<1x1x8x32xf32>
    %55 = vector.shape_cast %54 : vector<1x1x8x32xf32> to vector<1x8x32xf32>
    %56 = vector.extract_strided_slice %53 {offsets = [0, 1, 0, 0], sizes = [1, 1, 8, 32], strides = [1, 1, 1, 1]} : vector<1x4x8x32xf32> to vector<1x1x8x32xf32>
    %57 = vector.shape_cast %56 : vector<1x1x8x32xf32> to vector<1x8x32xf32>
    %58 = vector.extract_strided_slice %53 {offsets = [0, 2, 0, 0], sizes = [1, 1, 8, 32], strides = [1, 1, 1, 1]} : vector<1x4x8x32xf32> to vector<1x1x8x32xf32>
    %59 = vector.shape_cast %58 : vector<1x1x8x32xf32> to vector<1x8x32xf32>
    %60 = vector.extract_strided_slice %53 {offsets = [0, 3, 0, 0], sizes = [1, 1, 8, 32], strides = [1, 1, 1, 1]} : vector<1x4x8x32xf32> to vector<1x1x8x32xf32>
    %61 = vector.shape_cast %60 : vector<1x1x8x32xf32> to vector<1x8x32xf32>
    %62 = tpu.concatenate %55, %57, %59, %61 in 2 : vector<1x8x32xf32>, vector<1x8x32xf32>, vector<1x8x32xf32>, vector<1x8x32xf32> -> vector<1x8x128xf32>
    %63 = vector.shape_cast %62 : vector<1x8x128xf32> to vector<8x128xf32>
    %64 = arith.truncf %63 : vector<8x128xf32> to vector<8x128xbf16>
    %c0_7 = arith.constant 0 : index
    %c0_8 = arith.constant 0 : index
    %65 = vector.load %arg3[%c0_7, %c0_8] : memref<128x32xbf16, #tpu.memory_space<vmem>>, vector<128x32xbf16>
    %cst_9 = arith.constant dense<0.000000e+00> : vector<8x32xf32>
    %66 = tpu.matmul %64, %65, %cst_9 {dimension_numbers = #tpu.dot_dimension_numbers<[1], [0], [0], [1], [0, 0, 1, 1], [], []>} : vector<8x128xbf16>, vector<128x32xbf16>, vector<8x32xf32> -> vector<8x32xf32>
    %c0_10 = arith.constant 0 : index
    %c0_11 = arith.constant 0 : index
    %67 = vector.load %arg4[%c0_10, %c0_11] : memref<1x32xf32, #tpu.memory_space<vmem>>, vector<1x32xf32>
    %68 = vector.broadcast %67 : vector<1x32xf32> to vector<8x32xf32>
    %69 = arith.addf %66, %68 : vector<8x32xf32>
    %70 = arith.addf %69, %0 : vector<8x32xf32>
    %c0_12 = arith.constant 0 : index
    %c0_13 = arith.constant 0 : index
    %71 = vector.load %arg5[%c0_12, %c0_13] : memref<1x32xf32, #tpu.memory_space<vmem>>, vector<1x32xf32>
    %c0_14 = arith.constant 0 : index
    %c0_15 = arith.constant 0 : index
    %72 = vector.load %arg6[%c0_14, %c0_15] : memref<1x32xf32, #tpu.memory_space<vmem>>, vector<1x32xf32>
    %cst_16 = arith.constant dense<0.000000e+00> : vector<8xf32>
    %73 = vector.multi_reduction <add>, %70, %cst_16 [1] : vector<8x32xf32> to vector<8xf32>
    %74 = vector.shape_cast %73 : vector<8xf32> to vector<8x1xf32>
    %cst_17 = arith.constant 3.200000e+01 : f32
    %75 = vector.broadcast %cst_17 : f32 to vector<8x1xf32>
    %76 = arith.divf %74, %75 : vector<8x1xf32>
    %77 = vector.broadcast %76 : vector<8x1xf32> to vector<8x32xf32>
    %78 = arith.subf %70, %77 : vector<8x32xf32>
    %79 = arith.mulf %78, %78 : vector<8x32xf32>
    %cst_18 = arith.constant dense<0.000000e+00> : vector<8xf32>
    %80 = vector.multi_reduction <add>, %79, %cst_18 [1] : vector<8x32xf32> to vector<8xf32>
    %81 = vector.shape_cast %80 : vector<8xf32> to vector<8x1xf32>
    %cst_19 = arith.constant 3.200000e+01 : f32
    %82 = vector.broadcast %cst_19 : f32 to vector<8x1xf32>
    %83 = arith.divf %81, %82 : vector<8x1xf32>
    %84 = vector.broadcast %76 : vector<8x1xf32> to vector<8x32xf32>
    %85 = arith.subf %70, %84 : vector<8x32xf32>
    %cst_20 = arith.constant 9.99999974E-6 : f32
    %86 = vector.broadcast %cst_20 : f32 to vector<8x1xf32>
    %87 = arith.addf %83, %86 : vector<8x1xf32>
    %88 = math.rsqrt %87 : vector<8x1xf32>
    %89 = vector.broadcast %88 : vector<8x1xf32> to vector<8x32xf32>
    %90 = arith.mulf %85, %89 : vector<8x32xf32>
    %91 = vector.broadcast %71 : vector<1x32xf32> to vector<8x32xf32>
    %92 = arith.mulf %90, %91 : vector<8x32xf32>
    %93 = vector.broadcast %72 : vector<1x32xf32> to vector<8x32xf32>
    %94 = arith.addf %92, %93 : vector<8x32xf32>
    %95 = arith.truncf %94 : vector<8x32xf32> to vector<8x32xbf16>
    %c0_21 = arith.constant 0 : index
    %c0_22 = arith.constant 0 : index
    %96 = vector.load %arg7[%c0_21, %c0_22] : memref<32x128xbf16, #tpu.memory_space<vmem>>, vector<32x128xbf16>
    %cst_23 = arith.constant dense<0.000000e+00> : vector<8x128xf32>
    %97 = tpu.matmul %95, %96, %cst_23 {dimension_numbers = #tpu.dot_dimension_numbers<[1], [0], [0], [1], [0, 0, 1, 1], [], []>} : vector<8x32xbf16>, vector<32x128xbf16>, vector<8x128xf32> -> vector<8x128xf32>
    %c0_24 = arith.constant 0 : index
    %c0_25 = arith.constant 0 : index
    %98 = vector.load %arg8[%c0_24, %c0_25] : memref<1x128xf32, #tpu.memory_space<vmem>>, vector<1x128xf32>
    %99 = vector.broadcast %98 : vector<1x128xf32> to vector<8x128xf32>
    %100 = arith.addf %97, %99 : vector<8x128xf32>
    %cst_26 = arith.constant 0.000000e+00 : f32
    %101 = vector.broadcast %cst_26 : f32 to vector<8x128xf32>
    %102 = arith.maximumf %100, %101 : vector<8x128xf32>
    %103 = arith.truncf %102 : vector<8x128xf32> to vector<8x128xbf16>
    %c0_27 = arith.constant 0 : index
    %c0_28 = arith.constant 0 : index
    %104 = vector.load %arg9[%c0_27, %c0_28] : memref<128x32xbf16, #tpu.memory_space<vmem>>, vector<128x32xbf16>
    %cst_29 = arith.constant dense<0.000000e+00> : vector<8x32xf32>
    %105 = tpu.matmul %103, %104, %cst_29 {dimension_numbers = #tpu.dot_dimension_numbers<[1], [0], [0], [1], [0, 0, 1, 1], [], []>} : vector<8x128xbf16>, vector<128x32xbf16>, vector<8x32xf32> -> vector<8x32xf32>
    %c0_30 = arith.constant 0 : index
    %c0_31 = arith.constant 0 : index
    %106 = vector.load %arg10[%c0_30, %c0_31] : memref<1x32xf32, #tpu.memory_space<vmem>>, vector<1x32xf32>
    %107 = vector.broadcast %106 : vector<1x32xf32> to vector<8x32xf32>
    %108 = arith.addf %105, %107 : vector<8x32xf32>
    %109 = arith.addf %108, %94 : vector<8x32xf32>
    %c0_32 = arith.constant 0 : index
    %c0_33 = arith.constant 0 : index
    %110 = vector.load %arg11[%c0_32, %c0_33] : memref<1x32xf32, #tpu.memory_space<vmem>>, vector<1x32xf32>
    %c0_34 = arith.constant 0 : index
    %c0_35 = arith.constant 0 : index
    %111 = vector.load %arg12[%c0_34, %c0_35] : memref<1x32xf32, #tpu.memory_space<vmem>>, vector<1x32xf32>
    %cst_36 = arith.constant dense<0.000000e+00> : vector<8xf32>
    %112 = vector.multi_reduction <add>, %109, %cst_36 [1] : vector<8x32xf32> to vector<8xf32>
    %113 = vector.shape_cast %112 : vector<8xf32> to vector<8x1xf32>
    %cst_37 = arith.constant 3.200000e+01 : f32
    %114 = vector.broadcast %cst_37 : f32 to vector<8x1xf32>
    %115 = arith.divf %113, %114 : vector<8x1xf32>
    %116 = vector.broadcast %115 : vector<8x1xf32> to vector<8x32xf32>
    %117 = arith.subf %109, %116 : vector<8x32xf32>
    %118 = arith.mulf %117, %117 : vector<8x32xf32>
    %cst_38 = arith.constant dense<0.000000e+00> : vector<8xf32>
    %119 = vector.multi_reduction <add>, %118, %cst_38 [1] : vector<8x32xf32> to vector<8xf32>
    %120 = vector.shape_cast %119 : vector<8xf32> to vector<8x1xf32>
    %cst_39 = arith.constant 3.200000e+01 : f32
    %121 = vector.broadcast %cst_39 : f32 to vector<8x1xf32>
    %122 = arith.divf %120, %121 : vector<8x1xf32>
    %123 = vector.broadcast %115 : vector<8x1xf32> to vector<8x32xf32>
    %124 = arith.subf %109, %123 : vector<8x32xf32>
    %cst_40 = arith.constant 9.99999974E-6 : f32
    %125 = vector.broadcast %cst_40 : f32 to vector<8x1xf32>
    %126 = arith.addf %122, %125 : vector<8x1xf32>
    %127 = math.rsqrt %126 : vector<8x1xf32>
    %128 = vector.broadcast %127 : vector<8x1xf32> to vector<8x32xf32>
    %129 = arith.mulf %124, %128 : vector<8x32xf32>
    %130 = vector.broadcast %110 : vector<1x32xf32> to vector<8x32xf32>
    %131 = arith.mulf %129, %130 : vector<8x32xf32>
    %132 = vector.broadcast %111 : vector<1x32xf32> to vector<8x32xf32>
    %133 = arith.addf %131, %132 : vector<8x32xf32>
    %c0_41 = arith.constant 0 : index
    %c0_42 = arith.constant 0 : index
    %134 = vector.load %arg13[%c0_41, %c0_42] : memref<8x32xf32, #tpu.memory_space<vmem>>, vector<8x32xf32>
    tpu.vector_store %arg13[%c0_41, %c0_42], %133 {strides = array<i32>} : memref<8x32xf32, #tpu.memory_space<vmem>>, vector<8x32xf32>,
    return
  }
  func.func @transform_0(%arg0: i32) -> (i32, i32) {
    %c0_i32 = arith.constant 0 : i32
    %c0_i32_0 = arith.constant 0 : i32
    return %arg0, %c0_i32 : i32, i32
  }
  func.func @transform_1(%arg0: i32) -> (i32, i32) {
    %c0_i32 = arith.constant 0 : i32
    %c0_i32_0 = arith.constant 0 : i32
    %c0_i32_1 = arith.constant 0 : i32
    return %c0_i32, %c0_i32_0 : i32, i32
  }
  func.func @transform_2(%arg0: i32) -> (i32, i32) {
    %c0_i32 = arith.constant 0 : i32
    %c0_i32_0 = arith.constant 0 : i32
    %c0_i32_1 = arith.constant 0 : i32
    return %c0_i32, %c0_i32_0 : i32, i32
  }
  func.func @transform_3(%arg0: i32) -> (i32, i32) {
    %c0_i32 = arith.constant 0 : i32
    %c0_i32_0 = arith.constant 0 : i32
    %c0_i32_1 = arith.constant 0 : i32
    return %c0_i32, %c0_i32_0 : i32, i32
  }
  func.func @transform_4(%arg0: i32) -> (i32, i32) {
    %c0_i32 = arith.constant 0 : i32
    %c0_i32_0 = arith.constant 0 : i32
    %c0_i32_1 = arith.constant 0 : i32
    return %c0_i32, %c0_i32_0 : i32, i32
  }
  func.func @transform_5(%arg0: i32) -> (i32, i32) {
    %c0_i32 = arith.constant 0 : i32
    %c0_i32_0 = arith.constant 0 : i32
    %c0_i32_1 = arith.constant 0 : i32
    return %c0_i32, %c0_i32_0 : i32, i32
  }
  func.func @transform_6(%arg0: i32) -> (i32, i32) {
    %c0_i32 = arith.constant 0 : i32
    %c0_i32_0 = arith.constant 0 : i32
    %c0_i32_1 = arith.constant 0 : i32
    return %c0_i32, %c0_i32_0 : i32, i32
  }
  func.func @transform_7(%arg0: i32) -> (i32, i32) {
    %c0_i32 = arith.constant 0 : i32
    %c0_i32_0 = arith.constant 0 : i32
    %c0_i32_1 = arith.constant 0 : i32
    return %c0_i32, %c0_i32_0 : i32, i32
  }
  func.func @transform_8(%arg0: i32) -> (i32, i32) {
    %c0_i32 = arith.constant 0 : i32
    %c0_i32_0 = arith.constant 0 : i32
    %c0_i32_1 = arith.constant 0 : i32
    return %c0_i32, %c0_i32_0 : i32, i32
  }
  func.func @transform_9(%arg0: i32) -> (i32, i32) {
    %c0_i32 = arith.constant 0 : i32
    %c0_i32_0 = arith.constant 0 : i32
    %c0_i32_1 = arith.constant 0 : i32
    return %c0_i32, %c0_i32_0 : i32, i32
  }
  func.func @transform_10(%arg0: i32) -> (i32, i32) {
    %c0_i32 = arith.constant 0 : i32
    %c0_i32_0 = arith.constant 0 : i32
    %c0_i32_1 = arith.constant 0 : i32
    return %c0_i32, %c0_i32_0 : i32, i32
  }
  func.func @transform_11(%arg0: i32) -> (i32, i32) {
    %c0_i32 = arith.constant 0 : i32
    %c0_i32_0 = arith.constant 0 : i32
    %c0_i32_1 = arith.constant 0 : i32
    return %c0_i32, %c0_i32_0 : i32, i32
  }
  func.func @transform_12(%arg0: i32) -> (i32, i32) {
    %c0_i32 = arith.constant 0 : i32
    %c0_i32_0 = arith.constant 0 : i32
    return %arg0, %c0_i32 : i32, i32
  }
}

module attributes {stable_mosaic.version = 11 : i64} {
  func.func @encoder_kernel(%arg0: i32, %arg1: memref<8x32xf32, #tpu.memory_space<vmem>>, %arg2: memref<32x384xbf16, #tpu.memory_space<vmem>>, %arg3: memref<128x32xbf16, #tpu.memory_space<vmem>>, %arg4: memref<1x32xf32, #tpu.memory_space<vmem>>, %arg5: memref<1x32xf32, #tpu.memory_space<vmem>>, %arg6: memref<1x32xf32, #tpu.memory_space<vmem>>, %arg7: memref<32x128xbf16, #tpu.memory_space<vmem>>, %arg8: memref<1x128xf32, #tpu.memory_space<vmem>>, %arg9: memref<128x32xbf16, #tpu.memory_space<vmem>>, %arg10: memref<1x32xf32, #tpu.memory_space<vmem>>, %arg11: memref<1x32xf32, #tpu.memory_space<vmem>>, %arg12: memref<1x32xf32, #tpu.memory_space<vmem>>, %arg13: memref<8x32xf32, #tpu.memory_space<vmem>>) attributes {dimension_semantics = [#tpu.dimension_semantics<parallel>], iteration_bounds = array<i64: 2>, scalar_prefetch = 0 : i64, scratch_operands = 0 : i64, tpu.core_type = #tpu.core_type<tc>, window_params = [{transform_indices = @transform_0, window_bounds = array<i64: 8, 32>}, {pipeline_mode = #tpu.pipeline_mode<synchronous>, transform_indices = @transform_1, window_bounds = array<i64: 32, 384>}, {pipeline_mode = #tpu.pipeline_mode<synchronous>, transform_indices = @transform_2, window_bounds = array<i64: 128, 32>}, {pipeline_mode = #tpu.pipeline_mode<synchronous>, transform_indices = @transform_3, window_bounds = array<i64: 1, 32>}, {pipeline_mode = #tpu.pipeline_mode<synchronous>, transform_indices = @transform_4, window_bounds = array<i64: 1, 32>}, {pipeline_mode = #tpu.pipeline_mode<synchronous>, transform_indices = @transform_5, window_bounds = array<i64: 1, 32>}, {pipeline_mode = #tpu.pipeline_mode<synchronous>, transform_indices = @transform_6, window_bounds = array<i64: 32, 128>}, {pipeline_mode = #tpu.pipeline_mode<synchronous>, transform_indices = @transform_7, window_bounds = array<i64: 1, 128>}, {pipeline_mode = #tpu.pipeline_mode<synchronous>, transform_indices = @transform_8, window_bounds = array<i64: 128, 32>}, {pipeline_mode = #tpu.pipeline_mode<synchronous>, transform_indices = @transform_9, window_bounds = array<i64: 1, 32>}, {pipeline_mode = #tpu.pipeline_mode<synchronous>, transform_indices = @transform_10, window_bounds = array<i64: 1, 32>}, {pipeline_mode = #tpu.pipeline_mode<synchronous>, transform_indices = @transform_11, window_bounds = array<i64: 1, 32>}, {transform_indices = @transform_12, window_bounds = array<i64: 8, 32>}]} {
    %c0 = arith.constant 0 : index
    %c0_0 = arith.constant 0 : index
    %0 = vector.load %arg1[%c0, %c0_0] : memref<8x32xf32, #tpu.memory_space<vmem>>, vector<8x32xf32>
    %1 = arith.truncf %0 : vector<8x32xf32> to vector<8x32xbf16>
    %c0_1 = arith.constant 0 : index
    %c0_2 = arith.constant 0 : index
    %2 = vector.load %arg2[%c0_1, %c0_2] : memref<32x384xbf16, #tpu.memory_space<vmem>>, vector<32x384xbf16>
    %cst = arith.constant dense<0.000000e+00> : vector<8x384xf32>
    %3 = tpu.matmul %1, %2, %cst {dimension_numbers = #tpu.dot_dimension_numbers<[1], [0], [0], [1], [0, 0, 1, 1], [], []>} : vector<8x32xbf16>, vector<32x384xbf16>, vector<8x384xf32> -> vector<8x384xf32>
    %4 = vector.extract_strided_slice %3 {offsets = [0, 0], sizes = [8, 128], strides = [1, 1]} : vector<8x384xf32> to vector<8x128xf32>
    %5 = arith.truncf %4 : vector<8x128xf32> to vector<8x128xbf16>
    %6 = vector.extract_strided_slice %3 {offsets = [0, 128], sizes = [8, 128], strides = [1, 1]} : vector<8x384xf32> to vector<8x128xf32>
    %7 = arith.truncf %6 : vector<8x128xf32> to vector<8x128xbf16>
    %8 = vector.extract_strided_slice %3 {offsets = [0, 256], sizes = [8, 128], strides = [1, 1]} : vector<8x384xf32> to vector<8x128xf32>
    %9 = arith.truncf %8 : vector<8x128xf32> to vector<8x128xbf16>
    %10 = vector.extract_strided_slice %5 {offsets = [0, 0], sizes = [8, 32], strides = [1, 1]} : vector<8x128xbf16> to vector<8x32xbf16>
    %11 = vector.shape_cast %10 : vector<8x32xbf16> to vector<1x1x8x32xbf16>
    %12 = vector.extract_strided_slice %5 {offsets = [0, 32], sizes = [8, 32], strides = [1, 1]} : vector<8x128xbf16> to vector<8x32xbf16>
    %13 = vector.shape_cast %12 : vector<8x32xbf16> to vector<1x1x8x32xbf16>
    %14 = vector.extract_strided_slice %5 {offsets = [0, 64], sizes = [8, 32], strides = [1, 1]} : vector<8x128xbf16> to vector<8x32xbf16>
    %15 = vector.shape_cast %14 : vector<8x32xbf16> to vector<1x1x8x32xbf16>
    %16 = vector.extract_strided_slice %5 {offsets = [0, 96], sizes = [8, 32], strides = [1, 1]} : vector<8x128xbf16> to vector<8x32xbf16>
    %17 = vector.shape_cast %16 : vector<8x32xbf16> to vector<1x1x8x32xbf16>
    %18 = tpu.concatenate %11, %13, %15, %17 in 1 : vector<1x1x8x32xbf16>, vector<1x1x8x32xbf16>, vector<1x1x8x32xbf16>, vector<1x1x8x32xbf16> -> vector<1x4x8x32xbf16>
    %19 = vector.shape_cast %18 : vector<1x4x8x32xbf16> to vector<4x8x32xbf16>
    %20 = vector.extract_strided_slice %7 {offsets = [0, 0], sizes = [8, 32], strides = [1, 1]} : vector<8x128xbf16> to vector<8x32xbf16>
    %21 = vector.shape_cast %20 : vector<8x32xbf16> to vector<1x1x8x32xbf16>
    %22 = vector.extract_strided_slice %7 {offsets = [0, 32], sizes = [8, 32], strides = [1, 1]} : vector<8x128xbf16> to vector<8x32xbf16>
    %23 = vector.shape_cast %22 : vector<8x32xbf16> to vector<1x1x8x32xbf16>
    %24 = vector.extract_strided_slice %7 {offsets = [0, 64], sizes = [8, 32], strides = [1, 1]} : vector<8x128xbf16> to vector<8x32xbf16>
    %25 = vector.shape_cast %24 : vector<8x32xbf16> to vector<1x1x8x32xbf16>
    %26 = vector.extract_strided_slice %7 {offsets = [0, 96], sizes = [8, 32], strides = [1, 1]} : vector<8x128xbf16> to vector<8x32xbf16>
    %27 = vector.shape_cast %26 : vector<8x32xbf16> to vector<1x1x8x32xbf16>
    %28 = tpu.concatenate %21, %23, %25, %27 in 1 : vector<1x1x8x32xbf16>, vector<1x1x8x32xbf16>, vector<1x1x8x32xbf16>, vector<1x1x8x32xbf16> -> vector<1x4x8x32xbf16>
    %29 = vector.shape_cast %28 : vector<1x4x8x32xbf16> to vector<4x8x32xbf16>
    %30 = vector.extract_strided_slice %9 {offsets = [0, 0], sizes = [8, 32], strides = [1, 1]} : vector<8x128xbf16> to vector<8x32xbf16>
    %31 = vector.shape_cast %30 : vector<8x32xbf16> to vector<1x1x8x32xbf16>
    %32 = vector.extract_strided_slice %9 {offsets = [0, 32], sizes = [8, 32], strides = [1, 1]} : vector<8x128xbf16> to vector<8x32xbf16>
    %33 = vector.shape_cast %32 : vector<8x32xbf16> to vector<1x1x8x32xbf16>
    %34 = vector.extract_strided_slice %9 {offsets = [0, 64], sizes = [8, 32], strides = [1, 1]} : vector<8x128xbf16> to vector<8x32xbf16>
    %35 = vector.shape_cast %34 : vector<8x32xbf16> to vector<1x1x8x32xbf16>
    %36 = vector.extract_strided_slice %9 {offsets = [0, 96], sizes = [8, 32], strides = [1, 1]} : vector<8x128xbf16> to vector<8x32xbf16>
    %37 = vector.shape_cast %36 : vector<8x32xbf16> to vector<1x1x8x32xbf16>
    %38 = tpu.concatenate %31, %33, %35, %37 in 1 : vector<1x1x8x32xbf16>, vector<1x1x8x32xbf16>, vector<1x1x8x32xbf16>, vector<1x1x8x32xbf16> -> vector<1x4x8x32xbf16>
    %39 = vector.shape_cast %38 : vector<1x4x8x32xbf16> to vector<4x8x32xbf16>
    "tpu.trace_start"() <{level = 10 : i32, message = "gtk,gsk->gts"}> : () -> ()
    %cst_3 = arith.constant dense<0.000000e+00> : vector<4x8x8xf32>
    %40 = tpu.matmul %19, %29, %cst_3 {dimension_numbers = #tpu.dot_dimension_numbers<[2], [2], [1], [1], [0, 0, 0, 1, 1, 1], [0], [0]>} : vector<4x8x32xbf16>, vector<4x8x32xbf16>, vector<4x8x8xf32> -> vector<4x8x8xf32>
    "tpu.trace_stop"() : () -> ()
    %cst_4 = arith.constant dense<0xFF800000> : vector<4x8xf32>
    %41 = vector.multi_reduction <maximumf>, %40, %cst_4 [2] : vector<4x8x8xf32> to vector<4x8xf32>
    %42 = vector.shape_cast %41 : vector<4x8xf32> to vector<4x8x1xf32>
    %43 = vector.broadcast %42 : vector<4x8x1xf32> to vector<4x8x8xf32>
    %44 = arith.subf %40, %43 : vector<4x8x8xf32>
    %45 = math.exp %44 : vector<4x8x8xf32>
    %46 = arith.truncf %45 : vector<4x8x8xf32> to vector<4x8x8xbf16>
    "tpu.trace_start"() <{level = 10 : i32, message = "gts,gsk->gtk"}> : () -> ()
    %cst_5 = arith.constant dense<0.000000e+00> : vector<4x8x32xf32>
    %47 = tpu.matmul %46, %39, %cst_5 {dimension_numbers = #tpu.dot_dimension_numbers<[2], [1], [1], [2], [0, 0, 0, 1, 1, 2], [0], [0]>} : vector<4x8x8xbf16>, vector<4x8x32xbf16>, vector<4x8x32xf32> -> vector<4x8x32xf32>
    "tpu.trace_stop"() : () -> ()
    %cst_6 = arith.constant dense<0.000000e+00> : vector<4x8xf32>
    %48 = vector.multi_reduction <add>, %45, %cst_6 [2] : vector<4x8x8xf32> to vector<4x8xf32>
    %49 = vector.shape_cast %48 : vector<4x8xf32> to vector<4x8x1xf32>
    %50 = tpu.reciprocal %49 {approx = true} : vector<4x8x1xf32> -> vector<4x8x1xf32>
    %51 = vector.broadcast %50 : vector<4x8x1xf32> to vector<4x8x32xf32>
    %52 = arith.mulf %47, %51 : vector<4x8x32xf32>
    %53 = vector.shape_cast %52 : vector<4x8x32xf32> to vector<1x4x8x32xf32>
    %54 = vector.extract_strided_slice %53 {offsets = [0, 0, 0, 0], sizes = [1, 1, 8, 32], strides = [1, 1, 1, 1]} : vector<1x4x8x32xf32> to vector<1x1x8x32xf32>
    %55 = vector.shape_cast %54 : vector<1x1x8x32xf32> to vector<1x8x32xf32>
    %56 = vector.extract_strided_slice %53 {offsets = [0, 1, 0, 0], sizes = [1, 1, 8, 32], strides = [1, 1, 1, 1]} : vector<1x4x8x32xf32> to vector<1x1x8x32xf32>
    %57 = vector.shape_cast %56 : vector<1x1x8x32xf32> to vector<1x8x32xf32>
    %58 = vector.extract_strided_slice %53 {offsets = [0, 2, 0, 0], sizes = [1, 1, 8, 32], strides = [1, 1, 1, 1]} : vector<1x4x8x32xf32> to vector<1x1x8x32xf32>
    %59 = vector.shape_cast %58 : vector<1x1x8x32xf32> to vector<1x8x32xf32>
    %60 = vector.extract_strided_slice %53 {offsets = [0, 3, 0, 0], sizes = [1, 1, 8, 32], strides = [1, 1, 1, 1]} : vector<1x4x8x32xf32> to vector<1x1x8x32xf32>
    %61 = vector.shape_cast %60 : vector<1x1x8x32xf32> to vector<1x8x32xf32>
    %62 = tpu.concatenate %55, %57, %59, %61 in 2 : vector<1x8x32xf32>, vector<1x8x32xf32>, vector<1x8x32xf32>, vector<1x8x32xf32> -> vector<1x8x128xf32>
    %63 = vector.shape_cast %62 : vector<1x8x128xf32> to vector<8x128xf32>
    %64 = arith.truncf %63 : vector<8x128xf32> to vector<8x128xbf16>
    %c0_7 = arith.constant 0 : index
    %c0_8 = arith.constant 0 : index
    %65 = vector.load %arg3[%c0_7, %c0_8] : memref<128x32xbf16, #tpu.memory_space<vmem>>, vector<128x32xbf16>
    %cst_9 = arith.constant dense<0.000000e+00> : vector<8x32xf32>
    %66 = tpu.matmul %64, %65, %cst_9 {dimension_numbers = #tpu.dot_dimension_numbers<[1], [0], [0], [1], [0, 0, 1, 1], [], []>} : vector<8x128xbf16>, vector<128x32xbf16>, vector<8x32xf32> -> vector<8x32xf32>
    %c0_10 = arith.constant 0 : index
    %c0_11 = arith.constant 0 : index
    %67 = vector.load %arg4[%c0_10, %c0_11] : memref<1x32xf32, #tpu.memory_space<vmem>>, vector<1x32xf32>
    %68 = vector.broadcast %67 : vector<1x32xf32> to vector<8x32xf32>
    %69 = arith.addf %66, %68 : vector<8x32xf32>
    %70 = arith.addf %69, %0 : vector<8x32xf32>
    %c0_12 = arith.constant 0 : index
    %c0_13 = arith.constant 0 : index
    %71 = vector.load %arg5[%c0_12, %c0_13] : memref<1x32xf32, #tpu.memory_space<vmem>>, vector<1x32xf32>
    %c0_14 = arith.constant 0 : index
    %c0_15 = arith.constant 0 : index
    %72 = vector.load %arg6[%c0_14, %c0_15] : memref<1x32xf32, #tpu.memory_space<vmem>>, vector<1x32xf32>
    %cst_16 = arith.constant dense<0.000000e+00> : vector<8xf32>
    %73 = vector.multi_reduction <add>, %70, %cst_16 [1] : vector<8x32xf32> to vector<8xf32>
    %74 = vector.shape_cast %73 : vector<8xf32> to vector<8x1xf32>
    %cst_17 = arith.constant 3.200000e+01 : f32
    %75 = vector.broadcast %cst_17 : f32 to vector<8x1xf32>
    %76 = arith.divf %74, %75 : vector<8x1xf32>
    %77 = vector.broadcast %76 : vector<8x1xf32> to vector<8x32xf32>
    %78 = arith.subf %70, %77 : vector<8x32xf32>
    %79 = arith.mulf %78, %78 : vector<8x32xf32>
    %cst_18 = arith.constant dense<0.000000e+00> : vector<8xf32>
    %80 = vector.multi_reduction <add>, %79, %cst_18 [1] : vector<8x32xf32> to vector<8xf32>
    %81 = vector.shape_cast %80 : vector<8xf32> to vector<8x1xf32>
    %cst_19 = arith.constant 3.200000e+01 : f32
    %82 = vector.broadcast %cst_19 : f32 to vector<8x1xf32>
    %83 = arith.divf %81, %82 : vector<8x1xf32>
    %84 = vector.broadcast %76 : vector<8x1xf32> to vector<8x32xf32>
    %85 = arith.subf %70, %84 : vector<8x32xf32>
    %cst_20 = arith.constant 9.99999974E-6 : f32
    %86 = vector.broadcast %cst_20 : f32 to vector<8x1xf32>
    %87 = arith.addf %83, %86 : vector<8x1xf32>
    %88 = math.rsqrt %87 : vector<8x1xf32>
    %89 = vector.broadcast %88 : vector<8x1xf32> to vector<8x32xf32>
    %90 = arith.mulf %85, %89 : vector<8x32xf32>
    %91 = vector.broadcast %71 : vector<1x32xf32> to vector<8x32xf32>
    %92 = arith.mulf %90, %91 : vector<8x32xf32>
    %93 = vector.broadcast %72 : vector<1x32xf32> to vector<8x32xf32>
    %94 = arith.addf %92, %93 : vector<8x32xf32>
    %95 = arith.truncf %94 : vector<8x32xf32> to vector<8x32xbf16>
    %c0_21 = arith.constant 0 : index
    %c0_22 = arith.constant 0 : index
    %96 = vector.load %arg7[%c0_21, %c0_22] : memref<32x128xbf16, #tpu.memory_space<vmem>>, vector<32x128xbf16>
    %cst_23 = arith.constant dense<0.000000e+00> : vector<8x128xf32>
    %97 = tpu.matmul %95, %96, %cst_23 {dimension_numbers = #tpu.dot_dimension_numbers<[1], [0], [0], [1], [0, 0, 1, 1], [], []>} : vector<8x32xbf16>, vector<32x128xbf16>, vector<8x128xf32> -> vector<8x128xf32>
    %c0_24 = arith.constant 0 : index
    %c0_25 = arith.constant 0 : index
    %98 = vector.load %arg8[%c0_24, %c0_25] : memref<1x128xf32, #tpu.memory_space<vmem>>, vector<1x128xf32>
    %99 = vector.broadcast %98 : vector<1x128xf32> to vector<8x128xf32>
    %100 = arith.addf %97, %99 : vector<8x128xf32>
    %cst_26 = arith.constant 0.000000e+00 : f32
    %101 = vector.broadcast %cst_26 : f32 to vector<8x128xf32>
    %102 = arith.maximumf %100, %101 : vector<8x128xf32>
    %103 = arith.truncf %102 : vector<8x128xf32> to vector<8x128xbf16>
    %c0_27 = arith.constant 0 : index
    %c0_28 = arith.constant 0 : index
    %104 = vector.load %arg9[%c0_27, %c0_28] : memref<128x32xbf16, #tpu.memory_space<vmem>>, vector<128x32xbf16>
    %cst_29 = arith.constant dense<0.000000e+00> : vector<8x32xf32>
    %105 = tpu.matmul %103, %104, %cst_29 {dimension_numbers = #tpu.dot_dimension_numbers<[1], [0], [0], [1], [0, 0, 1, 1], [], []>} : vector<8x128xbf16>, vector<128x32xbf16>, vector<8x32xf32> -> vector<8x32xf32>
    %c0_30 = arith.constant 0 : index
    %c0_31 = arith.constant 0 : index
    %106 = vector.load %arg10[%c0_30, %c0_31] : memref<1x32xf32, #tpu.memory_space<vmem>>, vector<1x32xf32>
    %107 = vector.broadcast %106 : vector<1x32xf32> to vector<8x32xf32>
    %108 = arith.addf %105, %107 : vector<8x32xf32>
    %109 = arith.addf %108, %94 : vector<8x32xf32>
    %c0_32 = arith.constant 0 : index
    %c0_33 = arith.constant 0 : index
    %110 = vector.load %arg11[%c0_32, %c0_33] : memref<1x32xf32, #tpu.memory_space<vmem>>, vector<1x32xf32>
    %c0_34 = arith.constant 0 : index
    %c0_35 = arith.constant 0 : index
    %111 = vector.load %arg12[%c0_34, %c0_35] : memref<1x32xf32, #tpu.memory_space<vmem>>, vector<1x32xf32>
    %cst_36 = arith.constant dense<0.000000e+00> : vector<8xf32>
    %112 = vector.multi_reduction <add>, %109, %cst_36 [1] : vector<8x32xf32> to vector<8xf32>
    %113 = vector.shape_cast %112 : vector<8xf32> to vector<8x1xf32>
    %cst_37 = arith.constant 3.200000e+01 : f32
    %114 = vector.broadcast %cst_37 : f32 to vector<8x1xf32>
    %115 = arith.divf %113, %114 : vector<8x1xf32>
    %116 = vector.broadcast %115 : vector<8x1xf32> to vector<8x32xf32>
    %117 = arith.subf %109, %116 : vector<8x32xf32>
    %118 = arith.mulf %117, %117 : vector<8x32xf32>
    %cst_38 = arith.constant dense<0.000000e+00> : vector<8xf32>
    %119 = vector.multi_reduction <add>, %118, %cst_38 [1] : vector<8x32xf32> to vector<8xf32>
    %120 = vector.shape_cast %119 : vector<8xf32> to vector<8x1xf32>
    %cst_39 = arith.constant 3.200000e+01 : f32
    %121 = vector.broadcast %cst_39 : f32 to vector<8x1xf32>
    %122 = arith.divf %120, %121 : vector<8x1xf32>
    %123 = vector.broadcast %115 : vector<8x1xf32> to vector<8x32xf32>
    %124 = arith.subf %109, %123 : vector<8x32xf32>
    %cst_40 = arith.constant 9.99999974E-6 : f32
    %125 = vector.broadcast %cst_40 : f32 to vector<8x1xf32>
    %126 = arith.addf %122, %125 : vector<8x1xf32>
    %127 = math.rsqrt %126 : vector<8x1xf32>
    %128 = vector.broadcast %127 : vector<8x1xf32> to vector<8x32xf32>
    %129 = arith.mulf %124, %128 : vector<8x32xf32>
    %130 = vector.broadcast %110 : vector<1x32xf32> to vector<8x32xf32>
    %131 = arith.mulf %129, %130 : vector<8x32xf32>
    %132 = vector.broadcast %111 : vector<1x32xf32> to vector<8x32xf32>
    %133 = arith.addf %131, %132 : vector<8x32xf32>
    %c0_41 = arith.constant 0 : index
    %c0_42 = arith.constant 0 : index
    %134 = vector.load %arg13[%c0_41, %c0_42] : memref<8x32xf32, #tpu.memory_space<vmem>>, vector<8x32xf32>
    tpu.vector_store %arg13[%c0_41, %c0_42], %133 {strides = array<i32>} : memref<8x32xf32, #tpu.memory_space<vmem>>, vector<8x32xf32>,
    return
  }
  func.func @transform_0(%arg0: i32) -> (i32, i32) {
    %c0_i32 = arith.constant 0 : i32
    %c0_i32_0 = arith.constant 0 : i32
    return %arg0, %c0_i32 : i32, i32
  }
  func.func @transform_1(%arg0: i32) -> (i32, i32) {
    %c0_i32 = arith.constant 0 : i32
    %c0_i32_0 = arith.constant 0 : i32
    %c0_i32_1 = arith.constant 0 : i32
    return %c0_i32, %c0_i32_0 : i32, i32
  }
  func.func @transform_2(%arg0: i32) -> (i32, i32) {
    %c0_i32 = arith.constant 0 : i32
    %c0_i32_0 = arith.constant 0 : i32
    %c0_i32_1 = arith.constant 0 : i32
    return %c0_i32, %c0_i32_0 : i32, i32
  }
  func.func @transform_3(%arg0: i32) -> (i32, i32) {
    %c0_i32 = arith.constant 0 : i32
    %c0_i32_0 = arith.constant 0 : i32
    %c0_i32_1 = arith.constant 0 : i32
    return %c0_i32, %c0_i32_0 : i32, i32
  }
  func.func @transform_4(%arg0: i32) -> (i32, i32) {
    %c0_i32 = arith.constant 0 : i32
    %c0_i32_0 = arith.constant 0 : i32
    %c0_i32_1 = arith.constant 0 : i32
    return %c0_i32, %c0_i32_0 : i32, i32
  }
  func.func @transform_5(%arg0: i32) -> (i32, i32) {
    %c0_i32 = arith.constant 0 : i32
    %c0_i32_0 = arith.constant 0 : i32
    %c0_i32_1 = arith.constant 0 : i32
    return %c0_i32, %c0_i32_0 : i32, i32
  }
  func.func @transform_6(%arg0: i32) -> (i32, i32) {
    %c0_i32 = arith.constant 0 : i32
    %c0_i32_0 = arith.constant 0 : i32
    %c0_i32_1 = arith.constant 0 : i32
    return %c0_i32, %c0_i32_0 : i32, i32
  }
  func.func @transform_7(%arg0: i32) -> (i32, i32) {
    %c0_i32 = arith.constant 0 : i32
    %c0_i32_0 = arith.constant 0 : i32
    %c0_i32_1 = arith.constant 0 : i32
    return %c0_i32, %c0_i32_0 : i32, i32
  }
  func.func @transform_8(%arg0: i32) -> (i32, i32) {
    %c0_i32 = arith.constant 0 : i32
    %c0_i32_0 = arith.constant 0 : i32
    %c0_i32_1 = arith.constant 0 : i32
    return %c0_i32, %c0_i32_0 : i32, i32
  }
  func.func @transform_9(%arg0: i32) -> (i32, i32) {
    %c0_i32 = arith.constant 0 : i32
    %c0_i32_0 = arith.constant 0 : i32
    %c0_i32_1 = arith.constant 0 : i32
    return %c0_i32, %c0_i32_0 : i32, i32
  }
  func.func @transform_10(%arg0: i32) -> (i32, i32) {
    %c0_i32 = arith.constant 0 : i32
    %c0_i32_0 = arith.constant 0 : i32
    %c0_i32_1 = arith.constant 0 : i32
    return %c0_i32, %c0_i32_0 : i32, i32
  }
  func.func @transform_11(%arg0: i32) -> (i32, i32) {
    %c0_i32 = arith.constant 0 : i32
    %c0_i32_0 = arith.constant 0 : i32
    %c0_i32_1 = arith.constant 0 : i32
    return %c0_i32, %c0_i32_0 : i32, i32
  }
  func.func @transform_12(%arg0: i32) -> (i32, i32) {
    %c0_i32 = arith.constant 0 : i32
    %c0_i32_0 = arith.constant 0 : i32
    return %arg0, %c0_i32 : i32, i32
  }
}

</mosaic_0001>

<llo_original>
// kernel: tpu_custom_call.1
$region0: #{tpu_custom_call.1}
  #allocation0 [shape = 'u32[]', space=smem, size = 0x4, offset = 0x4, fixed_abs, tag = 'smem constant byte address 0x4 - core index']
  #allocation1 [shape = 'u32[144,128]{1,0:T(1,128)}', space=vmem, size = 0x12000, scoped, tag = 'internal scratch']
  %s0 = inlined_call_operand.vmem [shape: f32[16,32], index: 0, kind: input, shape index: {}]
  %s1 = inlined_call_operand.vmem [shape: bf16[32,384], index: 1, kind: input, shape index: {}]
  %s2 = inlined_call_operand.vmem [shape: bf16[128,32], index: 2, kind: input, shape index: {}]
  %s3 = inlined_call_operand.vmem [shape: f32[1,32], index: 3, kind: input, shape index: {}]
  %s4 = inlined_call_operand.vmem [shape: f32[1,32], index: 4, kind: input, shape index: {}]
  %s5 = inlined_call_operand.vmem [shape: f32[1,32], index: 5, kind: input, shape index: {}]
  %s6 = inlined_call_operand.vmem [shape: bf16[32,128], index: 6, kind: input, shape index: {}]
  %s7 = inlined_call_operand.vmem [shape: f32[1,128], index: 7, kind: input, shape index: {}]
  %s8 = inlined_call_operand.vmem [shape: bf16[128,32], index: 8, kind: input, shape index: {}]
  %s9 = inlined_call_operand.vmem [shape: f32[1,32], index: 9, kind: input, shape index: {}]
  %s10 = inlined_call_operand.vmem [shape: f32[1,32], index: 10, kind: input, shape index: {}]
  %s11 = inlined_call_operand.vmem [shape: f32[1,32], index: 11, kind: input, shape index: {}]
  %s12 = inlined_call_operand.hbm [shape: f32[16,32], index: 12, kind: output, shape index: {}]
  %s13 = sld [smem:[#allocation0]]
  $region81: #{tpu_custom_call.1} parent=0
    _
  %s15 = ssub.s32 1, %s13
  %s16 = scalar_select 0, %s15, %s13
  $region1: #{tpu_custom_call.1} parent=0
    #allocation2 [shape = 'u8[8192]{0}', space=vmem, size = 0x2000, scoped, tag = 'output window, operand 0']
    #allocation3 [shape = 's32[2]{0}', space=sflag, size = 0x8, scoped, tag = 'scoped memory for tpu_custom_call.1']
    %17 = vsyncpa [#allocation3], 0
    %s18 = scalar_lea.sflag [#allocation3], 1
    %19 = vsyncpa %s18, 0
    loop: start=0, step=1, limit=4
    $region2: #{tpu_custom_call.1} parent=1 // loop_pre_header
      _
    $region3: #{tpu_custom_call.1} parent=1 // loop_header
      %s21 = sphi 0, %s25
      %p22 = scmp.ge.s32.totalorder %s21, 4
      %s31 = sphi 0, %s33
      %s34 = sphi 0, %s31
      %s35 = sphi 0, %s34
      %s51 = sphi 0, %s35
      %s55 = sphi 0, %s55
      %s57 = sphi 0, %s55
      %s58 = sphi 0, %s57
      %s72 = sphi 0, %s58
      %s76 = sphi 0, %s76
      %s78 = sphi 0, %s76
      %s79 = sphi 0, %s78
      %s93 = sphi 0, %s79
      %s97 = sphi 0, %s97
      %s99 = sphi 0, %s97
      %s100 = sphi 0, %s99
      %s114 = sphi 0, %s100
      %s118 = sphi 0, %s118
      %s120 = sphi 0, %s118
      %s121 = sphi 0, %s120
      %s135 = sphi 0, %s121
      %s139 = sphi 0, %s139
      %s141 = sphi 0, %s139
      %s142 = sphi 0, %s141
      %s156 = sphi 0, %s142
      %s160 = sphi 0, %s160
      %s162 = sphi 0, %s160
      %s163 = sphi 0, %s162
      %s177 = sphi 0, %s163
      %s181 = sphi 0, %s181
      %s183 = sphi 0, %s181
      %s184 = sphi 0, %s183
      %s198 = sphi 0, %s184
      %s202 = sphi 0, %s202
      %s204 = sphi 0, %s202
      %s205 = sphi 0, %s204
      %s219 = sphi 0, %s205
      %s223 = sphi 0, %s223
      %s225 = sphi 0, %s223
      %s226 = sphi 0, %s225
      %s240 = sphi 0, %s226
      %s244 = sphi 0, %s244
      %s246 = sphi 0, %s244
      %s247 = sphi 0, %s246
      %s261 = sphi 0, %s247
      %s265 = sphi 0, %s265
      %s267 = sphi 0, %s265
      %s268 = sphi 0, %s267
      %s282 = sphi 0, %s268
      %s288 = sphi 0, %s290
      %s291 = sphi 0, %s288
      %s292 = sphi 0, %s291
      %s308 = sphi 0, %s292
    $region4: #{tpu_custom_call.1} parent=1 // loop_header_branch
      %24 = sbr.rel (%p22) target = $region8
    $region5: #{tpu_custom_call.1} parent=1 // loop_body
      %s26 = ssub.s32 %s21, 1
      %s27 = ssub.s32 %s21, 2
      %s28 = sadd.s32 %s21, 1
      %s29 = ssub.s32 %s21, %s28
      %p30 = scmp.eq.s32.totalorder %s29, 0
      %s32 = sadd.s32 %s31, 1
      %s33 = scalar_select %p30, %s31, %s32
      %p36 = pneg %p30
      %p37 = scmp.eq.s32.totalorder %s21, 1
      %p38 = por %p36, %p37
      %p39 = scmp.ne.s32.totalorder %s31, %s34
      %p40 = scmp.eq.s32.totalorder %s21, 0
      %p41 = por %p39, %p40
      %p42 = scmp.ne.s32.totalorder %s31, %s34
      %p43 = scmp.eq.s32.totalorder %s26, 1
      %p44 = por %p42, %p43
      %p45 = scmp.ne.s32.totalorder %s34, %s35
      %p46 = scmp.eq.s32.totalorder %s26, 0
      %p47 = por %p45, %p46
      %p48 = scmp.ne.s32.totalorder %s34, %s35
      %p49 = scmp.eq.s32.totalorder %s27, 1
      %p50 = por %p48, %p49
      %p52 = scmp.ne.s32.totalorder %s35, %s51
      %p53 = scmp.eq.s32.totalorder %s27, 0
      %p54 = por %p52, %p53
      %s56 = sadd.s32 %s55, 1
      %p59 = scmp.eq.s32.totalorder %s21, 1
      %p60 = scmp.ne.s32.totalorder %s55, %s57
      %p61 = scmp.eq.s32.totalorder %s21, 0
      %p62 = por %p60, %p61
      %p63 = scmp.ne.s32.totalorder %s55, %s57
      %p64 = scmp.eq.s32.totalorder %s26, 1
      %p65 = por %p63, %p64
      %p66 = scmp.ne.s32.totalorder %s57, %s58
      %p67 = scmp.eq.s32.totalorder %s26, 0
      %p68 = por %p66, %p67
      %p69 = scmp.ne.s32.totalorder %s57, %s58
      %p70 = scmp.eq.s32.totalorder %s27, 1
      %p71 = por %p69, %p70
      %p73 = scmp.ne.s32.totalorder %s58, %s72
      %p74 = scmp.eq.s32.totalorder %s27, 0
      %p75 = por %p73, %p74
      %s77 = sadd.s32 %s76, 1
      %p80 = scmp.eq.s32.totalorder %s21, 1
      %p81 = scmp.ne.s32.totalorder %s76, %s78
      %p82 = scmp.eq.s32.totalorder %s21, 0
      %p83 = por %p81, %p82
      %p84 = scmp.ne.s32.totalorder %s76, %s78
      %p85 = scmp.eq.s32.totalorder %s26, 1
      %p86 = por %p84, %p85
      %p87 = scmp.ne.s32.totalorder %s78, %s79
      %p88 = scmp.eq.s32.totalorder %s26, 0
      %p89 = por %p87, %p88
      %p90 = scmp.ne.s32.totalorder %s78, %s79
      %p91 = scmp.eq.s32.totalorder %s27, 1
      %p92 = por %p90, %p91
      %p94 = scmp.ne.s32.totalorder %s79, %s93
      %p95 = scmp.eq.s32.totalorder %s27, 0
      %p96 = por %p94, %p95
      %s98 = sadd.s32 %s97, 1
      %p101 = scmp.eq.s32.totalorder %s21, 1
      %p102 = scmp.ne.s32.totalorder %s97, %s99
      %p103 = scmp.eq.s32.totalorder %s21, 0
      %p104 = por %p102, %p103
      %p105 = scmp.ne.s32.totalorder %s97, %s99
      %p106 = scmp.eq.s32.totalorder %s26, 1
      %p107 = por %p105, %p106
      %p108 = scmp.ne.s32.totalorder %s99, %s100
      %p109 = scmp.eq.s32.totalorder %s26, 0
      %p110 = por %p108, %p109
      %p111 = scmp.ne.s32.totalorder %s99, %s100
      %p112 = scmp.eq.s32.totalorder %s27, 1
      %p113 = por %p111, %p112
      %p115 = scmp.ne.s32.totalorder %s100, %s114
      %p116 = scmp.eq.s32.totalorder %s27, 0
      %p117 = por %p115, %p116
      %s119 = sadd.s32 %s118, 1
      %p122 = scmp.eq.s32.totalorder %s21, 1
      %p123 = scmp.ne.s32.totalorder %s118, %s120
      %p124 = scmp.eq.s32.totalorder %s21, 0
      %p125 = por %p123, %p124
      %p126 = scmp.ne.s32.totalorder %s118, %s120
      %p127 = scmp.eq.s32.totalorder %s26, 1
      %p128 = por %p126, %p127
      %p129 = scmp.ne.s32.totalorder %s120, %s121
      %p130 = scmp.eq.s32.totalorder %s26, 0
      %p131 = por %p129, %p130
      %p132 = scmp.ne.s32.totalorder %s120, %s121
      %p133 = scmp.eq.s32.totalorder %s27, 1
      %p134 = por %p132, %p133
      %p136 = scmp.ne.s32.totalorder %s121, %s135
      %p137 = scmp.eq.s32.totalorder %s27, 0
      %p138 = por %p136, %p137
      %s140 = sadd.s32 %s139, 1
      %p143 = scmp.eq.s32.totalorder %s21, 1
      %p144 = scmp.ne.s32.totalorder %s139, %s141
      %p145 = scmp.eq.s32.totalorder %s21, 0
      %p146 = por %p144, %p145
      %p147 = scmp.ne.s32.totalorder %s139, %s141
      %p148 = scmp.eq.s32.totalorder %s26, 1
      %p149 = por %p147, %p148
      %p150 = scmp.ne.s32.totalorder %s141, %s142
      %p151 = scmp.eq.s32.totalorder %s26, 0
      %p152 = por %p150, %p151
      %p153 = scmp.ne.s32.totalorder %s141, %s142
      %p154 = scmp.eq.s32.totalorder %s27, 1
      %p155 = por %p153, %p154
      %p157 = scmp.ne.s32.totalorder %s142, %s156
      %p158 = scmp.eq.s32.totalorder %s27, 0
      %p159 = por %p157, %p158
      %s161 = sadd.s32 %s160, 1
      %p164 = scmp.eq.s32.totalorder %s21, 1
      %p165 = scmp.ne.s32.totalorder %s160, %s162
      %p166 = scmp.eq.s32.totalorder %s21, 0
      %p167 = por %p165, %p166
      %p168 = scmp.ne.s32.totalorder %s160, %s162
      %p169 = scmp.eq.s32.totalorder %s26, 1
      %p170 = por %p168, %p169
      %p171 = scmp.ne.s32.totalorder %s162, %s163
      %p172 = scmp.eq.s32.totalorder %s26, 0
      %p173 = por %p171, %p172
      %p174 = scmp.ne.s32.totalorder %s162, %s163
      %p175 = scmp.eq.s32.totalorder %s27, 1
      %p176 = por %p174, %p175
      %p178 = scmp.ne.s32.totalorder %s163, %s177
      %p179 = scmp.eq.s32.totalorder %s27, 0
      %p180 = por %p178, %p179
      %s182 = sadd.s32 %s181, 1
      %p185 = scmp.eq.s32.totalorder %s21, 1
      %p186 = scmp.ne.s32.totalorder %s181, %s183
      %p187 = scmp.eq.s32.totalorder %s21, 0
      %p188 = por %p186, %p187
      %p189 = scmp.ne.s32.totalorder %s181, %s183
      %p190 = scmp.eq.s32.totalorder %s26, 1
      %p191 = por %p189, %p190
      %p192 = scmp.ne.s32.totalorder %s183, %s184
      %p193 = scmp.eq.s32.totalorder %s26, 0
      %p194 = por %p192, %p193
      %p195 = scmp.ne.s32.totalorder %s183, %s184
      %p196 = scmp.eq.s32.totalorder %s27, 1
      %p197 = por %p195, %p196
      %p199 = scmp.ne.s32.totalorder %s184, %s198
      %p200 = scmp.eq.s32.totalorder %s27, 0
      %p201 = por %p199, %p200
      %s203 = sadd.s32 %s202, 1
      %p206 = scmp.eq.s32.totalorder %s21, 1
      %p207 = scmp.ne.s32.totalorder %s202, %s204
      %p208 = scmp.eq.s32.totalorder %s21, 0
      %p209 = por %p207, %p208
      %p210 = scmp.ne.s32.totalorder %s202, %s204
      %p211 = scmp.eq.s32.totalorder %s26, 1
      %p212 = por %p210, %p211
      %p213 = scmp.ne.s32.totalorder %s204, %s205
      %p214 = scmp.eq.s32.totalorder %s26, 0
      %p215 = por %p213, %p214
      %p216 = scmp.ne.s32.totalorder %s204, %s205
      %p217 = scmp.eq.s32.totalorder %s27, 1
      %p218 = por %p216, %p217
      %p220 = scmp.ne.s32.totalorder %s205, %s219
      %p221 = scmp.eq.s32.totalorder %s27, 0
      %p222 = por %p220, %p221
      %s224 = sadd.s32 %s223, 1
      %p227 = scmp.eq.s32.totalorder %s21, 1
      %p228 = scmp.ne.s32.totalorder %s223, %s225
      %p229 = scmp.eq.s32.totalorder %s21, 0
      %p230 = por %p228, %p229
      %p231 = scmp.ne.s32.totalorder %s223, %s225
      %p232 = scmp.eq.s32.totalorder %s26, 1
      %p233 = por %p231, %p232
      %p234 = scmp.ne.s32.totalorder %s225, %s226
      %p235 = scmp.eq.s32.totalorder %s26, 0
      %p236 = por %p234, %p235
      %p237 = scmp.ne.s32.totalorder %s225, %s226
      %p238 = scmp.eq.s32.totalorder %s27, 1
      %p239 = por %p237, %p238
      %p241 = scmp.ne.s32.totalorder %s226, %s240
      %p242 = scmp.eq.s32.totalorder %s27, 0
      %p243 = por %p241, %p242
      %s245 = sadd.s32 %s244, 1
      %p248 = scmp.eq.s32.totalorder %s21, 1
      %p249 = scmp.ne.s32.totalorder %s244, %s246
      %p250 = scmp.eq.s32.totalorder %s21, 0
      %p251 = por %p249, %p250
      %p252 = scmp.ne.s32.totalorder %s244, %s246
      %p253 = scmp.eq.s32.totalorder %s26, 1
      %p254 = por %p252, %p253
      %p255 = scmp.ne.s32.totalorder %s246, %s247
      %p256 = scmp.eq.s32.totalorder %s26, 0
      %p257 = por %p255, %p256
      %p258 = scmp.ne.s32.totalorder %s246, %s247
      %p259 = scmp.eq.s32.totalorder %s27, 1
      %p260 = por %p258, %p259
      %p262 = scmp.ne.s32.totalorder %s247, %s261
      %p263 = scmp.eq.s32.totalorder %s27, 0
      %p264 = por %p262, %p263
      %s266 = sadd.s32 %s265, 1
      %p269 = scmp.eq.s32.totalorder %s21, 1
      %p270 = scmp.ne.s32.totalorder %s265, %s267
      %p271 = scmp.eq.s32.totalorder %s21, 0
      %p272 = por %p270, %p271
      %p273 = scmp.ne.s32.totalorder %s265, %s267
      %p274 = scmp.eq.s32.totalorder %s26, 1
      %p275 = por %p273, %p274
      %p276 = scmp.ne.s32.totalorder %s267, %s268
      %p277 = scmp.eq.s32.totalorder %s26, 0
      %p278 = por %p276, %p277
      %p279 = scmp.ne.s32.totalorder %s267, %s268
      %p280 = scmp.eq.s32.totalorder %s27, 1
      %p281 = por %p279, %p280
      %p283 = scmp.ne.s32.totalorder %s268, %s282
      %p284 = scmp.eq.s32.totalorder %s27, 0
      %p285 = por %p283, %p284
      %s286 = ssub.s32 %s21, %s28
      %p287 = scmp.eq.s32.totalorder %s286, 0
      %s289 = sadd.s32 %s288, 1
      %s290 = scalar_select %p287, %s288, %s289
      %p293 = pneg %p287
      %p294 = scmp.eq.s32.totalorder %s21, 1
      %p295 = por %p293, %p294
      %p296 = scmp.ne.s32.totalorder %s288, %s291
      %p297 = scmp.eq.s32.totalorder %s21, 0
      %p298 = por %p296, %p297
      %p299 = scmp.ne.s32.totalorder %s288, %s291
      %p300 = scmp.eq.s32.totalorder %s26, 1
      %p301 = por %p299, %p300
      %p302 = scmp.ne.s32.totalorder %s291, %s292
      %p303 = scmp.eq.s32.totalorder %s26, 0
      %p304 = por %p302, %p303
      %p305 = scmp.ne.s32.totalorder %s291, %s292
      %p306 = scmp.eq.s32.totalorder %s27, 1
      %p307 = por %p305, %p306
      %p309 = scmp.ne.s32.totalorder %s292, %s308
      %p310 = scmp.eq.s32.totalorder %s27, 0
      %p311 = por %p309, %p310
      %p312 = scmp.le.s32.totalorder 1, %s21
      %p313 = scmp.lt.s32.totalorder %s21, 3
      %p314 = pnand %p312, %p313
      %p315 = pneg %p314
      // Predicated region
      $region9: #{tpu_custom_call.1} parent=5 // pred_check
        _
      $region10: #{tpu_custom_call.1} parent=5 // pred_check_branch
        %317 = sbr.rel (%p314) target = $region12
      $region11: #{tpu_custom_call.1} parent=5 // pred_region
        %s318 = ssub.s32 %s21, 1
        // Predicated region
        $region13: #{tpu_custom_call.1} parent=11 // pred_check
          %p319 = pneg %p68
        $region14: #{tpu_custom_call.1} parent=11 // pred_check_branch
          %321 = sbr.rel (%p319) target = $region16
        $region15: #{tpu_custom_call.1} parent=11 // pred_region
          _
        $region16: #{tpu_custom_call.1} parent=11 // pred_fallthru
          _
        // Predicated region
        $region17: #{tpu_custom_call.1} parent=11 // pred_check
          %p322 = pneg %p89
        $region18: #{tpu_custom_call.1} parent=11 // pred_check_branch
          %324 = sbr.rel (%p322) target = $region20
        $region19: #{tpu_custom_call.1} parent=11 // pred_region
          _
        $region20: #{tpu_custom_call.1} parent=11 // pred_fallthru
          _
        // Predicated region
        $region21: #{tpu_custom_call.1} parent=11 // pred_check
          %p325 = pneg %p110
        $region22: #{tpu_custom_call.1} parent=11 // pred_check_branch
          %327 = sbr.rel (%p325) target = $region24
        $region23: #{tpu_custom_call.1} parent=11 // pred_region
          _
        $region24: #{tpu_custom_call.1} parent=11 // pred_fallthru
          _
        // Predicated region
        $region25: #{tpu_custom_call.1} parent=11 // pred_check
          %p328 = pneg %p131
        $region26: #{tpu_custom_call.1} parent=11 // pred_check_branch
          %330 = sbr.rel (%p328) target = $region28
        $region27: #{tpu_custom_call.1} parent=11 // pred_region
          _
        $region28: #{tpu_custom_call.1} parent=11 // pred_fallthru
          _
        // Predicated region
        $region29: #{tpu_custom_call.1} parent=11 // pred_check
          %p331 = pneg %p152
        $region30: #{tpu_custom_call.1} parent=11 // pred_check_branch
          %333 = sbr.rel (%p331) target = $region32
        $region31: #{tpu_custom_call.1} parent=11 // pred_region
          _
        $region32: #{tpu_custom_call.1} parent=11 // pred_fallthru
          _
        // Predicated region
        $region33: #{tpu_custom_call.1} parent=11 // pred_check
          %p334 = pneg %p173
        $region34: #{tpu_custom_call.1} parent=11 // pred_check_branch
          %336 = sbr.rel (%p334) target = $region36
        $region35: #{tpu_custom_call.1} parent=11 // pred_region
          _
        $region36: #{tpu_custom_call.1} parent=11 // pred_fallthru
          _
        // Predicated region
        $region37: #{tpu_custom_call.1} parent=11 // pred_check
          %p337 = pneg %p194
        $region38: #{tpu_custom_call.1} parent=11 // pred_check_branch
          %339 = sbr.rel (%p337) target = $region40
        $region39: #{tpu_custom_call.1} parent=11 // pred_region
          _
        $region40: #{tpu_custom_call.1} parent=11 // pred_fallthru
          _
        // Predicated region
        $region41: #{tpu_custom_call.1} parent=11 // pred_check
          %p340 = pneg %p215
        $region42: #{tpu_custom_call.1} parent=11 // pred_check_branch
          %342 = sbr.rel (%p340) target = $region44
        $region43: #{tpu_custom_call.1} parent=11 // pred_region
          _
        $region44: #{tpu_custom_call.1} parent=11 // pred_fallthru
          _
        // Predicated region
        $region45: #{tpu_custom_call.1} parent=11 // pred_check
          %p343 = pneg %p236
        $region46: #{tpu_custom_call.1} parent=11 // pred_check_branch
          %345 = sbr.rel (%p343) target = $region48
        $region47: #{tpu_custom_call.1} parent=11 // pred_region
          _
        $region48: #{tpu_custom_call.1} parent=11 // pred_fallthru
          _
        // Predicated region
        $region49: #{tpu_custom_call.1} parent=11 // pred_check
          %p346 = pneg %p257
        $region50: #{tpu_custom_call.1} parent=11 // pred_check_branch
          %348 = sbr.rel (%p346) target = $region52
        $region51: #{tpu_custom_call.1} parent=11 // pred_region
          _
        $region52: #{tpu_custom_call.1} parent=11 // pred_fallthru
          _
        // Predicated region
        $region53: #{tpu_custom_call.1} parent=11 // pred_check
          %p349 = pneg %p278
        $region54: #{tpu_custom_call.1} parent=11 // pred_check_branch
          %351 = sbr.rel (%p349) target = $region56
        $region55: #{tpu_custom_call.1} parent=11 // pred_region
          _
        $region56: #{tpu_custom_call.1} parent=11 // pred_fallthru
          _
      $region12: #{tpu_custom_call.1} parent=5 // pred_fallthru
        _
      %p352 = scmp.lt.s32.totalorder %s21, 2
      // Predicated region
      $region57: #{tpu_custom_call.1} parent=5 // pred_check
        %p353 = pneg %p352
      $region58: #{tpu_custom_call.1} parent=5 // pred_check_branch
        %355 = sbr.rel (%p353) target = $region60
      $region59: #{tpu_custom_call.1} parent=5 // pred_region
        // Predicated region
        $region61: #{tpu_custom_call.1} parent=59 // pred_check
          %p356 = pneg %p41
        $region62: #{tpu_custom_call.1} parent=59 // pred_check_branch
          %358 = sbr.rel (%p356) target = $region64
        $region63: #{tpu_custom_call.1} parent=59 // pred_region
          %p359 = scmp.lt.s32.totalorder %s21, 1
          %s360 = scalar_select %p359, %s21, 1
          %s361 = smul.addr %s360, 8
          %s362 = scalar_lea.vmem %s0, %s361
        $region64: #{tpu_custom_call.1} parent=59 // pred_fallthru
          _
      $region60: #{tpu_custom_call.1} parent=5 // pred_fallthru
        _
      %p363 = scmp.le.s32.totalorder 1, %s21
      %p364 = scmp.lt.s32.totalorder %s21, 3
      %p365 = pnand %p363, %p364
      %p366 = pneg %p365
      // Predicated region
      $region65: #{tpu_custom_call.1} parent=5 // pred_check
        _
      $region66: #{tpu_custom_call.1} parent=5 // pred_check_branch
        %368 = sbr.rel (%p365) target = $region68
      $region67: #{tpu_custom_call.1} parent=5 // pred_region
        %s369 = ssub.s32 %s21, 1
        %p370 = scmp.lt.s32.totalorder %s26, 1
        %s371 = scalar_select %p370, %s26, 1
        %s372 = smul.addr %s371, 8
        %s373 = scalar_lea.vmem %s0, %s372
        %p374 = pneg %p47
        %p375 = pneg %p44
        %p376 = pneg %p68
        %p377 = pneg %p65
        %p378 = pneg %p89
        %p379 = pneg %p86
        %p380 = pneg %p110
        %p381 = pneg %p107
        %p382 = pneg %p131
        %p383 = pneg %p128
        %p384 = pneg %p152
        %p385 = pneg %p149
        %p386 = pneg %p173
        %p387 = pneg %p170
        %p388 = pneg %p194
        %p389 = pneg %p191
        %p390 = pneg %p215
        %p391 = pneg %p212
        %p392 = pneg %p236
        %p393 = pneg %p233
        %p394 = pneg %p257
        %p395 = pneg %p254
        %p396 = pneg %p278
        %p397 = pneg %p275
        %p398 = pneg %p304
        %p399 = pneg %p301
        %s400 = sand.u32 %s291, 1
        %s401 = scalar_lea.sflag [#allocation3], %s400
        %s402 = sand.u32 %s291, 1
        %s403 = smul.addr %s402, 8
        %s404 = scalar_lea.vmem [#allocation2], %s403
        %p405 = scmp.lt.s32.totalorder %s26, 1
        %s406 = scalar_select %p405, %s26, 1
        %s407 = smul.addr %s406, 8
        %s408 = scalar_lea.vmem %s0, %s407
        %v410 = vld [vmem:[%s408] sm:$0xff]
        %v411 = vpack.c.bf16 %v410, %v410
        %v412 = vld [vmem:[%s1] sm:$0xff]
        %v413 = vld [vmem:[%s1 + $0x8] sm:$0xf]
        %v414 = vld [vmem:[%s1 + $0xc] sm:$0xff]
        %v415 = vld [vmem:[%s1 + $0x14] sm:$0xf]
        %v416 = vld [vmem:[%s1 + $0x18] sm:$0xff]
        %v417 = vld [vmem:[%s1 + $0x20] sm:$0xf]
        %v418 = vld [vmem:[%s1 + $0x24] sm:$0xff]
        %v419 = vld [vmem:[%s1 + $0x2c] sm:$0xf]
        %v428 = vunpack.c.l.b16 %v412
        %v429 = vunpack.c.h.b16 %v412
        %v430 = vunpack.c.l.b16 %v413
        %v431 = vunpack.c.l.b16 %v414
        %v432 = vunpack.c.h.b16 %v414
        %v433 = vunpack.c.l.b16 %v415
        %v434 = vunpack.c.l.b16 %v416
        %v435 = vunpack.c.h.b16 %v416
        %v436 = vunpack.c.l.b16 %v417
        %v437 = vunpack.c.l.b16 %v418
        %v438 = vunpack.c.h.b16 %v418
        %v439 = vunpack.c.l.b16 %v419
        %v440 = vpack.c.b16 %v431, %v428
        %v441 = vpack.c.b16 %v432, %v429
        %v442 = vpack.c.b16 %v433, %v430
        %v443 = vpack.c.b16 %v437, %v434
        %v444 = vpack.c.b16 %v438, %v435
        %v445 = vpack.c.b16 %v439, %v436
        %vm452 = vcmask 261120
        %v454 = vsel %vm452, %v411, 0
        %456 = vmatprep.subr.bf16.mxu0 %v441
        %457 = vmatpush1.bf16.msra.mxu0 %v440
        %458 = vmatprep.subr.bf16.mxu0 %v444
        %459 = vmatpush1.bf16.msra.mxu0 %v443
        %460 = vmatprep.subr.bf16.mxu0 0
        %461 = vmatpush1.bf16.msra.mxu0 0
        %462 = vmatprep.subr.bf16.mxu0 0
        %463 = vmatpush1.bf16.msra.mxu0 0
        %464 = vmatprep.subr.bf16.mxu0 0
        %465 = vmatpush1.bf16.msra.mxu0 0
        %466 = vmatprep.subr.bf16.mxu0 0
        %467 = vmatpush1.bf16.msra.mxu0 0
        %468 = vmatprep.subr.bf16.mxu0 0
        %469 = vmatpush1.bf16.msra.mxu0 0
        %470 = vmatprep.subr.bf16.mxu0 0
        %471 = vmatpush1.bf16.msra.mxu0 0
        %472 = vmatprep.subr.bf16.mxu0 0
        %473 = vmatpush1.bf16.msra.mxu0 0
        %474 = vmatprep.subr.bf16.mxu0 0
        %475 = vmatpush1.bf16.msra.mxu0 0
        %476 = vmatprep.subr.bf16.mxu0 0
        %477 = vmatpush1.bf16.msra.mxu0 0
        %478 = vmatprep.subr.bf16.mxu0 0
        %479 = vmatpush1.bf16.msra.mxu0 0
        %480 = vmatprep.subr.bf16.mxu0 0
        %481 = vmatpush1.bf16.msra.mxu0 0
        %482 = vmatprep.subr.bf16.mxu0 0
        %483 = vmatpush1.bf16.msra.mxu0 0
        %484 = vmatprep.subr.bf16.mxu0 0
        %485 = vmatpush1.bf16.msra.mxu0 0
        %486 = vmatprep.subr.bf16.mxu0 0
        %487 = vmatpush1.bf16.msra.mxu0 0
        %488 = vmatprep.mubr.bf16.mxu0 0
        %489 = vmatmul.mubr.bf16.gmra.mrb[0].mxu0 %v454
        %v490 = vpop.f32.mrb[0].mxu0
        %v491 = vadd.f32 0.0, %v490
        %v492 = vpop.f32.mrb[0].mxu0
        %v493 = vadd.f32 0.0, %v492
        %v494 = vpop.f32.mrb[0].mxu0
        %v495 = vpop.f32.mrb[0].mxu0
        %496 = vdwg.mxu0
        %497 = vmatprep.subr.bf16.mxu0 0
        %498 = vmatpush1.bf16.msra.mxu0 %v442
        %499 = vmatprep.subr.bf16.mxu0 0
        %500 = vmatpush1.bf16.msra.mxu0 %v445
        %501 = vmatprep.subr.bf16.mxu0 0
        %502 = vmatpush1.bf16.msra.mxu0 0
        %503 = vmatprep.subr.bf16.mxu0 0
        %504 = vmatpush1.bf16.msra.mxu0 0
        %505 = vmatprep.subr.bf16.mxu0 0
        %506 = vmatpush1.bf16.msra.mxu0 0
        %507 = vmatprep.subr.bf16.mxu0 0
        %508 = vmatpush1.bf16.msra.mxu0 0
        %509 = vmatprep.subr.bf16.mxu0 0
        %510 = vmatpush1.bf16.msra.mxu0 0
        %511 = vmatprep.subr.bf16.mxu0 0
        %512 = vmatpush1.bf16.msra.mxu0 0
        %513 = vmatprep.subr.bf16.mxu0 0
        %514 = vmatpush1.bf16.msra.mxu0 0
        %515 = vmatprep.subr.bf16.mxu0 0
        %516 = vmatpush1.bf16.msra.mxu0 0
        %517 = vmatprep.subr.bf16.mxu0 0
        %518 = vmatpush1.bf16.msra.mxu0 0
        %519 = vmatprep.subr.bf16.mxu0 0
        %520 = vmatpush1.bf16.msra.mxu0 0
        %521 = vmatprep.subr.bf16.mxu0 0
        %522 = vmatpush1.bf16.msra.mxu0 0
        %523 = vmatprep.subr.bf16.mxu0 0
        %524 = vmatpush1.bf16.msra.mxu0 0
        %525 = vmatprep.subr.bf16.mxu0 0
        %526 = vmatpush1.bf16.msra.mxu0 0
        %527 = vmatprep.subr.bf16.mxu0 0
        %528 = vmatpush1.bf16.msra.mxu0 0
        %529 = vmatprep.mubr.bf16.mxu0 0
        %530 = vmatmul.mubr.bf16.gmra.mrb[0].mxu0 %v454
        %v531 = vpop.f32.mrb[0].mxu0
        %v532 = vadd.f32 0.0, %v531
        %v533 = vpop.f32.mrb[0].mxu0
        %v534 = vpop.f32.mrb[0].mxu0
        %v535 = vpop.f32.mrb[0].mxu0
        %536 = vdwg.mxu0
        %v537 = vpack.c.bf16 %v491, %v491
        %v538 = vpack.c.bf16 %v493, %v493
        %v539 = vpack.c.bf16 %v532, %v532
        %541 = vrot.lane.b32.xlu0 %v537, 96
        %v542 = vpop.permute.xlu0 %541
        %543 = vrot.lane.b32.xlu0 %v537, 64
        %v544 = vpop.permute.xlu0 %543
        %545 = vrot.lane.b32.xlu0 %v537, 32
        %v546 = vpop.permute.xlu0 %545
        %548 = vrot.lane.b32.xlu0 %v538, 96
        %v549 = vpop.permute.xlu0 %548
        %550 = vrot.lane.b32.xlu0 %v538, 64
        %v551 = vpop.permute.xlu0 %550
        %552 = vrot.lane.b32.xlu0 %v538, 32
        %v553 = vpop.permute.xlu0 %552
        %555 = vrot.lane.b32.xlu0 %v539, 96
        %v556 = vpop.permute.xlu0 %555
        %557 = vrot.lane.b32.xlu0 %v539, 64
        %v558 = vpop.permute.xlu0 %557
        %559 = vrot.lane.b32.xlu0 %v539, 32
        %v560 = vpop.permute.xlu0 %559
        %v562 = vsel %vm452, %v537, 0
        %v565 = vsel %vm452, %v538, 0
        %567 = vmatprep.subr.bf16.mxu0 0
        %568 = vmatpush1.bf16.xpose.msra.mxu0 %v565
        %569 = vmatprep.subr.bf16.mxu0 0
        %570 = vmatpush1.bf16.xpose.msra.mxu0 0
        %571 = vmatprep.subr.bf16.mxu0 0
        %572 = vmatpush1.bf16.xpose.msra.mxu0 0
        %573 = vmatprep.subr.bf16.mxu0 0
        %574 = vmatpush1.bf16.xpose.msra.mxu0 0
        %575 = vmatprep.subr.bf16.mxu0 0
        %576 = vmatpush1.bf16.xpose.msra.mxu0 0
        %577 = vmatprep.subr.bf16.mxu0 0
        %578 = vmatpush1.bf16.xpose.msra.mxu0 0
        %579 = vmatprep.subr.bf16.mxu0 0
        %580 = vmatpush1.bf16.xpose.msra.mxu0 0
        %581 = vmatprep.subr.bf16.mxu0 0
        %582 = vmatpush1.bf16.xpose.msra.mxu0 0
        %583 = vmatprep.subr.bf16.mxu0 0
        %584 = vmatpush1.bf16.xpose.msra.mxu0 0
        %585 = vmatprep.subr.bf16.mxu0 0
        %586 = vmatpush1.bf16.xpose.msra.mxu0 0
        %587 = vmatprep.subr.bf16.mxu0 0
        %588 = vmatpush1.bf16.xpose.msra.mxu0 0
        %589 = vmatprep.subr.bf16.mxu0 0
        %590 = vmatpush1.bf16.xpose.msra.mxu0 0
        %591 = vmatprep.subr.bf16.mxu0 0
        %592 = vmatpush1.bf16.xpose.msra.mxu0 0
        %593 = vmatprep.subr.bf16.mxu0 0
        %594 = vmatpush1.bf16.xpose.msra.mxu0 0
        %595 = vmatprep.subr.bf16.mxu0 0
        %596 = vmatpush1.bf16.xpose.msra.mxu0 0
        %597 = vmatprep.subr.bf16.mxu0 0
        %598 = vmatpush1.bf16.xpose.msra.mxu0 0
        %599 = vmatprep.mubr.bf16.mxu0 0
        %600 = vmatmul.mubr.bf16.gmra.mrb[0].mxu0 %v562
        %v601 = vpop.f32.mrb[0].mxu0
        %v602 = vadd.f32 0.0, %v601
        %v603 = vpop.f32.mrb[0].mxu0
        %v604 = vpop.f32.mrb[0].mxu0
        %v605 = vpop.f32.mrb[0].mxu0
        %606 = vdwg.mxu0
        %v608 = vsel %vm452, %v542, 0
        %v611 = vsel %vm452, %v549, 0
        %613 = vmatprep.subr.bf16.mxu0 0
        %614 = vmatpush1.bf16.xpose.msra.mxu0 %v611
        %615 = vmatprep.subr.bf16.mxu0 0
        %616 = vmatpush1.bf16.xpose.msra.mxu0 0
        %617 = vmatprep.subr.bf16.mxu0 0
        %618 = vmatpush1.bf16.xpose.msra.mxu0 0
        %619 = vmatprep.subr.bf16.mxu0 0
        %620 = vmatpush1.bf16.xpose.msra.mxu0 0
        %621 = vmatprep.subr.bf16.mxu0 0
        %622 = vmatpush1.bf16.xpose.msra.mxu0 0
        %623 = vmatprep.subr.bf16.mxu0 0
        %624 = vmatpush1.bf16.xpose.msra.mxu0 0
        %625 = vmatprep.subr.bf16.mxu0 0
        %626 = vmatpush1.bf16.xpose.msra.mxu0 0
        %627 = vmatprep.subr.bf16.mxu0 0
        %628 = vmatpush1.bf16.xpose.msra.mxu0 0
        %629 = vmatprep.subr.bf16.mxu0 0
        %630 = vmatpush1.bf16.xpose.msra.mxu0 0
        %631 = vmatprep.subr.bf16.mxu0 0
        %632 = vmatpush1.bf16.xpose.msra.mxu0 0
        %633 = vmatprep.subr.bf16.mxu0 0
        %634 = vmatpush1.bf16.xpose.msra.mxu0 0
        %635 = vmatprep.subr.bf16.mxu0 0
        %636 = vmatpush1.bf16.xpose.msra.mxu0 0
        %637 = vmatprep.subr.bf16.mxu0 0
        %638 = vmatpush1.bf16.xpose.msra.mxu0 0
        %639 = vmatprep.subr.bf16.mxu0 0
        %640 = vmatpush1.bf16.xpose.msra.mxu0 0
        %641 = vmatprep.subr.bf16.mxu0 0
        %642 = vmatpush1.bf16.xpose.msra.mxu0 0
        %643 = vmatprep.subr.bf16.mxu0 0
        %644 = vmatpush1.bf16.xpose.msra.mxu0 0
        %645 = vmatprep.mubr.bf16.mxu0 0
        %646 = vmatmul.mubr.bf16.gmra.mrb[0].mxu0 %v608
        %v647 = vpop.f32.mrb[0].mxu0
        %v648 = vadd.f32 0.0, %v647
        %v649 = vpop.f32.mrb[0].mxu0
        %v650 = vpop.f32.mrb[0].mxu0
        %v651 = vpop.f32.mrb[0].mxu0
        %652 = vdwg.mxu0
        %v654 = vsel %vm452, %v544, 0
        %v657 = vsel %vm452, %v551, 0
        %659 = vmatprep.subr.bf16.mxu0 0
        %660 = vmatpush1.bf16.xpose.msra.mxu0 %v657
        %661 = vmatprep.subr.bf16.mxu0 0
        %662 = vmatpush1.bf16.xpose.msra.mxu0 0
        %663 = vmatprep.subr.bf16.mxu0 0
        %664 = vmatpush1.bf16.xpose.msra.mxu0 0
        %665 = vmatprep.subr.bf16.mxu0 0
        %666 = vmatpush1.bf16.xpose.msra.mxu0 0
        %667 = vmatprep.subr.bf16.mxu0 0
        %668 = vmatpush1.bf16.xpose.msra.mxu0 0
        %669 = vmatprep.subr.bf16.mxu0 0
        %670 = vmatpush1.bf16.xpose.msra.mxu0 0
        %671 = vmatprep.subr.bf16.mxu0 0
        %672 = vmatpush1.bf16.xpose.msra.mxu0 0
        %673 = vmatprep.subr.bf16.mxu0 0
        %674 = vmatpush1.bf16.xpose.msra.mxu0 0
        %675 = vmatprep.subr.bf16.mxu0 0
        %676 = vmatpush1.bf16.xpose.msra.mxu0 0
        %677 = vmatprep.subr.bf16.mxu0 0
        %678 = vmatpush1.bf16.xpose.msra.mxu0 0
        %679 = vmatprep.subr.bf16.mxu0 0
        %680 = vmatpush1.bf16.xpose.msra.mxu0 0
        %681 = vmatprep.subr.bf16.mxu0 0
        %682 = vmatpush1.bf16.xpose.msra.mxu0 0
        %683 = vmatprep.subr.bf16.mxu0 0
        %684 = vmatpush1.bf16.xpose.msra.mxu0 0
        %685 = vmatprep.subr.bf16.mxu0 0
        %686 = vmatpush1.bf16.xpose.msra.mxu0 0
        %687 = vmatprep.subr.bf16.mxu0 0
        %688 = vmatpush1.bf16.xpose.msra.mxu0 0
        %689 = vmatprep.subr.bf16.mxu0 0
        %690 = vmatpush1.bf16.xpose.msra.mxu0 0
        %691 = vmatprep.mubr.bf16.mxu0 0
        %692 = vmatmul.mubr.bf16.gmra.mrb[0].mxu0 %v654
        %v693 = vpop.f32.mrb[0].mxu0
        %v694 = vadd.f32 0.0, %v693
        %v695 = vpop.f32.mrb[0].mxu0
        %v696 = vpop.f32.mrb[0].mxu0
        %v697 = vpop.f32.mrb[0].mxu0
        %698 = vdwg.mxu0
        %v700 = vsel %vm452, %v546, 0
        %v703 = vsel %vm452, %v553, 0
        %705 = vmatprep.subr.bf16.mxu0 0
        %706 = vmatpush1.bf16.xpose.msra.mxu0 %v703
        %707 = vmatprep.subr.bf16.mxu0 0
        %708 = vmatpush1.bf16.xpose.msra.mxu0 0
        %709 = vmatprep.subr.bf16.mxu0 0
        %710 = vmatpush1.bf16.xpose.msra.mxu0 0
        %711 = vmatprep.subr.bf16.mxu0 0
        %712 = vmatpush1.bf16.xpose.msra.mxu0 0
        %713 = vmatprep.subr.bf16.mxu0 0
        %714 = vmatpush1.bf16.xpose.msra.mxu0 0
        %715 = vmatprep.subr.bf16.mxu0 0
        %716 = vmatpush1.bf16.xpose.msra.mxu0 0
        %717 = vmatprep.subr.bf16.mxu0 0
        %718 = vmatpush1.bf16.xpose.msra.mxu0 0
        %719 = vmatprep.subr.bf16.mxu0 0
        %720 = vmatpush1.bf16.xpose.msra.mxu0 0
        %721 = vmatprep.subr.bf16.mxu0 0
        %722 = vmatpush1.bf16.xpose.msra.mxu0 0
        %723 = vmatprep.subr.bf16.mxu0 0
        %724 = vmatpush1.bf16.xpose.msra.mxu0 0
        %725 = vmatprep.subr.bf16.mxu0 0
        %726 = vmatpush1.bf16.xpose.msra.mxu0 0
        %727 = vmatprep.subr.bf16.mxu0 0
        %728 = vmatpush1.bf16.xpose.msra.mxu0 0
        %729 = vmatprep.subr.bf16.mxu0 0
        %730 = vmatpush1.bf16.xpose.msra.mxu0 0
        %731 = vmatprep.subr.bf16.mxu0 0
        %732 = vmatpush1.bf16.xpose.msra.mxu0 0
        %733 = vmatprep.subr.bf16.mxu0 0
        %734 = vmatpush1.bf16.xpose.msra.mxu0 0
        %735 = vmatprep.subr.bf16.mxu0 0
        %736 = vmatpush1.bf16.xpose.msra.mxu0 0
        %737 = vmatprep.mubr.bf16.mxu0 0
        %738 = vmatmul.mubr.bf16.gmra.mrb[0].mxu0 %v700
        %v739 = vpop.f32.mrb[0].mxu0
        %v740 = vadd.f32 0.0, %v739
        %v741 = vpop.f32.mrb[0].mxu0
        %v742 = vpop.f32.mrb[0].mxu0
        %v743 = vpop.f32.mrb[0].mxu0
        %744 = vdwg.mxu0
        %vm745 = vcmask 64512
        %v746 = vsel %vm745, %v602, -inf
        %747 = vmax.xlane.f32.xlu0 %v746
        %v748 = vpop.xlane.xlu0 %747
        %v749 = vsel %vm745, %v648, -inf
        %750 = vmax.xlane.f32.xlu0 %v749
        %v751 = vpop.xlane.xlu0 %750
        %v752 = vsel %vm745, %v694, -inf
        %753 = vmax.xlane.f32.xlu0 %v752
        %v754 = vpop.xlane.xlu0 %753
        %v755 = vsel %vm745, %v740, -inf
        %756 = vmax.xlane.f32.xlu0 %v755
        %v757 = vpop.xlane.xlu0 %756
        %v758 = vsub.f32 %v602, %v748
        %v759 = vsub.f32 %v648, %v751
        %v760 = vsub.f32 %v694, %v754
        %v761 = vsub.f32 %v740, %v757
        %v762 = vmul.f32 %v758, 1.442695
        %v763 = vpow.pop %v762
        %v764 = vmul.f32 %v759, 1.442695
        %v765 = vpow.pop %v764
        %v766 = vmul.f32 %v760, 1.442695
        %v767 = vpow.pop %v766
        %v768 = vmul.f32 %v761, 1.442695
        %v769 = vpow.pop %v768
        %v770 = vpack.c.bf16 %v763, %v763
        %v771 = vpack.c.bf16 %v765, %v765
        %v772 = vpack.c.bf16 %v767, %v767
        %v773 = vpack.c.bf16 %v769, %v769
        %v775 = vsel %vm745, %v770, 0
        %vm777 = vcmask 1043456
        %v779 = vsel %vm777, %v539, 0
        %781 = vmatprep.subr.bf16.mxu0 0
        %782 = vmatpush1.bf16.msra.mxu0 %v779
        %783 = vmatprep.subr.bf16.mxu0 0
        %784 = vmatpush1.bf16.msra.mxu0 0
        %785 = vmatprep.subr.bf16.mxu0 0
        %786 = vmatpush1.bf16.msra.mxu0 0
        %787 = vmatprep.subr.bf16.mxu0 0
        %788 = vmatpush1.bf16.msra.mxu0 0
        %789 = vmatprep.subr.bf16.mxu0 0
        %790 = vmatpush1.bf16.msra.mxu0 0
        %791 = vmatprep.subr.bf16.mxu0 0
        %792 = vmatpush1.bf16.msra.mxu0 0
        %793 = vmatprep.subr.bf16.mxu0 0
        %794 = vmatpush1.bf16.msra.mxu0 0
        %795 = vmatprep.subr.bf16.mxu0 0
        %796 = vmatpush1.bf16.msra.mxu0 0
        %797 = vmatprep.subr.bf16.mxu0 0
        %798 = vmatpush1.bf16.msra.mxu0 0
        %799 = vmatprep.subr.bf16.mxu0 0
        %800 = vmatpush1.bf16.msra.mxu0 0
        %801 = vmatprep.subr.bf16.mxu0 0
        %802 = vmatpush1.bf16.msra.mxu0 0
        %803 = vmatprep.subr.bf16.mxu0 0
        %804 = vmatpush1.bf16.msra.mxu0 0
        %805 = vmatprep.subr.bf16.mxu0 0
        %806 = vmatpush1.bf16.msra.mxu0 0
        %807 = vmatprep.subr.bf16.mxu0 0
        %808 = vmatpush1.bf16.msra.mxu0 0
        %809 = vmatprep.subr.bf16.mxu0 0
        %810 = vmatpush1.bf16.msra.mxu0 0
        %811 = vmatprep.subr.bf16.mxu0 0
        %812 = vmatpush1.bf16.msra.mxu0 0
        %813 = vmatprep.mubr.bf16.mxu0 0
        %814 = vmatmul.mubr.bf16.gmra.mrb[0].mxu0 %v775
        %v815 = vpop.f32.mrb[0].mxu0
        %v816 = vadd.f32 0.0, %v815
        %v817 = vpop.f32.mrb[0].mxu0
        %v818 = vpop.f32.mrb[0].mxu0
        %v819 = vpop.f32.mrb[0].mxu0
        %820 = vdwg.mxu0
        %v822 = vsel %vm745, %v771, 0
        %v825 = vsel %vm777, %v556, 0
        %827 = vmatprep.subr.bf16.mxu0 0
        %828 = vmatpush1.bf16.msra.mxu0 %v825
        %829 = vmatprep.subr.bf16.mxu0 0
        %830 = vmatpush1.bf16.msra.mxu0 0
        %831 = vmatprep.subr.bf16.mxu0 0
        %832 = vmatpush1.bf16.msra.mxu0 0
        %833 = vmatprep.subr.bf16.mxu0 0
        %834 = vmatpush1.bf16.msra.mxu0 0
        %835 = vmatprep.subr.bf16.mxu0 0
        %836 = vmatpush1.bf16.msra.mxu0 0
        %837 = vmatprep.subr.bf16.mxu0 0
        %838 = vmatpush1.bf16.msra.mxu0 0
        %839 = vmatprep.subr.bf16.mxu0 0
        %840 = vmatpush1.bf16.msra.mxu0 0
        %841 = vmatprep.subr.bf16.mxu0 0
        %842 = vmatpush1.bf16.msra.mxu0 0
        %843 = vmatprep.subr.bf16.mxu0 0
        %844 = vmatpush1.bf16.msra.mxu0 0
        %845 = vmatprep.subr.bf16.mxu0 0
        %846 = vmatpush1.bf16.msra.mxu0 0
        %847 = vmatprep.subr.bf16.mxu0 0
        %848 = vmatpush1.bf16.msra.mxu0 0
        %849 = vmatprep.subr.bf16.mxu0 0
        %850 = vmatpush1.bf16.msra.mxu0 0
        %851 = vmatprep.subr.bf16.mxu0 0
        %852 = vmatpush1.bf16.msra.mxu0 0
        %853 = vmatprep.subr.bf16.mxu0 0
        %854 = vmatpush1.bf16.msra.mxu0 0
        %855 = vmatprep.subr.bf16.mxu0 0
        %856 = vmatpush1.bf16.msra.mxu0 0
        %857 = vmatprep.subr.bf16.mxu0 0
        %858 = vmatpush1.bf16.msra.mxu0 0
        %859 = vmatprep.mubr.bf16.mxu0 0
        %860 = vmatmul.mubr.bf16.gmra.mrb[0].mxu0 %v822
        %v861 = vpop.f32.mrb[0].mxu0
        %v862 = vadd.f32 0.0, %v861
        %v863 = vpop.f32.mrb[0].mxu0
        %v864 = vpop.f32.mrb[0].mxu0
        %v865 = vpop.f32.mrb[0].mxu0
        %866 = vdwg.mxu0
        %v868 = vsel %vm745, %v772, 0
        %v871 = vsel %vm777, %v558, 0
        %873 = vmatprep.subr.bf16.mxu0 0
        %874 = vmatpush1.bf16.msra.mxu0 %v871
        %875 = vmatprep.subr.bf16.mxu0 0
        %876 = vmatpush1.bf16.msra.mxu0 0
        %877 = vmatprep.subr.bf16.mxu0 0
        %878 = vmatpush1.bf16.msra.mxu0 0
        %879 = vmatprep.subr.bf16.mxu0 0
        %880 = vmatpush1.bf16.msra.mxu0 0
        %881 = vmatprep.subr.bf16.mxu0 0
        %882 = vmatpush1.bf16.msra.mxu0 0
        %883 = vmatprep.subr.bf16.mxu0 0
        %884 = vmatpush1.bf16.msra.mxu0 0
        %885 = vmatprep.subr.bf16.mxu0 0
        %886 = vmatpush1.bf16.msra.mxu0 0
        %887 = vmatprep.subr.bf16.mxu0 0
        %888 = vmatpush1.bf16.msra.mxu0 0
        %889 = vmatprep.subr.bf16.mxu0 0
        %890 = vmatpush1.bf16.msra.mxu0 0
        %891 = vmatprep.subr.bf16.mxu0 0
        %892 = vmatpush1.bf16.msra.mxu0 0
        %893 = vmatprep.subr.bf16.mxu0 0
        %894 = vmatpush1.bf16.msra.mxu0 0
        %895 = vmatprep.subr.bf16.mxu0 0
        %896 = vmatpush1.bf16.msra.mxu0 0
        %897 = vmatprep.subr.bf16.mxu0 0
        %898 = vmatpush1.bf16.msra.mxu0 0
        %899 = vmatprep.subr.bf16.mxu0 0
        %900 = vmatpush1.bf16.msra.mxu0 0
        %901 = vmatprep.subr.bf16.mxu0 0
        %902 = vmatpush1.bf16.msra.mxu0 0
        %903 = vmatprep.subr.bf16.mxu0 0
        %904 = vmatpush1.bf16.msra.mxu0 0
        %905 = vmatprep.mubr.bf16.mxu0 0
        %906 = vmatmul.mubr.bf16.gmra.mrb[0].mxu0 %v868
        %v907 = vpop.f32.mrb[0].mxu0
        %v908 = vadd.f32 0.0, %v907
        %v909 = vpop.f32.mrb[0].mxu0
        %v910 = vpop.f32.mrb[0].mxu0
        %v911 = vpop.f32.mrb[0].mxu0
        %912 = vdwg.mxu0
        %v914 = vsel %vm745, %v773, 0
        %v917 = vsel %vm777, %v560, 0
        %919 = vmatprep.subr.bf16.mxu0 0
        %920 = vmatpush1.bf16.msra.mxu0 %v917
        %921 = vmatprep.subr.bf16.mxu0 0
        %922 = vmatpush1.bf16.msra.mxu0 0
        %923 = vmatprep.subr.bf16.mxu0 0
        %924 = vmatpush1.bf16.msra.mxu0 0
        %925 = vmatprep.subr.bf16.mxu0 0
        %926 = vmatpush1.bf16.msra.mxu0 0
        %927 = vmatprep.subr.bf16.mxu0 0
        %928 = vmatpush1.bf16.msra.mxu0 0
        %929 = vmatprep.subr.bf16.mxu0 0
        %930 = vmatpush1.bf16.msra.mxu0 0
        %931 = vmatprep.subr.bf16.mxu0 0
        %932 = vmatpush1.bf16.msra.mxu0 0
        %933 = vmatprep.subr.bf16.mxu0 0
        %934 = vmatpush1.bf16.msra.mxu0 0
        %935 = vmatprep.subr.bf16.mxu0 0
        %936 = vmatpush1.bf16.msra.mxu0 0
        %937 = vmatprep.subr.bf16.mxu0 0
        %938 = vmatpush1.bf16.msra.mxu0 0
        %939 = vmatprep.subr.bf16.mxu0 0
        %940 = vmatpush1.bf16.msra.mxu0 0
        %941 = vmatprep.subr.bf16.mxu0 0
        %942 = vmatpush1.bf16.msra.mxu0 0
        %943 = vmatprep.subr.bf16.mxu0 0
        %944 = vmatpush1.bf16.msra.mxu0 0
        %945 = vmatprep.subr.bf16.mxu0 0
        %946 = vmatpush1.bf16.msra.mxu0 0
        %947 = vmatprep.subr.bf16.mxu0 0
        %948 = vmatpush1.bf16.msra.mxu0 0
        %949 = vmatprep.subr.bf16.mxu0 0
        %950 = vmatpush1.bf16.msra.mxu0 0
        %951 = vmatprep.mubr.bf16.mxu0 0
        %952 = vmatmul.mubr.bf16.gmra.mrb[0].mxu0 %v914
        %v953 = vpop.f32.mrb[0].mxu0
        %v954 = vadd.f32 0.0, %v953
        %v955 = vpop.f32.mrb[0].mxu0
        %v956 = vpop.f32.mrb[0].mxu0
        %v957 = vpop.f32.mrb[0].mxu0
        %958 = vdwg.mxu0
        %v959 = vsel %vm745, %v763, 0.0
        %960 = vadd.xlane.f32.xlu0 %v959
        %v961 = vpop.xlane.xlu0 %960
        %v962 = vsel %vm745, %v765, 0.0
        %963 = vadd.xlane.f32.xlu0 %v962
        %v964 = vpop.xlane.xlu0 %963
        %v965 = vsel %vm745, %v767, 0.0
        %966 = vadd.xlane.f32.xlu0 %v965
        %v967 = vpop.xlane.xlu0 %966
        %v968 = vsel %vm745, %v769, 0.0
        %969 = vadd.xlane.f32.xlu0 %v968
        %v970 = vpop.xlane.xlu0 %969
        %v971 = vrcp.pop %v961
        %v972 = vrcp.pop %v964
        %v973 = vrcp.pop %v967
        %v974 = vrcp.pop %v970
        %v975 = vmul.f32 %v816, %v971
        %v976 = vmul.f32 %v862, %v972
        %v977 = vmul.f32 %v908, %v973
        %v978 = vmul.f32 %v954, %v974
        %980 = vrot.lane.b32.xlu0 %v976, 32
        %v981 = vpop.permute.xlu0 %980
        %984 = vrot.lane.b32.xlu0 %v977, 64
        %v985 = vpop.permute.xlu0 %984
        %988 = vrot.lane.b32.xlu0 %v978, 96
        %v989 = vpop.permute.xlu0 %988
        %v991 = vsel %vm452, %v975, %v981
        %vm992 = vcmask 523264
        %v993 = vsel %vm992, %v991, %v985
        %vm994 = vcmask 785408
        %v995 = vsel %vm994, %v993, %v989
        %v996 = vpack.c.bf16 %v995, %v995
        %v997 = vld [vmem:[%s2] sm:$0xf]
        %v998 = vld [vmem:[%s2 + $0x4] sm:$0xf]
        %v999 = vld [vmem:[%s2 + $0x8] sm:$0xf]
        %v1000 = vld [vmem:[%s2 + $0xc] sm:$0xf]
        %v1001 = vld [vmem:[%s2 + $0x10] sm:$0xf]
        %v1002 = vld [vmem:[%s2 + $0x14] sm:$0xf]
        %v1003 = vld [vmem:[%s2 + $0x18] sm:$0xf]
        %v1004 = vld [vmem:[%s2 + $0x1c] sm:$0xf]
        %v1005 = vld [vmem:[%s2 + $0x20] sm:$0xf]
        %v1006 = vld [vmem:[%s2 + $0x24] sm:$0xf]
        %v1007 = vld [vmem:[%s2 + $0x28] sm:$0xf]
        %v1008 = vld [vmem:[%s2 + $0x2c] sm:$0xf]
        %v1009 = vld [vmem:[%s2 + $0x30] sm:$0xf]
        %v1010 = vld [vmem:[%s2 + $0x34] sm:$0xf]
        %v1011 = vld [vmem:[%s2 + $0x38] sm:$0xf]
        %v1012 = vld [vmem:[%s2 + $0x3c] sm:$0xf]
        %v1013 = vld [vmem:[%s3] sm:$0x1]
        %v1015 = vlaneseq
        %v1016 = vshrl.u32 %v1015, 7
        %v1017 = vsub.s32 0, %v1016
        %v1018 = vrot.slane %v1013, %v1017
        %v1036 = vunpack.c.l.b16 %v997
        %v1037 = vunpack.c.l.b16 %v998
        %v1038 = vunpack.c.l.b16 %v999
        %v1039 = vunpack.c.l.b16 %v1000
        %v1040 = vunpack.c.l.b16 %v1001
        %v1041 = vunpack.c.l.b16 %v1002
        %v1042 = vunpack.c.l.b16 %v1003
        %v1043 = vunpack.c.l.b16 %v1004
        %v1044 = vunpack.c.l.b16 %v1005
        %v1045 = vunpack.c.l.b16 %v1006
        %v1046 = vunpack.c.l.b16 %v1007
        %v1047 = vunpack.c.l.b16 %v1008
        %v1048 = vunpack.c.l.b16 %v1009
        %v1049 = vunpack.c.l.b16 %v1010
        %v1050 = vunpack.c.l.b16 %v1011
        %v1051 = vunpack.c.l.b16 %v1012
        %v1052 = vpack.c.b16 %v1037, %v1036
        %v1053 = vpack.c.b16 %v1039, %v1038
        %v1054 = vpack.c.b16 %v1041, %v1040
        %v1055 = vpack.c.b16 %v1043, %v1042
        %v1056 = vpack.c.b16 %v1045, %v1044
        %v1057 = vpack.c.b16 %v1047, %v1046
        %v1058 = vpack.c.b16 %v1049, %v1048
        %v1059 = vpack.c.b16 %v1051, %v1050
        %1068 = vmatprep.subr.bf16.mxu0 0
        %1069 = vmatpush1.bf16.msra.mxu0 %v1052
        %1070 = vmatprep.subr.bf16.mxu0 0
        %1071 = vmatpush1.bf16.msra.mxu0 %v1053
        %1072 = vmatprep.subr.bf16.mxu0 0
        %1073 = vmatpush1.bf16.msra.mxu0 %v1054
        %1074 = vmatprep.subr.bf16.mxu0 0
        %1075 = vmatpush1.bf16.msra.mxu0 %v1055
        %1076 = vmatprep.subr.bf16.mxu0 0
        %1077 = vmatpush1.bf16.msra.mxu0 %v1056
        %1078 = vmatprep.subr.bf16.mxu0 0
        %1079 = vmatpush1.bf16.msra.mxu0 %v1057
        %1080 = vmatprep.subr.bf16.mxu0 0
        %1081 = vmatpush1.bf16.msra.mxu0 %v1058
        %1082 = vmatprep.subr.bf16.mxu0 0
        %1083 = vmatpush1.bf16.msra.mxu0 %v1059
        %1084 = vmatprep.subr.bf16.mxu0 0
        %1085 = vmatpush1.bf16.msra.mxu0 0
        %1086 = vmatprep.subr.bf16.mxu0 0
        %1087 = vmatpush1.bf16.msra.mxu0 0
        %1088 = vmatprep.subr.bf16.mxu0 0
        %1089 = vmatpush1.bf16.msra.mxu0 0
        %1090 = vmatprep.subr.bf16.mxu0 0
        %1091 = vmatpush1.bf16.msra.mxu0 0
        %1092 = vmatprep.subr.bf16.mxu0 0
        %1093 = vmatpush1.bf16.msra.mxu0 0
        %1094 = vmatprep.subr.bf16.mxu0 0
        %1095 = vmatpush1.bf16.msra.mxu0 0
        %1096 = vmatprep.subr.bf16.mxu0 0
        %1097 = vmatpush1.bf16.msra.mxu0 0
        %1098 = vmatprep.subr.bf16.mxu0 0
        %1099 = vmatpush1.bf16.msra.mxu0 0
        %1100 = vmatprep.mubr.bf16.mxu0 0
        %1101 = vmatmul.mubr.bf16.gmra.mrb[0].mxu0 %v996
        %v1102 = vpop.f32.mrb[0].mxu0
        %v1103 = vadd.f32 %v1018, %v1102
        %v1104 = vpop.f32.mrb[0].mxu0
        %v1105 = vpop.f32.mrb[0].mxu0
        %v1106 = vpop.f32.mrb[0].mxu0
        %1107 = vdwg.mxu0
        %v1108 = vadd.f32 %v1103, %v410
        %v1109 = vld [vmem:[%s4] sm:$0x1]
        %v1110 = vld [vmem:[%s5] sm:$0x1]
        %v1111 = vsel %vm452, %v1108, 0.0
        %1112 = vadd.xlane.f32.xlu0 %v1111
        %v1113 = vpop.xlane.xlu0 %1112
        %v1114 = vrcp.pop 32.0
        %v1115 = vmul.f32 %v1113, %v1114
        %v1116 = vsub.f32 %v1108, %v1115
        %v1117 = vmul.f32 %v1116, %v1116
        %v1118 = vsel %vm452, %v1117, 0.0
        %1119 = vadd.xlane.f32.xlu0 %v1118
        %v1120 = vpop.xlane.xlu0 %1119
        %v1121 = vmul.f32 %v1120, %v1114
        %v1122 = vadd.f32 %v1121, 1e-05
        %v1123 = vrsqrt.pop %v1122
        %v1124 = vmul.f32 %v1116, %v1123
        %v1126 = vlaneseq
        %v1127 = vshrl.u32 %v1126, 7
        %v1128 = vsub.s32 0, %v1127
        %v1129 = vrot.slane %v1109, %v1128
        %v1131 = vmul.f32 %v1124, %v1129
        %v1133 = vlaneseq
        %v1134 = vshrl.u32 %v1133, 7
        %v1135 = vsub.s32 0, %v1134
        %v1136 = vrot.slane %v1110, %v1135
        %v1138 = vadd.f32 %v1131, %v1136
        %v1139 = vpack.c.bf16 %v1138, %v1138
        %v1140 = vld [vmem:[%s6] sm:$0xf]
        %v1141 = vld [vmem:[%s6 + $0x4] sm:$0xf]
        %v1142 = vld [vmem:[%s6 + $0x8] sm:$0xf]
        %v1143 = vld [vmem:[%s6 + $0xc] sm:$0xf]
        %v1144 = vld [vmem:[%s7] sm:$0x1]
        %v1146 = vlaneseq
        %v1147 = vshrl.u32 %v1146, 7
        %v1148 = vsub.s32 0, %v1147
        %v1149 = vrot.slane %v1144, %v1148
        %v1155 = vunpack.c.l.b16 %v1140
        %v1156 = vunpack.c.l.b16 %v1141
        %v1157 = vunpack.c.l.b16 %v1142
        %v1158 = vunpack.c.l.b16 %v1143
        %v1159 = vpack.c.b16 %v1156, %v1155
        %v1160 = vpack.c.b16 %v1158, %v1157
        %v1164 = vsel %vm452, %v1139, 0
        %1166 = vmatprep.subr.bf16.mxu0 0
        %1167 = vmatpush1.bf16.msra.mxu0 %v1159
        %1168 = vmatprep.subr.bf16.mxu0 0
        %1169 = vmatpush1.bf16.msra.mxu0 %v1160
        %1170 = vmatprep.subr.bf16.mxu0 0
        %1171 = vmatpush1.bf16.msra.mxu0 0
        %1172 = vmatprep.subr.bf16.mxu0 0
        %1173 = vmatpush1.bf16.msra.mxu0 0
        %1174 = vmatprep.subr.bf16.mxu0 0
        %1175 = vmatpush1.bf16.msra.mxu0 0
        %1176 = vmatprep.subr.bf16.mxu0 0
        %1177 = vmatpush1.bf16.msra.mxu0 0
        %1178 = vmatprep.subr.bf16.mxu0 0
        %1179 = vmatpush1.bf16.msra.mxu0 0
        %1180 = vmatprep.subr.bf16.mxu0 0
        %1181 = vmatpush1.bf16.msra.mxu0 0
        %1182 = vmatprep.subr.bf16.mxu0 0
        %1183 = vmatpush1.bf16.msra.mxu0 0
        %1184 = vmatprep.subr.bf16.mxu0 0
        %1185 = vmatpush1.bf16.msra.mxu0 0
        %1186 = vmatprep.subr.bf16.mxu0 0
        %1187 = vmatpush1.bf16.msra.mxu0 0
        %1188 = vmatprep.subr.bf16.mxu0 0
        %1189 = vmatpush1.bf16.msra.mxu0 0
        %1190 = vmatprep.subr.bf16.mxu0 0
        %1191 = vmatpush1.bf16.msra.mxu0 0
        %1192 = vmatprep.subr.bf16.mxu0 0
        %1193 = vmatpush1.bf16.msra.mxu0 0
        %1194 = vmatprep.subr.bf16.mxu0 0
        %1195 = vmatpush1.bf16.msra.mxu0 0
        %1196 = vmatprep.subr.bf16.mxu0 0
        %1197 = vmatpush1.bf16.msra.mxu0 0
        %1198 = vmatprep.mubr.bf16.mxu0 0
        %1199 = vmatmul.mubr.bf16.gmra.mrb[0].mxu0 %v1164
        %v1200 = vpop.f32.mrb[0].mxu0
        %v1201 = vadd.f32 %v1149, %v1200
        %v1202 = vpop.f32.mrb[0].mxu0
        %v1203 = vpop.f32.mrb[0].mxu0
        %v1204 = vpop.f32.mrb[0].mxu0
        %1205 = vdwg.mxu0
        %v1206 = vmax.f32 %v1201, 0.0
        %v1207 = vpack.c.bf16 %v1206, %v1206
        %v1208 = vld [vmem:[%s8] sm:$0xf]
        %v1209 = vld [vmem:[%s8 + $0x4] sm:$0xf]
        %v1210 = vld [vmem:[%s8 + $0x8] sm:$0xf]
        %v1211 = vld [vmem:[%s8 + $0xc] sm:$0xf]
        %v1212 = vld [vmem:[%s8 + $0x10] sm:$0xf]
        %v1213 = vld [vmem:[%s8 + $0x14] sm:$0xf]
        %v1214 = vld [vmem:[%s8 + $0x18] sm:$0xf]
        %v1215 = vld [vmem:[%s8 + $0x1c] sm:$0xf]
        %v1216 = vld [vmem:[%s8 + $0x20] sm:$0xf]
        %v1217 = vld [vmem:[%s8 + $0x24] sm:$0xf]
        %v1218 = vld [vmem:[%s8 + $0x28] sm:$0xf]
        %v1219 = vld [vmem:[%s8 + $0x2c] sm:$0xf]
        %v1220 = vld [vmem:[%s8 + $0x30] sm:$0xf]
        %v1221 = vld [vmem:[%s8 + $0x34] sm:$0xf]
        %v1222 = vld [vmem:[%s8 + $0x38] sm:$0xf]
        %v1223 = vld [vmem:[%s8 + $0x3c] sm:$0xf]
        %v1224 = vld [vmem:[%s9] sm:$0x1]
        %v1226 = vlaneseq
        %v1227 = vshrl.u32 %v1226, 7
        %v1228 = vsub.s32 0, %v1227
        %v1229 = vrot.slane %v1224, %v1228
        %v1247 = vunpack.c.l.b16 %v1208
        %v1248 = vunpack.c.l.b16 %v1209
        %v1249 = vunpack.c.l.b16 %v1210
        %v1250 = vunpack.c.l.b16 %v1211
        %v1251 = vunpack.c.l.b16 %v1212
        %v1252 = vunpack.c.l.b16 %v1213
        %v1253 = vunpack.c.l.b16 %v1214
        %v1254 = vunpack.c.l.b16 %v1215
        %v1255 = vunpack.c.l.b16 %v1216
        %v1256 = vunpack.c.l.b16 %v1217
        %v1257 = vunpack.c.l.b16 %v1218
        %v1258 = vunpack.c.l.b16 %v1219
        %v1259 = vunpack.c.l.b16 %v1220
        %v1260 = vunpack.c.l.b16 %v1221
        %v1261 = vunpack.c.l.b16 %v1222
        %v1262 = vunpack.c.l.b16 %v1223
        %v1263 = vpack.c.b16 %v1248, %v1247
        %v1264 = vpack.c.b16 %v1250, %v1249
        %v1265 = vpack.c.b16 %v1252, %v1251
        %v1266 = vpack.c.b16 %v1254, %v1253
        %v1267 = vpack.c.b16 %v1256, %v1255
        %v1268 = vpack.c.b16 %v1258, %v1257
        %v1269 = vpack.c.b16 %v1260, %v1259
        %v1270 = vpack.c.b16 %v1262, %v1261
        %1279 = vmatprep.subr.bf16.mxu0 0
        %1280 = vmatpush1.bf16.msra.mxu0 %v1263
        %1281 = vmatprep.subr.bf16.mxu0 0
        %1282 = vmatpush1.bf16.msra.mxu0 %v1264
        %1283 = vmatprep.subr.bf16.mxu0 0
        %1284 = vmatpush1.bf16.msra.mxu0 %v1265
        %1285 = vmatprep.subr.bf16.mxu0 0
        %1286 = vmatpush1.bf16.msra.mxu0 %v1266
        %1287 = vmatprep.subr.bf16.mxu0 0
        %1288 = vmatpush1.bf16.msra.mxu0 %v1267
        %1289 = vmatprep.subr.bf16.mxu0 0
        %1290 = vmatpush1.bf16.msra.mxu0 %v1268
        %1291 = vmatprep.subr.bf16.mxu0 0
        %1292 = vmatpush1.bf16.msra.mxu0 %v1269
        %1293 = vmatprep.subr.bf16.mxu0 0
        %1294 = vmatpush1.bf16.msra.mxu0 %v1270
        %1295 = vmatprep.subr.bf16.mxu0 0
        %1296 = vmatpush1.bf16.msra.mxu0 0
        %1297 = vmatprep.subr.bf16.mxu0 0
        %1298 = vmatpush1.bf16.msra.mxu0 0
        %1299 = vmatprep.subr.bf16.mxu0 0
        %1300 = vmatpush1.bf16.msra.mxu0 0
        %1301 = vmatprep.subr.bf16.mxu0 0
        %1302 = vmatpush1.bf16.msra.mxu0 0
        %1303 = vmatprep.subr.bf16.mxu0 0
        %1304 = vmatpush1.bf16.msra.mxu0 0
        %1305 = vmatprep.subr.bf16.mxu0 0
        %1306 = vmatpush1.bf16.msra.mxu0 0
        %1307 = vmatprep.subr.bf16.mxu0 0
        %1308 = vmatpush1.bf16.msra.mxu0 0
        %1309 = vmatprep.subr.bf16.mxu0 0
        %1310 = vmatpush1.bf16.msra.mxu0 0
        %1311 = vmatprep.mubr.bf16.mxu0 0
        %1312 = vmatmul.mubr.bf16.gmra.mrb[0].mxu0 %v1207
        %v1313 = vpop.f32.mrb[0].mxu0
        %v1314 = vadd.f32 %v1229, %v1313
        %v1315 = vpop.f32.mrb[0].mxu0
        %v1316 = vpop.f32.mrb[0].mxu0
        %v1317 = vpop.f32.mrb[0].mxu0
        %1318 = vdwg.mxu0
        %v1319 = vadd.f32 %v1314, %v1138
        %v1320 = vld [vmem:[%s10] sm:$0x1]
        %v1321 = vld [vmem:[%s11] sm:$0x1]
        %v1322 = vsel %vm452, %v1319, 0.0
        %1323 = vadd.xlane.f32.xlu0 %v1322
        %v1324 = vpop.xlane.xlu0 %1323
        %v1325 = vmul.f32 %v1324, %v1114
        %v1326 = vsub.f32 %v1319, %v1325
        %v1327 = vmul.f32 %v1326, %v1326
        %v1328 = vsel %vm452, %v1327, 0.0
        %1329 = vadd.xlane.f32.xlu0 %v1328
        %v1330 = vpop.xlane.xlu0 %1329
        %v1331 = vmul.f32 %v1330, %v1114
        %v1332 = vadd.f32 %v1331, 1e-05
        %v1333 = vrsqrt.pop %v1332
        %v1334 = vmul.f32 %v1326, %v1333
        %v1336 = vlaneseq
        %v1337 = vshrl.u32 %v1336, 7
        %v1338 = vsub.s32 0, %v1337
        %v1339 = vrot.slane %v1320, %v1338
        %v1341 = vmul.f32 %v1334, %v1339
        %v1343 = vlaneseq
        %v1344 = vshrl.u32 %v1343, 7
        %v1345 = vsub.s32 0, %v1344
        %v1346 = vrot.slane %v1321, %v1345
        %v1348 = vadd.f32 %v1341, %v1346
        %1349 = vst.msk [vmem:[%s404] sm:$0xff] %vm452, %v1348
        %s1350 = sand.u32 %s291, 1
        %s1351 = scalar_lea.sflag [#allocation3], %s1350
        %s1352 = sand.u32 %s291, 1
        %s1353 = smul.addr %s1352, 8
        %s1354 = scalar_lea.vmem [#allocation2], %s1353
        // Predicated region
        $region69: #{tpu_custom_call.1} parent=67 // pred_check
          %p1355 = pneg %p301
        $region70: #{tpu_custom_call.1} parent=67 // pred_check_branch
          %1357 = sbr.rel (%p1355) target = $region72
        $region71: #{tpu_custom_call.1} parent=67 // pred_region
          %s1359 = ssub.s32 128, 128
          %1360 = vsyncadd %s1351, %s1359
          %s1361 = smul.addr %s26, 128
          %s1362 = scalar_lea.hbm %s12, %s1361
          %s1364 = sshll.u32 %s1354, 4
          %s1365 = int_to_ptr.vmem [resolvable:$true] %s1364
          %1367 = dma.vmem_to_hbm [thread:$0]  %s1365, 128, %s1362, %s1351
        $region72: #{tpu_custom_call.1} parent=67 // pred_fallthru
          _
      $region68: #{tpu_custom_call.1} parent=5 // pred_fallthru
        _
      %p1368 = scmp.le.s32.totalorder 2, %s21
      // Predicated region
      $region73: #{tpu_custom_call.1} parent=5 // pred_check
        %p1369 = pneg %p1368
      $region74: #{tpu_custom_call.1} parent=5 // pred_check_branch
        %1371 = sbr.rel (%p1369) target = $region76
      $region75: #{tpu_custom_call.1} parent=5 // pred_region
        %s1372 = ssub.s32 %s21, 2
        // Predicated region
        $region77: #{tpu_custom_call.1} parent=75 // pred_check
          %p1373 = pneg %p307
        $region78: #{tpu_custom_call.1} parent=75 // pred_check_branch
          %1375 = sbr.rel (%p1373) target = $region80
        $region79: #{tpu_custom_call.1} parent=75 // pred_region
          %s1376 = sand.u32 %s292, 1
          %s1377 = scalar_lea.sflag [#allocation3], %s1376
          %s1378 = sand.u32 %s292, 1
          %s1379 = smul.addr %s1378, 8
          %s1380 = scalar_lea.vmem [#allocation2], %s1379
          %1381 = dma.done %s1377, 128
        $region80: #{tpu_custom_call.1} parent=75 // pred_fallthru
          _
      $region76: #{tpu_custom_call.1} parent=5 // pred_fallthru
        _
    $region6: #{tpu_custom_call.1} parent=1 // loop_footer
      %s25 = sadd.s32 1, %s21
    $region7: #{tpu_custom_call.1} parent=1 // loop_footer_branch
      %20 = sbr.rel target = $region3
    $region8: #{tpu_custom_call.1} parent=1 // loop_exit
      _
    %1382 = vsyncpa [#allocation3], 1
    %s1383 = scalar_lea.sflag [#allocation3], 1
    %1384 = vsyncpa %s1383, 1

// kernel: tpu_custom_call.1
$region0: #{tpu_custom_call.1}
  #allocation0 [shape = 'u32[]', space=smem, size = 0x4, offset = 0x4, fixed_abs, tag = 'smem constant byte address 0x4 - core index']
  #allocation1 [shape = 'u32[144,128]{1,0:T(1,128)}', space=vmem, size = 0x12000, scoped, tag = 'internal scratch']
  %s0 = inlined_call_operand.vmem [shape: f32[16,32], index: 0, kind: input, shape index: {}]
  %s1 = inlined_call_operand.vmem [shape: bf16[32,384], index: 1, kind: input, shape index: {}]
  %s2 = inlined_call_operand.vmem [shape: bf16[128,32], index: 2, kind: input, shape index: {}]
  %s3 = inlined_call_operand.vmem [shape: f32[1,32], index: 3, kind: input, shape index: {}]
  %s4 = inlined_call_operand.vmem [shape: f32[1,32], index: 4, kind: input, shape index: {}]
  %s5 = inlined_call_operand.vmem [shape: f32[1,32], index: 5, kind: input, shape index: {}]
  %s6 = inlined_call_operand.vmem [shape: bf16[32,128], index: 6, kind: input, shape index: {}]
  %s7 = inlined_call_operand.vmem [shape: f32[1,128], index: 7, kind: input, shape index: {}]
  %s8 = inlined_call_operand.vmem [shape: bf16[128,32], index: 8, kind: input, shape index: {}]
  %s9 = inlined_call_operand.vmem [shape: f32[1,32], index: 9, kind: input, shape index: {}]
  %s10 = inlined_call_operand.vmem [shape: f32[1,32], index: 10, kind: input, shape index: {}]
  %s11 = inlined_call_operand.vmem [shape: f32[1,32], index: 11, kind: input, shape index: {}]
  %s12 = inlined_call_operand.hbm [shape: f32[16,32], index: 12, kind: output, shape index: {}]
  %s13 = sld [smem:[#allocation0]]
  $region81: #{tpu_custom_call.1} parent=0
    _
  %s15 = ssub.s32 1, %s13
  %s16 = scalar_select 0, %s15, %s13
  $region1: #{tpu_custom_call.1} parent=0
    #allocation2 [shape = 'u8[8192]{0}', space=vmem, size = 0x2000, scoped, tag = 'output window, operand 0']
    #allocation3 [shape = 's32[2]{0}', space=sflag, size = 0x8, scoped, tag = 'scoped memory for tpu_custom_call.1']
    %17 = vsyncpa [#allocation3], 0
    %s18 = scalar_lea.sflag [#allocation3], 1
    %19 = vsyncpa %s18, 0
    loop: start=0, step=1, limit=4
    $region2: #{tpu_custom_call.1} parent=1 // loop_pre_header
      _
    $region3: #{tpu_custom_call.1} parent=1 // loop_header
      %s21 = sphi 0, %s25
      %p22 = scmp.ge.s32.totalorder %s21, 4
      %s31 = sphi 0, %s33
      %s34 = sphi 0, %s31
      %s35 = sphi 0, %s34
      %s51 = sphi 0, %s35
      %s55 = sphi 0, %s55
      %s57 = sphi 0, %s55
      %s58 = sphi 0, %s57
      %s72 = sphi 0, %s58
      %s76 = sphi 0, %s76
      %s78 = sphi 0, %s76
      %s79 = sphi 0, %s78
      %s93 = sphi 0, %s79
      %s97 = sphi 0, %s97
      %s99 = sphi 0, %s97
      %s100 = sphi 0, %s99
      %s114 = sphi 0, %s100
      %s118 = sphi 0, %s118
      %s120 = sphi 0, %s118
      %s121 = sphi 0, %s120
      %s135 = sphi 0, %s121
      %s139 = sphi 0, %s139
      %s141 = sphi 0, %s139
      %s142 = sphi 0, %s141
      %s156 = sphi 0, %s142
      %s160 = sphi 0, %s160
      %s162 = sphi 0, %s160
      %s163 = sphi 0, %s162
      %s177 = sphi 0, %s163
      %s181 = sphi 0, %s181
      %s183 = sphi 0, %s181
      %s184 = sphi 0, %s183
      %s198 = sphi 0, %s184
      %s202 = sphi 0, %s202
      %s204 = sphi 0, %s202
      %s205 = sphi 0, %s204
      %s219 = sphi 0, %s205
      %s223 = sphi 0, %s223
      %s225 = sphi 0, %s223
      %s226 = sphi 0, %s225
      %s240 = sphi 0, %s226
      %s244 = sphi 0, %s244
      %s246 = sphi 0, %s244
      %s247 = sphi 0, %s246
      %s261 = sphi 0, %s247
      %s265 = sphi 0, %s265
      %s267 = sphi 0, %s265
      %s268 = sphi 0, %s267
      %s282 = sphi 0, %s268
      %s288 = sphi 0, %s290
      %s291 = sphi 0, %s288
      %s292 = sphi 0, %s291
      %s308 = sphi 0, %s292
    $region4: #{tpu_custom_call.1} parent=1 // loop_header_branch
      %24 = sbr.rel (%p22) target = $region8
    $region5: #{tpu_custom_call.1} parent=1 // loop_body
      %s26 = ssub.s32 %s21, 1
      %s27 = ssub.s32 %s21, 2
      %s28 = sadd.s32 %s21, 1
      %s29 = ssub.s32 %s21, %s28
      %p30 = scmp.eq.s32.totalorder %s29, 0
      %s32 = sadd.s32 %s31, 1
      %s33 = scalar_select %p30, %s31, %s32
      %p36 = pneg %p30
      %p37 = scmp.eq.s32.totalorder %s21, 1
      %p38 = por %p36, %p37
      %p39 = scmp.ne.s32.totalorder %s31, %s34
      %p40 = scmp.eq.s32.totalorder %s21, 0
      %p41 = por %p39, %p40
      %p42 = scmp.ne.s32.totalorder %s31, %s34
      %p43 = scmp.eq.s32.totalorder %s26, 1
      %p44 = por %p42, %p43
      %p45 = scmp.ne.s32.totalorder %s34, %s35
      %p46 = scmp.eq.s32.totalorder %s26, 0
      %p47 = por %p45, %p46
      %p48 = scmp.ne.s32.totalorder %s34, %s35
      %p49 = scmp.eq.s32.totalorder %s27, 1
      %p50 = por %p48, %p49
      %p52 = scmp.ne.s32.totalorder %s35, %s51
      %p53 = scmp.eq.s32.totalorder %s27, 0
      %p54 = por %p52, %p53
      %s56 = sadd.s32 %s55, 1
      %p59 = scmp.eq.s32.totalorder %s21, 1
      %p60 = scmp.ne.s32.totalorder %s55, %s57
      %p61 = scmp.eq.s32.totalorder %s21, 0
      %p62 = por %p60, %p61
      %p63 = scmp.ne.s32.totalorder %s55, %s57
      %p64 = scmp.eq.s32.totalorder %s26, 1
      %p65 = por %p63, %p64
      %p66 = scmp.ne.s32.totalorder %s57, %s58
      %p67 = scmp.eq.s32.totalorder %s26, 0
      %p68 = por %p66, %p67
      %p69 = scmp.ne.s32.totalorder %s57, %s58
      %p70 = scmp.eq.s32.totalorder %s27, 1
      %p71 = por %p69, %p70
      %p73 = scmp.ne.s32.totalorder %s58, %s72
      %p74 = scmp.eq.s32.totalorder %s27, 0
      %p75 = por %p73, %p74
      %s77 = sadd.s32 %s76, 1
      %p80 = scmp.eq.s32.totalorder %s21, 1
      %p81 = scmp.ne.s32.totalorder %s76, %s78
      %p82 = scmp.eq.s32.totalorder %s21, 0
      %p83 = por %p81, %p82
      %p84 = scmp.ne.s32.totalorder %s76, %s78
      %p85 = scmp.eq.s32.totalorder %s26, 1
      %p86 = por %p84, %p85
      %p87 = scmp.ne.s32.totalorder %s78, %s79
      %p88 = scmp.eq.s32.totalorder %s26, 0
      %p89 = por %p87, %p88
      %p90 = scmp.ne.s32.totalorder %s78, %s79
      %p91 = scmp.eq.s32.totalorder %s27, 1
      %p92 = por %p90, %p91
      %p94 = scmp.ne.s32.totalorder %s79, %s93
      %p95 = scmp.eq.s32.totalorder %s27, 0
      %p96 = por %p94, %p95
      %s98 = sadd.s32 %s97, 1
      %p101 = scmp.eq.s32.totalorder %s21, 1
      %p102 = scmp.ne.s32.totalorder %s97, %s99
      %p103 = scmp.eq.s32.totalorder %s21, 0
      %p104 = por %p102, %p103
      %p105 = scmp.ne.s32.totalorder %s97, %s99
      %p106 = scmp.eq.s32.totalorder %s26, 1
      %p107 = por %p105, %p106
      %p108 = scmp.ne.s32.totalorder %s99, %s100
      %p109 = scmp.eq.s32.totalorder %s26, 0
      %p110 = por %p108, %p109
      %p111 = scmp.ne.s32.totalorder %s99, %s100
      %p112 = scmp.eq.s32.totalorder %s27, 1
      %p113 = por %p111, %p112
      %p115 = scmp.ne.s32.totalorder %s100, %s114
      %p116 = scmp.eq.s32.totalorder %s27, 0
      %p117 = por %p115, %p116
      %s119 = sadd.s32 %s118, 1
      %p122 = scmp.eq.s32.totalorder %s21, 1
      %p123 = scmp.ne.s32.totalorder %s118, %s120
      %p124 = scmp.eq.s32.totalorder %s21, 0
      %p125 = por %p123, %p124
      %p126 = scmp.ne.s32.totalorder %s118, %s120
      %p127 = scmp.eq.s32.totalorder %s26, 1
      %p128 = por %p126, %p127
      %p129 = scmp.ne.s32.totalorder %s120, %s121
      %p130 = scmp.eq.s32.totalorder %s26, 0
      %p131 = por %p129, %p130
      %p132 = scmp.ne.s32.totalorder %s120, %s121
      %p133 = scmp.eq.s32.totalorder %s27, 1
      %p134 = por %p132, %p133
      %p136 = scmp.ne.s32.totalorder %s121, %s135
      %p137 = scmp.eq.s32.totalorder %s27, 0
      %p138 = por %p136, %p137
      %s140 = sadd.s32 %s139, 1
      %p143 = scmp.eq.s32.totalorder %s21, 1
      %p144 = scmp.ne.s32.totalorder %s139, %s141
      %p145 = scmp.eq.s32.totalorder %s21, 0
      %p146 = por %p144, %p145
      %p147 = scmp.ne.s32.totalorder %s139, %s141
      %p148 = scmp.eq.s32.totalorder %s26, 1
      %p149 = por %p147, %p148
      %p150 = scmp.ne.s32.totalorder %s141, %s142
      %p151 = scmp.eq.s32.totalorder %s26, 0
      %p152 = por %p150, %p151
      %p153 = scmp.ne.s32.totalorder %s141, %s142
      %p154 = scmp.eq.s32.totalorder %s27, 1
      %p155 = por %p153, %p154
      %p157 = scmp.ne.s32.totalorder %s142, %s156
      %p158 = scmp.eq.s32.totalorder %s27, 0
      %p159 = por %p157, %p158
      %s161 = sadd.s32 %s160, 1
      %p164 = scmp.eq.s32.totalorder %s21, 1
      %p165 = scmp.ne.s32.totalorder %s160, %s162
      %p166 = scmp.eq.s32.totalorder %s21, 0
      %p167 = por %p165, %p166
      %p168 = scmp.ne.s32.totalorder %s160, %s162
      %p169 = scmp.eq.s32.totalorder %s26, 1
      %p170 = por %p168, %p169
      %p171 = scmp.ne.s32.totalorder %s162, %s163
      %p172 = scmp.eq.s32.totalorder %s26, 0
      %p173 = por %p171, %p172
      %p174 = scmp.ne.s32.totalorder %s162, %s163
      %p175 = scmp.eq.s32.totalorder %s27, 1
      %p176 = por %p174, %p175
      %p178 = scmp.ne.s32.totalorder %s163, %s177
      %p179 = scmp.eq.s32.totalorder %s27, 0
      %p180 = por %p178, %p179
      %s182 = sadd.s32 %s181, 1
      %p185 = scmp.eq.s32.totalorder %s21, 1
      %p186 = scmp.ne.s32.totalorder %s181, %s183
      %p187 = scmp.eq.s32.totalorder %s21, 0
      %p188 = por %p186, %p187
      %p189 = scmp.ne.s32.totalorder %s181, %s183
      %p190 = scmp.eq.s32.totalorder %s26, 1
      %p191 = por %p189, %p190
      %p192 = scmp.ne.s32.totalorder %s183, %s184
      %p193 = scmp.eq.s32.totalorder %s26, 0
      %p194 = por %p192, %p193
      %p195 = scmp.ne.s32.totalorder %s183, %s184
      %p196 = scmp.eq.s32.totalorder %s27, 1
      %p197 = por %p195, %p196
      %p199 = scmp.ne.s32.totalorder %s184, %s198
      %p200 = scmp.eq.s32.totalorder %s27, 0
      %p201 = por %p199, %p200
      %s203 = sadd.s32 %s202, 1
      %p206 = scmp.eq.s32.totalorder %s21, 1
      %p207 = scmp.ne.s32.totalorder %s202, %s204
      %p208 = scmp.eq.s32.totalorder %s21, 0
      %p209 = por %p207, %p208
      %p210 = scmp.ne.s32.totalorder %s202, %s204
      %p211 = scmp.eq.s32.totalorder %s26, 1
      %p212 = por %p210, %p211
      %p213 = scmp.ne.s32.totalorder %s204, %s205
      %p214 = scmp.eq.s32.totalorder %s26, 0
      %p215 = por %p213, %p214
      %p216 = scmp.ne.s32.totalorder %s204, %s205
      %p217 = scmp.eq.s32.totalorder %s27, 1
      %p218 = por %p216, %p217
      %p220 = scmp.ne.s32.totalorder %s205, %s219
      %p221 = scmp.eq.s32.totalorder %s27, 0
      %p222 = por %p220, %p221
      %s224 = sadd.s32 %s223, 1
      %p227 = scmp.eq.s32.totalorder %s21, 1
      %p228 = scmp.ne.s32.totalorder %s223, %s225
      %p229 = scmp.eq.s32.totalorder %s21, 0
      %p230 = por %p228, %p229
      %p231 = scmp.ne.s32.totalorder %s223, %s225
      %p232 = scmp.eq.s32.totalorder %s26, 1
      %p233 = por %p231, %p232
      %p234 = scmp.ne.s32.totalorder %s225, %s226
      %p235 = scmp.eq.s32.totalorder %s26, 0
      %p236 = por %p234, %p235
      %p237 = scmp.ne.s32.totalorder %s225, %s226
      %p238 = scmp.eq.s32.totalorder %s27, 1
      %p239 = por %p237, %p238
      %p241 = scmp.ne.s32.totalorder %s226, %s240
      %p242 = scmp.eq.s32.totalorder %s27, 0
      %p243 = por %p241, %p242
      %s245 = sadd.s32 %s244, 1
      %p248 = scmp.eq.s32.totalorder %s21, 1
      %p249 = scmp.ne.s32.totalorder %s244, %s246
      %p250 = scmp.eq.s32.totalorder %s21, 0
      %p251 = por %p249, %p250
      %p252 = scmp.ne.s32.totalorder %s244, %s246
      %p253 = scmp.eq.s32.totalorder %s26, 1
      %p254 = por %p252, %p253
      %p255 = scmp.ne.s32.totalorder %s246, %s247
      %p256 = scmp.eq.s32.totalorder %s26, 0
      %p257 = por %p255, %p256
      %p258 = scmp.ne.s32.totalorder %s246, %s247
      %p259 = scmp.eq.s32.totalorder %s27, 1
      %p260 = por %p258, %p259
      %p262 = scmp.ne.s32.totalorder %s247, %s261
      %p263 = scmp.eq.s32.totalorder %s27, 0
      %p264 = por %p262, %p263
      %s266 = sadd.s32 %s265, 1
      %p269 = scmp.eq.s32.totalorder %s21, 1
      %p270 = scmp.ne.s32.totalorder %s265, %s267
      %p271 = scmp.eq.s32.totalorder %s21, 0
      %p272 = por %p270, %p271
      %p273 = scmp.ne.s32.totalorder %s265, %s267
      %p274 = scmp.eq.s32.totalorder %s26, 1
      %p275 = por %p273, %p274
      %p276 = scmp.ne.s32.totalorder %s267, %s268
      %p277 = scmp.eq.s32.totalorder %s26, 0
      %p278 = por %p276, %p277
      %p279 = scmp.ne.s32.totalorder %s267, %s268
      %p280 = scmp.eq.s32.totalorder %s27, 1
      %p281 = por %p279, %p280
      %p283 = scmp.ne.s32.totalorder %s268, %s282
      %p284 = scmp.eq.s32.totalorder %s27, 0
      %p285 = por %p283, %p284
      %s286 = ssub.s32 %s21, %s28
      %p287 = scmp.eq.s32.totalorder %s286, 0
      %s289 = sadd.s32 %s288, 1
      %s290 = scalar_select %p287, %s288, %s289
      %p293 = pneg %p287
      %p294 = scmp.eq.s32.totalorder %s21, 1
      %p295 = por %p293, %p294
      %p296 = scmp.ne.s32.totalorder %s288, %s291
      %p297 = scmp.eq.s32.totalorder %s21, 0
      %p298 = por %p296, %p297
      %p299 = scmp.ne.s32.totalorder %s288, %s291
      %p300 = scmp.eq.s32.totalorder %s26, 1
      %p301 = por %p299, %p300
      %p302 = scmp.ne.s32.totalorder %s291, %s292
      %p303 = scmp.eq.s32.totalorder %s26, 0
      %p304 = por %p302, %p303
      %p305 = scmp.ne.s32.totalorder %s291, %s292
      %p306 = scmp.eq.s32.totalorder %s27, 1
      %p307 = por %p305, %p306
      %p309 = scmp.ne.s32.totalorder %s292, %s308
      %p310 = scmp.eq.s32.totalorder %s27, 0
      %p311 = por %p309, %p310
      %p312 = scmp.le.s32.totalorder 1, %s21
      %p313 = scmp.lt.s32.totalorder %s21, 3
      %p314 = pnand %p312, %p313
      %p315 = pneg %p314
      // Predicated region
      $region9: #{tpu_custom_call.1} parent=5 // pred_check
        _
      $region10: #{tpu_custom_call.1} parent=5 // pred_check_branch
        %317 = sbr.rel (%p314) target = $region12
      $region11: #{tpu_custom_call.1} parent=5 // pred_region
        %s318 = ssub.s32 %s21, 1
        // Predicated region
        $region13: #{tpu_custom_call.1} parent=11 // pred_check
          %p319 = pneg %p68
        $region14: #{tpu_custom_call.1} parent=11 // pred_check_branch
          %321 = sbr.rel (%p319) target = $region16
        $region15: #{tpu_custom_call.1} parent=11 // pred_region
          _
        $region16: #{tpu_custom_call.1} parent=11 // pred_fallthru
          _
        // Predicated region
        $region17: #{tpu_custom_call.1} parent=11 // pred_check
          %p322 = pneg %p89
        $region18: #{tpu_custom_call.1} parent=11 // pred_check_branch
          %324 = sbr.rel (%p322) target = $region20
        $region19: #{tpu_custom_call.1} parent=11 // pred_region
          _
        $region20: #{tpu_custom_call.1} parent=11 // pred_fallthru
          _
        // Predicated region
        $region21: #{tpu_custom_call.1} parent=11 // pred_check
          %p325 = pneg %p110
        $region22: #{tpu_custom_call.1} parent=11 // pred_check_branch
          %327 = sbr.rel (%p325) target = $region24
        $region23: #{tpu_custom_call.1} parent=11 // pred_region
          _
        $region24: #{tpu_custom_call.1} parent=11 // pred_fallthru
          _
        // Predicated region
        $region25: #{tpu_custom_call.1} parent=11 // pred_check
          %p328 = pneg %p131
        $region26: #{tpu_custom_call.1} parent=11 // pred_check_branch
          %330 = sbr.rel (%p328) target = $region28
        $region27: #{tpu_custom_call.1} parent=11 // pred_region
          _
        $region28: #{tpu_custom_call.1} parent=11 // pred_fallthru
          _
        // Predicated region
        $region29: #{tpu_custom_call.1} parent=11 // pred_check
          %p331 = pneg %p152
        $region30: #{tpu_custom_call.1} parent=11 // pred_check_branch
          %333 = sbr.rel (%p331) target = $region32
        $region31: #{tpu_custom_call.1} parent=11 // pred_region
          _
        $region32: #{tpu_custom_call.1} parent=11 // pred_fallthru
          _
        // Predicated region
        $region33: #{tpu_custom_call.1} parent=11 // pred_check
          %p334 = pneg %p173
        $region34: #{tpu_custom_call.1} parent=11 // pred_check_branch
          %336 = sbr.rel (%p334) target = $region36
        $region35: #{tpu_custom_call.1} parent=11 // pred_region
          _
        $region36: #{tpu_custom_call.1} parent=11 // pred_fallthru
          _
        // Predicated region
        $region37: #{tpu_custom_call.1} parent=11 // pred_check
          %p337 = pneg %p194
        $region38: #{tpu_custom_call.1} parent=11 // pred_check_branch
          %339 = sbr.rel (%p337) target = $region40
        $region39: #{tpu_custom_call.1} parent=11 // pred_region
          _
        $region40: #{tpu_custom_call.1} parent=11 // pred_fallthru
          _
        // Predicated region
        $region41: #{tpu_custom_call.1} parent=11 // pred_check
          %p340 = pneg %p215
        $region42: #{tpu_custom_call.1} parent=11 // pred_check_branch
          %342 = sbr.rel (%p340) target = $region44
        $region43: #{tpu_custom_call.1} parent=11 // pred_region
          _
        $region44: #{tpu_custom_call.1} parent=11 // pred_fallthru
          _
        // Predicated region
        $region45: #{tpu_custom_call.1} parent=11 // pred_check
          %p343 = pneg %p236
        $region46: #{tpu_custom_call.1} parent=11 // pred_check_branch
          %345 = sbr.rel (%p343) target = $region48
        $region47: #{tpu_custom_call.1} parent=11 // pred_region
          _
        $region48: #{tpu_custom_call.1} parent=11 // pred_fallthru
          _
        // Predicated region
        $region49: #{tpu_custom_call.1} parent=11 // pred_check
          %p346 = pneg %p257
        $region50: #{tpu_custom_call.1} parent=11 // pred_check_branch
          %348 = sbr.rel (%p346) target = $region52
        $region51: #{tpu_custom_call.1} parent=11 // pred_region
          _
        $region52: #{tpu_custom_call.1} parent=11 // pred_fallthru
          _
        // Predicated region
        $region53: #{tpu_custom_call.1} parent=11 // pred_check
          %p349 = pneg %p278
        $region54: #{tpu_custom_call.1} parent=11 // pred_check_branch
          %351 = sbr.rel (%p349) target = $region56
        $region55: #{tpu_custom_call.1} parent=11 // pred_region
          _
        $region56: #{tpu_custom_call.1} parent=11 // pred_fallthru
          _
      $region12: #{tpu_custom_call.1} parent=5 // pred_fallthru
        _
      %p352 = scmp.lt.s32.totalorder %s21, 2
      // Predicated region
      $region57: #{tpu_custom_call.1} parent=5 // pred_check
        %p353 = pneg %p352
      $region58: #{tpu_custom_call.1} parent=5 // pred_check_branch
        %355 = sbr.rel (%p353) target = $region60
      $region59: #{tpu_custom_call.1} parent=5 // pred_region
        // Predicated region
        $region61: #{tpu_custom_call.1} parent=59 // pred_check
          %p356 = pneg %p41
        $region62: #{tpu_custom_call.1} parent=59 // pred_check_branch
          %358 = sbr.rel (%p356) target = $region64
        $region63: #{tpu_custom_call.1} parent=59 // pred_region
          %p359 = scmp.lt.s32.totalorder %s21, 1
          %s360 = scalar_select %p359, %s21, 1
          %s361 = smul.addr %s360, 8
          %s362 = scalar_lea.vmem %s0, %s361
        $region64: #{tpu_custom_call.1} parent=59 // pred_fallthru
          _
      $region60: #{tpu_custom_call.1} parent=5 // pred_fallthru
        _
      %p363 = scmp.le.s32.totalorder 1, %s21
      %p364 = scmp.lt.s32.totalorder %s21, 3
      %p365 = pnand %p363, %p364
      %p366 = pneg %p365
      // Predicated region
      $region65: #{tpu_custom_call.1} parent=5 // pred_check
        _
      $region66: #{tpu_custom_call.1} parent=5 // pred_check_branch
        %368 = sbr.rel (%p365) target = $region68
      $region67: #{tpu_custom_call.1} parent=5 // pred_region
        %s369 = ssub.s32 %s21, 1
        %p370 = scmp.lt.s32.totalorder %s26, 1
        %s371 = scalar_select %p370, %s26, 1
        %s372 = smul.addr %s371, 8
        %s373 = scalar_lea.vmem %s0, %s372
        %p374 = pneg %p47
        %p375 = pneg %p44
        %p376 = pneg %p68
        %p377 = pneg %p65
        %p378 = pneg %p89
        %p379 = pneg %p86
        %p380 = pneg %p110
        %p381 = pneg %p107
        %p382 = pneg %p131
        %p383 = pneg %p128
        %p384 = pneg %p152
        %p385 = pneg %p149
        %p386 = pneg %p173
        %p387 = pneg %p170
        %p388 = pneg %p194
        %p389 = pneg %p191
        %p390 = pneg %p215
        %p391 = pneg %p212
        %p392 = pneg %p236
        %p393 = pneg %p233
        %p394 = pneg %p257
        %p395 = pneg %p254
        %p396 = pneg %p278
        %p397 = pneg %p275
        %p398 = pneg %p304
        %p399 = pneg %p301
        %s400 = sand.u32 %s291, 1
        %s401 = scalar_lea.sflag [#allocation3], %s400
        %s402 = sand.u32 %s291, 1
        %s403 = smul.addr %s402, 8
        %s404 = scalar_lea.vmem [#allocation2], %s403
        %p405 = scmp.lt.s32.totalorder %s26, 1
        %s406 = scalar_select %p405, %s26, 1
        %s407 = smul.addr %s406, 8
        %s408 = scalar_lea.vmem %s0, %s407
        %v410 = vld [vmem:[%s408] sm:$0xff]
        %v411 = vpack.c.bf16 %v410, %v410
        %v412 = vld [vmem:[%s1] sm:$0xff]
        %v413 = vld [vmem:[%s1 + $0x8] sm:$0xf]
        %v414 = vld [vmem:[%s1 + $0xc] sm:$0xff]
        %v415 = vld [vmem:[%s1 + $0x14] sm:$0xf]
        %v416 = vld [vmem:[%s1 + $0x18] sm:$0xff]
        %v417 = vld [vmem:[%s1 + $0x20] sm:$0xf]
        %v418 = vld [vmem:[%s1 + $0x24] sm:$0xff]
        %v419 = vld [vmem:[%s1 + $0x2c] sm:$0xf]
        %v428 = vunpack.c.l.b16 %v412
        %v429 = vunpack.c.h.b16 %v412
        %v430 = vunpack.c.l.b16 %v413
        %v431 = vunpack.c.l.b16 %v414
        %v432 = vunpack.c.h.b16 %v414
        %v433 = vunpack.c.l.b16 %v415
        %v434 = vunpack.c.l.b16 %v416
        %v435 = vunpack.c.h.b16 %v416
        %v436 = vunpack.c.l.b16 %v417
        %v437 = vunpack.c.l.b16 %v418
        %v438 = vunpack.c.h.b16 %v418
        %v439 = vunpack.c.l.b16 %v419
        %v440 = vpack.c.b16 %v431, %v428
        %v441 = vpack.c.b16 %v432, %v429
        %v442 = vpack.c.b16 %v433, %v430
        %v443 = vpack.c.b16 %v437, %v434
        %v444 = vpack.c.b16 %v438, %v435
        %v445 = vpack.c.b16 %v439, %v436
        %vm452 = vcmask 261120
        %v454 = vsel %vm452, %v411, 0
        %456 = vmatprep.subr.bf16.mxu0 %v441
        %457 = vmatpush1.bf16.msra.mxu0 %v440
        %458 = vmatprep.subr.bf16.mxu0 %v444
        %459 = vmatpush1.bf16.msra.mxu0 %v443
        %460 = vmatprep.subr.bf16.mxu0 0
        %461 = vmatpush1.bf16.msra.mxu0 0
        %462 = vmatprep.subr.bf16.mxu0 0
        %463 = vmatpush1.bf16.msra.mxu0 0
        %464 = vmatprep.subr.bf16.mxu0 0
        %465 = vmatpush1.bf16.msra.mxu0 0
        %466 = vmatprep.subr.bf16.mxu0 0
        %467 = vmatpush1.bf16.msra.mxu0 0
        %468 = vmatprep.subr.bf16.mxu0 0
        %469 = vmatpush1.bf16.msra.mxu0 0
        %470 = vmatprep.subr.bf16.mxu0 0
        %471 = vmatpush1.bf16.msra.mxu0 0
        %472 = vmatprep.subr.bf16.mxu0 0
        %473 = vmatpush1.bf16.msra.mxu0 0
        %474 = vmatprep.subr.bf16.mxu0 0
        %475 = vmatpush1.bf16.msra.mxu0 0
        %476 = vmatprep.subr.bf16.mxu0 0
        %477 = vmatpush1.bf16.msra.mxu0 0
        %478 = vmatprep.subr.bf16.mxu0 0
        %479 = vmatpush1.bf16.msra.mxu0 0
        %480 = vmatprep.subr.bf16.mxu0 0
        %481 = vmatpush1.bf16.msra.mxu0 0
        %482 = vmatprep.subr.bf16.mxu0 0
        %483 = vmatpush1.bf16.msra.mxu0 0
        %484 = vmatprep.subr.bf16.mxu0 0
        %485 = vmatpush1.bf16.msra.mxu0 0
        %486 = vmatprep.subr.bf16.mxu0 0
        %487 = vmatpush1.bf16.msra.mxu0 0
        %488 = vmatprep.mubr.bf16.mxu0 0
        %489 = vmatmul.mubr.bf16.gmra.mrb[0].mxu0 %v454
        %v490 = vpop.f32.mrb[0].mxu0
        %v491 = vadd.f32 0.0, %v490
        %v492 = vpop.f32.mrb[0].mxu0
        %v493 = vadd.f32 0.0, %v492
        %v494 = vpop.f32.mrb[0].mxu0
        %v495 = vpop.f32.mrb[0].mxu0
        %496 = vdwg.mxu0
        %497 = vmatprep.subr.bf16.mxu0 0
        %498 = vmatpush1.bf16.msra.mxu0 %v442
        %499 = vmatprep.subr.bf16.mxu0 0
        %500 = vmatpush1.bf16.msra.mxu0 %v445
        %501 = vmatprep.subr.bf16.mxu0 0
        %502 = vmatpush1.bf16.msra.mxu0 0
        %503 = vmatprep.subr.bf16.mxu0 0
        %504 = vmatpush1.bf16.msra.mxu0 0
        %505 = vmatprep.subr.bf16.mxu0 0
        %506 = vmatpush1.bf16.msra.mxu0 0
        %507 = vmatprep.subr.bf16.mxu0 0
        %508 = vmatpush1.bf16.msra.mxu0 0
        %509 = vmatprep.subr.bf16.mxu0 0
        %510 = vmatpush1.bf16.msra.mxu0 0
        %511 = vmatprep.subr.bf16.mxu0 0
        %512 = vmatpush1.bf16.msra.mxu0 0
        %513 = vmatprep.subr.bf16.mxu0 0
        %514 = vmatpush1.bf16.msra.mxu0 0
        %515 = vmatprep.subr.bf16.mxu0 0
        %516 = vmatpush1.bf16.msra.mxu0 0
        %517 = vmatprep.subr.bf16.mxu0 0
        %518 = vmatpush1.bf16.msra.mxu0 0
        %519 = vmatprep.subr.bf16.mxu0 0
        %520 = vmatpush1.bf16.msra.mxu0 0
        %521 = vmatprep.subr.bf16.mxu0 0
        %522 = vmatpush1.bf16.msra.mxu0 0
        %523 = vmatprep.subr.bf16.mxu0 0
        %524 = vmatpush1.bf16.msra.mxu0 0
        %525 = vmatprep.subr.bf16.mxu0 0
        %526 = vmatpush1.bf16.msra.mxu0 0
        %527 = vmatprep.subr.bf16.mxu0 0
        %528 = vmatpush1.bf16.msra.mxu0 0
        %529 = vmatprep.mubr.bf16.mxu0 0
        %530 = vmatmul.mubr.bf16.gmra.mrb[0].mxu0 %v454
        %v531 = vpop.f32.mrb[0].mxu0
        %v532 = vadd.f32 0.0, %v531
        %v533 = vpop.f32.mrb[0].mxu0
        %v534 = vpop.f32.mrb[0].mxu0
        %v535 = vpop.f32.mrb[0].mxu0
        %536 = vdwg.mxu0
        %v537 = vpack.c.bf16 %v491, %v491
        %v538 = vpack.c.bf16 %v493, %v493
        %v539 = vpack.c.bf16 %v532, %v532
        %541 = vrot.lane.b32.xlu0 %v537, 96
        %v542 = vpop.permute.xlu0 %541
        %543 = vrot.lane.b32.xlu0 %v537, 64
        %v544 = vpop.permute.xlu0 %543
        %545 = vrot.lane.b32.xlu0 %v537, 32
        %v546 = vpop.permute.xlu0 %545
        %548 = vrot.lane.b32.xlu0 %v538, 96
        %v549 = vpop.permute.xlu0 %548
        %550 = vrot.lane.b32.xlu0 %v538, 64
        %v551 = vpop.permute.xlu0 %550
        %552 = vrot.lane.b32.xlu0 %v538, 32
        %v553 = vpop.permute.xlu0 %552
        %555 = vrot.lane.b32.xlu0 %v539, 96
        %v556 = vpop.permute.xlu0 %555
        %557 = vrot.lane.b32.xlu0 %v539, 64
        %v558 = vpop.permute.xlu0 %557
        %559 = vrot.lane.b32.xlu0 %v539, 32
        %v560 = vpop.permute.xlu0 %559
        %v562 = vsel %vm452, %v537, 0
        %v565 = vsel %vm452, %v538, 0
        %567 = vmatprep.subr.bf16.mxu0 0
        %568 = vmatpush1.bf16.xpose.msra.mxu0 %v565
        %569 = vmatprep.subr.bf16.mxu0 0
        %570 = vmatpush1.bf16.xpose.msra.mxu0 0
        %571 = vmatprep.subr.bf16.mxu0 0
        %572 = vmatpush1.bf16.xpose.msra.mxu0 0
        %573 = vmatprep.subr.bf16.mxu0 0
        %574 = vmatpush1.bf16.xpose.msra.mxu0 0
        %575 = vmatprep.subr.bf16.mxu0 0
        %576 = vmatpush1.bf16.xpose.msra.mxu0 0
        %577 = vmatprep.subr.bf16.mxu0 0
        %578 = vmatpush1.bf16.xpose.msra.mxu0 0
        %579 = vmatprep.subr.bf16.mxu0 0
        %580 = vmatpush1.bf16.xpose.msra.mxu0 0
        %581 = vmatprep.subr.bf16.mxu0 0
        %582 = vmatpush1.bf16.xpose.msra.mxu0 0
        %583 = vmatprep.subr.bf16.mxu0 0
        %584 = vmatpush1.bf16.xpose.msra.mxu0 0
        %585 = vmatprep.subr.bf16.mxu0 0
        %586 = vmatpush1.bf16.xpose.msra.mxu0 0
        %587 = vmatprep.subr.bf16.mxu0 0
        %588 = vmatpush1.bf16.xpose.msra.mxu0 0
        %589 = vmatprep.subr.bf16.mxu0 0
        %590 = vmatpush1.bf16.xpose.msra.mxu0 0
        %591 = vmatprep.subr.bf16.mxu0 0
        %592 = vmatpush1.bf16.xpose.msra.mxu0 0
        %593 = vmatprep.subr.bf16.mxu0 0
        %594 = vmatpush1.bf16.xpose.msra.mxu0 0
        %595 = vmatprep.subr.bf16.mxu0 0
        %596 = vmatpush1.bf16.xpose.msra.mxu0 0
        %597 = vmatprep.subr.bf16.mxu0 0
        %598 = vmatpush1.bf16.xpose.msra.mxu0 0
        %599 = vmatprep.mubr.bf16.mxu0 0
        %600 = vmatmul.mubr.bf16.gmra.mrb[0].mxu0 %v562
        %v601 = vpop.f32.mrb[0].mxu0
        %v602 = vadd.f32 0.0, %v601
        %v603 = vpop.f32.mrb[0].mxu0
        %v604 = vpop.f32.mrb[0].mxu0
        %v605 = vpop.f32.mrb[0].mxu0
        %606 = vdwg.mxu0
        %v608 = vsel %vm452, %v542, 0
        %v611 = vsel %vm452, %v549, 0
        %613 = vmatprep.subr.bf16.mxu0 0
        %614 = vmatpush1.bf16.xpose.msra.mxu0 %v611
        %615 = vmatprep.subr.bf16.mxu0 0
        %616 = vmatpush1.bf16.xpose.msra.mxu0 0
        %617 = vmatprep.subr.bf16.mxu0 0
        %618 = vmatpush1.bf16.xpose.msra.mxu0 0
        %619 = vmatprep.subr.bf16.mxu0 0
        %620 = vmatpush1.bf16.xpose.msra.mxu0 0
        %621 = vmatprep.subr.bf16.mxu0 0
        %622 = vmatpush1.bf16.xpose.msra.mxu0 0
        %623 = vmatprep.subr.bf16.mxu0 0
        %624 = vmatpush1.bf16.xpose.msra.mxu0 0
        %625 = vmatprep.subr.bf16.mxu0 0
        %626 = vmatpush1.bf16.xpose.msra.mxu0 0
        %627 = vmatprep.subr.bf16.mxu0 0
        %628 = vmatpush1.bf16.xpose.msra.mxu0 0
        %629 = vmatprep.subr.bf16.mxu0 0
        %630 = vmatpush1.bf16.xpose.msra.mxu0 0
        %631 = vmatprep.subr.bf16.mxu0 0
        %632 = vmatpush1.bf16.xpose.msra.mxu0 0
        %633 = vmatprep.subr.bf16.mxu0 0
        %634 = vmatpush1.bf16.xpose.msra.mxu0 0
        %635 = vmatprep.subr.bf16.mxu0 0
        %636 = vmatpush1.bf16.xpose.msra.mxu0 0
        %637 = vmatprep.subr.bf16.mxu0 0
        %638 = vmatpush1.bf16.xpose.msra.mxu0 0
        %639 = vmatprep.subr.bf16.mxu0 0
        %640 = vmatpush1.bf16.xpose.msra.mxu0 0
        %641 = vmatprep.subr.bf16.mxu0 0
        %642 = vmatpush1.bf16.xpose.msra.mxu0 0
        %643 = vmatprep.subr.bf16.mxu0 0
        %644 = vmatpush1.bf16.xpose.msra.mxu0 0
        %645 = vmatprep.mubr.bf16.mxu0 0
        %646 = vmatmul.mubr.bf16.gmra.mrb[0].mxu0 %v608
        %v647 = vpop.f32.mrb[0].mxu0
        %v648 = vadd.f32 0.0, %v647
        %v649 = vpop.f32.mrb[0].mxu0
        %v650 = vpop.f32.mrb[0].mxu0
        %v651 = vpop.f32.mrb[0].mxu0
        %652 = vdwg.mxu0
        %v654 = vsel %vm452, %v544, 0
        %v657 = vsel %vm452, %v551, 0
        %659 = vmatprep.subr.bf16.mxu0 0
        %660 = vmatpush1.bf16.xpose.msra.mxu0 %v657
        %661 = vmatprep.subr.bf16.mxu0 0
        %662 = vmatpush1.bf16.xpose.msra.mxu0 0
        %663 = vmatprep.subr.bf16.mxu0 0
        %664 = vmatpush1.bf16.xpose.msra.mxu0 0
        %665 = vmatprep.subr.bf16.mxu0 0
        %666 = vmatpush1.bf16.xpose.msra.mxu0 0
        %667 = vmatprep.subr.bf16.mxu0 0
        %668 = vmatpush1.bf16.xpose.msra.mxu0 0
        %669 = vmatprep.subr.bf16.mxu0 0
        %670 = vmatpush1.bf16.xpose.msra.mxu0 0
        %671 = vmatprep.subr.bf16.mxu0 0
        %672 = vmatpush1.bf16.xpose.msra.mxu0 0
        %673 = vmatprep.subr.bf16.mxu0 0
        %674 = vmatpush1.bf16.xpose.msra.mxu0 0
        %675 = vmatprep.subr.bf16.mxu0 0
        %676 = vmatpush1.bf16.xpose.msra.mxu0 0
        %677 = vmatprep.subr.bf16.mxu0 0
        %678 = vmatpush1.bf16.xpose.msra.mxu0 0
        %679 = vmatprep.subr.bf16.mxu0 0
        %680 = vmatpush1.bf16.xpose.msra.mxu0 0
        %681 = vmatprep.subr.bf16.mxu0 0
        %682 = vmatpush1.bf16.xpose.msra.mxu0 0
        %683 = vmatprep.subr.bf16.mxu0 0
        %684 = vmatpush1.bf16.xpose.msra.mxu0 0
        %685 = vmatprep.subr.bf16.mxu0 0
        %686 = vmatpush1.bf16.xpose.msra.mxu0 0
        %687 = vmatprep.subr.bf16.mxu0 0
        %688 = vmatpush1.bf16.xpose.msra.mxu0 0
        %689 = vmatprep.subr.bf16.mxu0 0
        %690 = vmatpush1.bf16.xpose.msra.mxu0 0
        %691 = vmatprep.mubr.bf16.mxu0 0
        %692 = vmatmul.mubr.bf16.gmra.mrb[0].mxu0 %v654
        %v693 = vpop.f32.mrb[0].mxu0
        %v694 = vadd.f32 0.0, %v693
        %v695 = vpop.f32.mrb[0].mxu0
        %v696 = vpop.f32.mrb[0].mxu0
        %v697 = vpop.f32.mrb[0].mxu0
        %698 = vdwg.mxu0
        %v700 = vsel %vm452, %v546, 0
        %v703 = vsel %vm452, %v553, 0
        %705 = vmatprep.subr.bf16.mxu0 0
        %706 = vmatpush1.bf16.xpose.msra.mxu0 %v703
        %707 = vmatprep.subr.bf16.mxu0 0
        %708 = vmatpush1.bf16.xpose.msra.mxu0 0
        %709 = vmatprep.subr.bf16.mxu0 0
        %710 = vmatpush1.bf16.xpose.msra.mxu0 0
        %711 = vmatprep.subr.bf16.mxu0 0
        %712 = vmatpush1.bf16.xpose.msra.mxu0 0
        %713 = vmatprep.subr.bf16.mxu0 0
        %714 = vmatpush1.bf16.xpose.msra.mxu0 0
        %715 = vmatprep.subr.bf16.mxu0 0
        %716 = vmatpush1.bf16.xpose.msra.mxu0 0
        %717 = vmatprep.subr.bf16.mxu0 0
        %718 = vmatpush1.bf16.xpose.msra.mxu0 0
        %719 = vmatprep.subr.bf16.mxu0 0
        %720 = vmatpush1.bf16.xpose.msra.mxu0 0
        %721 = vmatprep.subr.bf16.mxu0 0
        %722 = vmatpush1.bf16.xpose.msra.mxu0 0
        %723 = vmatprep.subr.bf16.mxu0 0
        %724 = vmatpush1.bf16.xpose.msra.mxu0 0
        %725 = vmatprep.subr.bf16.mxu0 0
        %726 = vmatpush1.bf16.xpose.msra.mxu0 0
        %727 = vmatprep.subr.bf16.mxu0 0
        %728 = vmatpush1.bf16.xpose.msra.mxu0 0
        %729 = vmatprep.subr.bf16.mxu0 0
        %730 = vmatpush1.bf16.xpose.msra.mxu0 0
        %731 = vmatprep.subr.bf16.mxu0 0
        %732 = vmatpush1.bf16.xpose.msra.mxu0 0
        %733 = vmatprep.subr.bf16.mxu0 0
        %734 = vmatpush1.bf16.xpose.msra.mxu0 0
        %735 = vmatprep.subr.bf16.mxu0 0
        %736 = vmatpush1.bf16.xpose.msra.mxu0 0
        %737 = vmatprep.mubr.bf16.mxu0 0
        %738 = vmatmul.mubr.bf16.gmra.mrb[0].mxu0 %v700
        %v739 = vpop.f32.mrb[0].mxu0
        %v740 = vadd.f32 0.0, %v739
        %v741 = vpop.f32.mrb[0].mxu0
        %v742 = vpop.f32.mrb[0].mxu0
        %v743 = vpop.f32.mrb[0].mxu0
        %744 = vdwg.mxu0
        %vm745 = vcmask 64512
        %v746 = vsel %vm745, %v602, -inf
        %747 = vmax.xlane.f32.xlu0 %v746
        %v748 = vpop.xlane.xlu0 %747
        %v749 = vsel %vm745, %v648, -inf
        %750 = vmax.xlane.f32.xlu0 %v749
        %v751 = vpop.xlane.xlu0 %750
        %v752 = vsel %vm745, %v694, -inf
        %753 = vmax.xlane.f32.xlu0 %v752
        %v754 = vpop.xlane.xlu0 %753
        %v755 = vsel %vm745, %v740, -inf
        %756 = vmax.xlane.f32.xlu0 %v755
        %v757 = vpop.xlane.xlu0 %756
        %v758 = vsub.f32 %v602, %v748
        %v759 = vsub.f32 %v648, %v751
        %v760 = vsub.f32 %v694, %v754
        %v761 = vsub.f32 %v740, %v757
        %v762 = vmul.f32 %v758, 1.442695
        %v763 = vpow.pop %v762
        %v764 = vmul.f32 %v759, 1.442695
        %v765 = vpow.pop %v764
        %v766 = vmul.f32 %v760, 1.442695
        %v767 = vpow.pop %v766
        %v768 = vmul.f32 %v761, 1.442695
        %v769 = vpow.pop %v768
        %v770 = vpack.c.bf16 %v763, %v763
        %v771 = vpack.c.bf16 %v765, %v765
        %v772 = vpack.c.bf16 %v767, %v767
        %v773 = vpack.c.bf16 %v769, %v769
        %v775 = vsel %vm745, %v770, 0
        %vm777 = vcmask 1043456
        %v779 = vsel %vm777, %v539, 0
        %781 = vmatprep.subr.bf16.mxu0 0
        %782 = vmatpush1.bf16.msra.mxu0 %v779
        %783 = vmatprep.subr.bf16.mxu0 0
        %784 = vmatpush1.bf16.msra.mxu0 0
        %785 = vmatprep.subr.bf16.mxu0 0
        %786 = vmatpush1.bf16.msra.mxu0 0
        %787 = vmatprep.subr.bf16.mxu0 0
        %788 = vmatpush1.bf16.msra.mxu0 0
        %789 = vmatprep.subr.bf16.mxu0 0
        %790 = vmatpush1.bf16.msra.mxu0 0
        %791 = vmatprep.subr.bf16.mxu0 0
        %792 = vmatpush1.bf16.msra.mxu0 0
        %793 = vmatprep.subr.bf16.mxu0 0
        %794 = vmatpush1.bf16.msra.mxu0 0
        %795 = vmatprep.subr.bf16.mxu0 0
        %796 = vmatpush1.bf16.msra.mxu0 0
        %797 = vmatprep.subr.bf16.mxu0 0
        %798 = vmatpush1.bf16.msra.mxu0 0
        %799 = vmatprep.subr.bf16.mxu0 0
        %800 = vmatpush1.bf16.msra.mxu0 0
        %801 = vmatprep.subr.bf16.mxu0 0
        %802 = vmatpush1.bf16.msra.mxu0 0
        %803 = vmatprep.subr.bf16.mxu0 0
        %804 = vmatpush1.bf16.msra.mxu0 0
        %805 = vmatprep.subr.bf16.mxu0 0
        %806 = vmatpush1.bf16.msra.mxu0 0
        %807 = vmatprep.subr.bf16.mxu0 0
        %808 = vmatpush1.bf16.msra.mxu0 0
        %809 = vmatprep.subr.bf16.mxu0 0
        %810 = vmatpush1.bf16.msra.mxu0 0
        %811 = vmatprep.subr.bf16.mxu0 0
        %812 = vmatpush1.bf16.msra.mxu0 0
        %813 = vmatprep.mubr.bf16.mxu0 0
        %814 = vmatmul.mubr.bf16.gmra.mrb[0].mxu0 %v775
        %v815 = vpop.f32.mrb[0].mxu0
        %v816 = vadd.f32 0.0, %v815
        %v817 = vpop.f32.mrb[0].mxu0
        %v818 = vpop.f32.mrb[0].mxu0
        %v819 = vpop.f32.mrb[0].mxu0
        %820 = vdwg.mxu0
        %v822 = vsel %vm745, %v771, 0
        %v825 = vsel %vm777, %v556, 0
        %827 = vmatprep.subr.bf16.mxu0 0
        %828 = vmatpush1.bf16.msra.mxu0 %v825
        %829 = vmatprep.subr.bf16.mxu0 0
        %830 = vmatpush1.bf16.msra.mxu0 0
        %831 = vmatprep.subr.bf16.mxu0 0
        %832 = vmatpush1.bf16.msra.mxu0 0
        %833 = vmatprep.subr.bf16.mxu0 0
        %834 = vmatpush1.bf16.msra.mxu0 0
        %835 = vmatprep.subr.bf16.mxu0 0
        %836 = vmatpush1.bf16.msra.mxu0 0
        %837 = vmatprep.subr.bf16.mxu0 0
        %838 = vmatpush1.bf16.msra.mxu0 0
        %839 = vmatprep.subr.bf16.mxu0 0
        %840 = vmatpush1.bf16.msra.mxu0 0
        %841 = vmatprep.subr.bf16.mxu0 0
        %842 = vmatpush1.bf16.msra.mxu0 0
        %843 = vmatprep.subr.bf16.mxu0 0
        %844 = vmatpush1.bf16.msra.mxu0 0
        %845 = vmatprep.subr.bf16.mxu0 0
        %846 = vmatpush1.bf16.msra.mxu0 0
        %847 = vmatprep.subr.bf16.mxu0 0
        %848 = vmatpush1.bf16.msra.mxu0 0
        %849 = vmatprep.subr.bf16.mxu0 0
        %850 = vmatpush1.bf16.msra.mxu0 0
        %851 = vmatprep.subr.bf16.mxu0 0
        %852 = vmatpush1.bf16.msra.mxu0 0
        %853 = vmatprep.subr.bf16.mxu0 0
        %854 = vmatpush1.bf16.msra.mxu0 0
        %855 = vmatprep.subr.bf16.mxu0 0
        %856 = vmatpush1.bf16.msra.mxu0 0
        %857 = vmatprep.subr.bf16.mxu0 0
        %858 = vmatpush1.bf16.msra.mxu0 0
        %859 = vmatprep.mubr.bf16.mxu0 0
        %860 = vmatmul.mubr.bf16.gmra.mrb[0].mxu0 %v822
        %v861 = vpop.f32.mrb[0].mxu0
        %v862 = vadd.f32 0.0, %v861
        %v863 = vpop.f32.mrb[0].mxu0
        %v864 = vpop.f32.mrb[0].mxu0
        %v865 = vpop.f32.mrb[0].mxu0
        %866 = vdwg.mxu0
        %v868 = vsel %vm745, %v772, 0
        %v871 = vsel %vm777, %v558, 0
        %873 = vmatprep.subr.bf16.mxu0 0
        %874 = vmatpush1.bf16.msra.mxu0 %v871
        %875 = vmatprep.subr.bf16.mxu0 0
        %876 = vmatpush1.bf16.msra.mxu0 0
        %877 = vmatprep.subr.bf16.mxu0 0
        %878 = vmatpush1.bf16.msra.mxu0 0
        %879 = vmatprep.subr.bf16.mxu0 0
        %880 = vmatpush1.bf16.msra.mxu0 0
        %881 = vmatprep.subr.bf16.mxu0 0
        %882 = vmatpush1.bf16.msra.mxu0 0
        %883 = vmatprep.subr.bf16.mxu0 0
        %884 = vmatpush1.bf16.msra.mxu0 0
        %885 = vmatprep.subr.bf16.mxu0 0
        %886 = vmatpush1.bf16.msra.mxu0 0
        %887 = vmatprep.subr.bf16.mxu0 0
        %888 = vmatpush1.bf16.msra.mxu0 0
        %889 = vmatprep.subr.bf16.mxu0 0
        %890 = vmatpush1.bf16.msra.mxu0 0
        %891 = vmatprep.subr.bf16.mxu0 0
        %892 = vmatpush1.bf16.msra.mxu0 0
        %893 = vmatprep.subr.bf16.mxu0 0
        %894 = vmatpush1.bf16.msra.mxu0 0
        %895 = vmatprep.subr.bf16.mxu0 0
        %896 = vmatpush1.bf16.msra.mxu0 0
        %897 = vmatprep.subr.bf16.mxu0 0
        %898 = vmatpush1.bf16.msra.mxu0 0
        %899 = vmatprep.subr.bf16.mxu0 0
        %900 = vmatpush1.bf16.msra.mxu0 0
        %901 = vmatprep.subr.bf16.mxu0 0
        %902 = vmatpush1.bf16.msra.mxu0 0
        %903 = vmatprep.subr.bf16.mxu0 0
        %904 = vmatpush1.bf16.msra.mxu0 0
        %905 = vmatprep.mubr.bf16.mxu0 0
        %906 = vmatmul.mubr.bf16.gmra.mrb[0].mxu0 %v868
        %v907 = vpop.f32.mrb[0].mxu0
        %v908 = vadd.f32 0.0, %v907
        %v909 = vpop.f32.mrb[0].mxu0
        %v910 = vpop.f32.mrb[0].mxu0
        %v911 = vpop.f32.mrb[0].mxu0
        %912 = vdwg.mxu0
        %v914 = vsel %vm745, %v773, 0
        %v917 = vsel %vm777, %v560, 0
        %919 = vmatprep.subr.bf16.mxu0 0
        %920 = vmatpush1.bf16.msra.mxu0 %v917
        %921 = vmatprep.subr.bf16.mxu0 0
        %922 = vmatpush1.bf16.msra.mxu0 0
        %923 = vmatprep.subr.bf16.mxu0 0
        %924 = vmatpush1.bf16.msra.mxu0 0
        %925 = vmatprep.subr.bf16.mxu0 0
        %926 = vmatpush1.bf16.msra.mxu0 0
        %927 = vmatprep.subr.bf16.mxu0 0
        %928 = vmatpush1.bf16.msra.mxu0 0
        %929 = vmatprep.subr.bf16.mxu0 0
        %930 = vmatpush1.bf16.msra.mxu0 0
        %931 = vmatprep.subr.bf16.mxu0 0
        %932 = vmatpush1.bf16.msra.mxu0 0
        %933 = vmatprep.subr.bf16.mxu0 0
        %934 = vmatpush1.bf16.msra.mxu0 0
        %935 = vmatprep.subr.bf16.mxu0 0
        %936 = vmatpush1.bf16.msra.mxu0 0
        %937 = vmatprep.subr.bf16.mxu0 0
        %938 = vmatpush1.bf16.msra.mxu0 0
        %939 = vmatprep.subr.bf16.mxu0 0
        %940 = vmatpush1.bf16.msra.mxu0 0
        %941 = vmatprep.subr.bf16.mxu0 0
        %942 = vmatpush1.bf16.msra.mxu0 0
        %943 = vmatprep.subr.bf16.mxu0 0
        %944 = vmatpush1.bf16.msra.mxu0 0
        %945 = vmatprep.subr.bf16.mxu0 0
        %946 = vmatpush1.bf16.msra.mxu0 0
        %947 = vmatprep.subr.bf16.mxu0 0
        %948 = vmatpush1.bf16.msra.mxu0 0
        %949 = vmatprep.subr.bf16.mxu0 0
        %950 = vmatpush1.bf16.msra.mxu0 0
        %951 = vmatprep.mubr.bf16.mxu0 0
        %952 = vmatmul.mubr.bf16.gmra.mrb[0].mxu0 %v914
        %v953 = vpop.f32.mrb[0].mxu0
        %v954 = vadd.f32 0.0, %v953
        %v955 = vpop.f32.mrb[0].mxu0
        %v956 = vpop.f32.mrb[0].mxu0
        %v957 = vpop.f32.mrb[0].mxu0
        %958 = vdwg.mxu0
        %v959 = vsel %vm745, %v763, 0.0
        %960 = vadd.xlane.f32.xlu0 %v959
        %v961 = vpop.xlane.xlu0 %960
        %v962 = vsel %vm745, %v765, 0.0
        %963 = vadd.xlane.f32.xlu0 %v962
        %v964 = vpop.xlane.xlu0 %963
        %v965 = vsel %vm745, %v767, 0.0
        %966 = vadd.xlane.f32.xlu0 %v965
        %v967 = vpop.xlane.xlu0 %966
        %v968 = vsel %vm745, %v769, 0.0
        %969 = vadd.xlane.f32.xlu0 %v968
        %v970 = vpop.xlane.xlu0 %969
        %v971 = vrcp.pop %v961
        %v972 = vrcp.pop %v964
        %v973 = vrcp.pop %v967
        %v974 = vrcp.pop %v970
        %v975 = vmul.f32 %v816, %v971
        %v976 = vmul.f32 %v862, %v972
        %v977 = vmul.f32 %v908, %v973
        %v978 = vmul.f32 %v954, %v974
        %980 = vrot.lane.b32.xlu0 %v976, 32
        %v981 = vpop.permute.xlu0 %980
        %984 = vrot.lane.b32.xlu0 %v977, 64
        %v985 = vpop.permute.xlu0 %984
        %988 = vrot.lane.b32.xlu0 %v978, 96
        %v989 = vpop.permute.xlu0 %988
        %v991 = vsel %vm452, %v975, %v981
        %vm992 = vcmask 523264
        %v993 = vsel %vm992, %v991, %v985
        %vm994 = vcmask 785408
        %v995 = vsel %vm994, %v993, %v989
        %v996 = vpack.c.bf16 %v995, %v995
        %v997 = vld [vmem:[%s2] sm:$0xf]
        %v998 = vld [vmem:[%s2 + $0x4] sm:$0xf]
        %v999 = vld [vmem:[%s2 + $0x8] sm:$0xf]
        %v1000 = vld [vmem:[%s2 + $0xc] sm:$0xf]
        %v1001 = vld [vmem:[%s2 + $0x10] sm:$0xf]
        %v1002 = vld [vmem:[%s2 + $0x14] sm:$0xf]
        %v1003 = vld [vmem:[%s2 + $0x18] sm:$0xf]
        %v1004 = vld [vmem:[%s2 + $0x1c] sm:$0xf]
        %v1005 = vld [vmem:[%s2 + $0x20] sm:$0xf]
        %v1006 = vld [vmem:[%s2 + $0x24] sm:$0xf]
        %v1007 = vld [vmem:[%s2 + $0x28] sm:$0xf]
        %v1008 = vld [vmem:[%s2 + $0x2c] sm:$0xf]
        %v1009 = vld [vmem:[%s2 + $0x30] sm:$0xf]
        %v1010 = vld [vmem:[%s2 + $0x34] sm:$0xf]
        %v1011 = vld [vmem:[%s2 + $0x38] sm:$0xf]
        %v1012 = vld [vmem:[%s2 + $0x3c] sm:$0xf]
        %v1013 = vld [vmem:[%s3] sm:$0x1]
        %v1015 = vlaneseq
        %v1016 = vshrl.u32 %v1015, 7
        %v1017 = vsub.s32 0, %v1016
        %v1018 = vrot.slane %v1013, %v1017
        %v1036 = vunpack.c.l.b16 %v997
        %v1037 = vunpack.c.l.b16 %v998
        %v1038 = vunpack.c.l.b16 %v999
        %v1039 = vunpack.c.l.b16 %v1000
        %v1040 = vunpack.c.l.b16 %v1001
        %v1041 = vunpack.c.l.b16 %v1002
        %v1042 = vunpack.c.l.b16 %v1003
        %v1043 = vunpack.c.l.b16 %v1004
        %v1044 = vunpack.c.l.b16 %v1005
        %v1045 = vunpack.c.l.b16 %v1006
        %v1046 = vunpack.c.l.b16 %v1007
        %v1047 = vunpack.c.l.b16 %v1008
        %v1048 = vunpack.c.l.b16 %v1009
        %v1049 = vunpack.c.l.b16 %v1010
        %v1050 = vunpack.c.l.b16 %v1011
        %v1051 = vunpack.c.l.b16 %v1012
        %v1052 = vpack.c.b16 %v1037, %v1036
        %v1053 = vpack.c.b16 %v1039, %v1038
        %v1054 = vpack.c.b16 %v1041, %v1040
        %v1055 = vpack.c.b16 %v1043, %v1042
        %v1056 = vpack.c.b16 %v1045, %v1044
        %v1057 = vpack.c.b16 %v1047, %v1046
        %v1058 = vpack.c.b16 %v1049, %v1048
        %v1059 = vpack.c.b16 %v1051, %v1050
        %1068 = vmatprep.subr.bf16.mxu0 0
        %1069 = vmatpush1.bf16.msra.mxu0 %v1052
        %1070 = vmatprep.subr.bf16.mxu0 0
        %1071 = vmatpush1.bf16.msra.mxu0 %v1053
        %1072 = vmatprep.subr.bf16.mxu0 0
        %1073 = vmatpush1.bf16.msra.mxu0 %v1054
        %1074 = vmatprep.subr.bf16.mxu0 0
        %1075 = vmatpush1.bf16.msra.mxu0 %v1055
        %1076 = vmatprep.subr.bf16.mxu0 0
        %1077 = vmatpush1.bf16.msra.mxu0 %v1056
        %1078 = vmatprep.subr.bf16.mxu0 0
        %1079 = vmatpush1.bf16.msra.mxu0 %v1057
        %1080 = vmatprep.subr.bf16.mxu0 0
        %1081 = vmatpush1.bf16.msra.mxu0 %v1058
        %1082 = vmatprep.subr.bf16.mxu0 0
        %1083 = vmatpush1.bf16.msra.mxu0 %v1059
        %1084 = vmatprep.subr.bf16.mxu0 0
        %1085 = vmatpush1.bf16.msra.mxu0 0
        %1086 = vmatprep.subr.bf16.mxu0 0
        %1087 = vmatpush1.bf16.msra.mxu0 0
        %1088 = vmatprep.subr.bf16.mxu0 0
        %1089 = vmatpush1.bf16.msra.mxu0 0
        %1090 = vmatprep.subr.bf16.mxu0 0
        %1091 = vmatpush1.bf16.msra.mxu0 0
        %1092 = vmatprep.subr.bf16.mxu0 0
        %1093 = vmatpush1.bf16.msra.mxu0 0
        %1094 = vmatprep.subr.bf16.mxu0 0
        %1095 = vmatpush1.bf16.msra.mxu0 0
        %1096 = vmatprep.subr.bf16.mxu0 0
        %1097 = vmatpush1.bf16.msra.mxu0 0
        %1098 = vmatprep.subr.bf16.mxu0 0
        %1099 = vmatpush1.bf16.msra.mxu0 0
        %1100 = vmatprep.mubr.bf16.mxu0 0
        %1101 = vmatmul.mubr.bf16.gmra.mrb[0].mxu0 %v996
        %v1102 = vpop.f32.mrb[0].mxu0
        %v1103 = vadd.f32 %v1018, %v1102
        %v1104 = vpop.f32.mrb[0].mxu0
        %v1105 = vpop.f32.mrb[0].mxu0
        %v1106 = vpop.f32.mrb[0].mxu0
        %1107 = vdwg.mxu0
        %v1108 = vadd.f32 %v1103, %v410
        %v1109 = vld [vmem:[%s4] sm:$0x1]
        %v1110 = vld [vmem:[%s5] sm:$0x1]
        %v1111 = vsel %vm452, %v1108, 0.0
        %1112 = vadd.xlane.f32.xlu0 %v1111
        %v1113 = vpop.xlane.xlu0 %1112
        %v1114 = vrcp.pop 32.0
        %v1115 = vmul.f32 %v1113, %v1114
        %v1116 = vsub.f32 %v1108, %v1115
        %v1117 = vmul.f32 %v1116, %v1116
        %v1118 = vsel %vm452, %v1117, 0.0
        %1119 = vadd.xlane.f32.xlu0 %v1118
        %v1120 = vpop.xlane.xlu0 %1119
        %v1121 = vmul.f32 %v1120, %v1114
        %v1122 = vadd.f32 %v1121, 1e-05
        %v1123 = vrsqrt.pop %v1122
        %v1124 = vmul.f32 %v1116, %v1123
        %v1126 = vlaneseq
        %v1127 = vshrl.u32 %v1126, 7
        %v1128 = vsub.s32 0, %v1127
        %v1129 = vrot.slane %v1109, %v1128
        %v1131 = vmul.f32 %v1124, %v1129
        %v1133 = vlaneseq
        %v1134 = vshrl.u32 %v1133, 7
        %v1135 = vsub.s32 0, %v1134
        %v1136 = vrot.slane %v1110, %v1135
        %v1138 = vadd.f32 %v1131, %v1136
        %v1139 = vpack.c.bf16 %v1138, %v1138
        %v1140 = vld [vmem:[%s6] sm:$0xf]
        %v1141 = vld [vmem:[%s6 + $0x4] sm:$0xf]
        %v1142 = vld [vmem:[%s6 + $0x8] sm:$0xf]
        %v1143 = vld [vmem:[%s6 + $0xc] sm:$0xf]
        %v1144 = vld [vmem:[%s7] sm:$0x1]
        %v1146 = vlaneseq
        %v1147 = vshrl.u32 %v1146, 7
        %v1148 = vsub.s32 0, %v1147
        %v1149 = vrot.slane %v1144, %v1148
        %v1155 = vunpack.c.l.b16 %v1140
        %v1156 = vunpack.c.l.b16 %v1141
        %v1157 = vunpack.c.l.b16 %v1142
        %v1158 = vunpack.c.l.b16 %v1143
        %v1159 = vpack.c.b16 %v1156, %v1155
        %v1160 = vpack.c.b16 %v1158, %v1157
        %v1164 = vsel %vm452, %v1139, 0
        %1166 = vmatprep.subr.bf16.mxu0 0
        %1167 = vmatpush1.bf16.msra.mxu0 %v1159
        %1168 = vmatprep.subr.bf16.mxu0 0
        %1169 = vmatpush1.bf16.msra.mxu0 %v1160
        %1170 = vmatprep.subr.bf16.mxu0 0
        %1171 = vmatpush1.bf16.msra.mxu0 0
        %1172 = vmatprep.subr.bf16.mxu0 0
        %1173 = vmatpush1.bf16.msra.mxu0 0
        %1174 = vmatprep.subr.bf16.mxu0 0
        %1175 = vmatpush1.bf16.msra.mxu0 0
        %1176 = vmatprep.subr.bf16.mxu0 0
        %1177 = vmatpush1.bf16.msra.mxu0 0
        %1178 = vmatprep.subr.bf16.mxu0 0
        %1179 = vmatpush1.bf16.msra.mxu0 0
        %1180 = vmatprep.subr.bf16.mxu0 0
        %1181 = vmatpush1.bf16.msra.mxu0 0
        %1182 = vmatprep.subr.bf16.mxu0 0
        %1183 = vmatpush1.bf16.msra.mxu0 0
        %1184 = vmatprep.subr.bf16.mxu0 0
        %1185 = vmatpush1.bf16.msra.mxu0 0
        %1186 = vmatprep.subr.bf16.mxu0 0
        %1187 = vmatpush1.bf16.msra.mxu0 0
        %1188 = vmatprep.subr.bf16.mxu0 0
        %1189 = vmatpush1.bf16.msra.mxu0 0
        %1190 = vmatprep.subr.bf16.mxu0 0
        %1191 = vmatpush1.bf16.msra.mxu0 0
        %1192 = vmatprep.subr.bf16.mxu0 0
        %1193 = vmatpush1.bf16.msra.mxu0 0
        %1194 = vmatprep.subr.bf16.mxu0 0
        %1195 = vmatpush1.bf16.msra.mxu0 0
        %1196 = vmatprep.subr.bf16.mxu0 0
        %1197 = vmatpush1.bf16.msra.mxu0 0
        %1198 = vmatprep.mubr.bf16.mxu0 0
        %1199 = vmatmul.mubr.bf16.gmra.mrb[0].mxu0 %v1164
        %v1200 = vpop.f32.mrb[0].mxu0
        %v1201 = vadd.f32 %v1149, %v1200
        %v1202 = vpop.f32.mrb[0].mxu0
        %v1203 = vpop.f32.mrb[0].mxu0
        %v1204 = vpop.f32.mrb[0].mxu0
        %1205 = vdwg.mxu0
        %v1206 = vmax.f32 %v1201, 0.0
        %v1207 = vpack.c.bf16 %v1206, %v1206
        %v1208 = vld [vmem:[%s8] sm:$0xf]
        %v1209 = vld [vmem:[%s8 + $0x4] sm:$0xf]
        %v1210 = vld [vmem:[%s8 + $0x8] sm:$0xf]
        %v1211 = vld [vmem:[%s8 + $0xc] sm:$0xf]
        %v1212 = vld [vmem:[%s8 + $0x10] sm:$0xf]
        %v1213 = vld [vmem:[%s8 + $0x14] sm:$0xf]
        %v1214 = vld [vmem:[%s8 + $0x18] sm:$0xf]
        %v1215 = vld [vmem:[%s8 + $0x1c] sm:$0xf]
        %v1216 = vld [vmem:[%s8 + $0x20] sm:$0xf]
        %v1217 = vld [vmem:[%s8 + $0x24] sm:$0xf]
        %v1218 = vld [vmem:[%s8 + $0x28] sm:$0xf]
        %v1219 = vld [vmem:[%s8 + $0x2c] sm:$0xf]
        %v1220 = vld [vmem:[%s8 + $0x30] sm:$0xf]
        %v1221 = vld [vmem:[%s8 + $0x34] sm:$0xf]
        %v1222 = vld [vmem:[%s8 + $0x38] sm:$0xf]
        %v1223 = vld [vmem:[%s8 + $0x3c] sm:$0xf]
        %v1224 = vld [vmem:[%s9] sm:$0x1]
        %v1226 = vlaneseq
        %v1227 = vshrl.u32 %v1226, 7
        %v1228 = vsub.s32 0, %v1227
        %v1229 = vrot.slane %v1224, %v1228
        %v1247 = vunpack.c.l.b16 %v1208
        %v1248 = vunpack.c.l.b16 %v1209
        %v1249 = vunpack.c.l.b16 %v1210
        %v1250 = vunpack.c.l.b16 %v1211
        %v1251 = vunpack.c.l.b16 %v1212
        %v1252 = vunpack.c.l.b16 %v1213
        %v1253 = vunpack.c.l.b16 %v1214
        %v1254 = vunpack.c.l.b16 %v1215
        %v1255 = vunpack.c.l.b16 %v1216
        %v1256 = vunpack.c.l.b16 %v1217
        %v1257 = vunpack.c.l.b16 %v1218
        %v1258 = vunpack.c.l.b16 %v1219
        %v1259 = vunpack.c.l.b16 %v1220
        %v1260 = vunpack.c.l.b16 %v1221
        %v1261 = vunpack.c.l.b16 %v1222
        %v1262 = vunpack.c.l.b16 %v1223
        %v1263 = vpack.c.b16 %v1248, %v1247
        %v1264 = vpack.c.b16 %v1250, %v1249
        %v1265 = vpack.c.b16 %v1252, %v1251
        %v1266 = vpack.c.b16 %v1254, %v1253
        %v1267 = vpack.c.b16 %v1256, %v1255
        %v1268 = vpack.c.b16 %v1258, %v1257
        %v1269 = vpack.c.b16 %v1260, %v1259
        %v1270 = vpack.c.b16 %v1262, %v1261
        %1279 = vmatprep.subr.bf16.mxu0 0
        %1280 = vmatpush1.bf16.msra.mxu0 %v1263
        %1281 = vmatprep.subr.bf16.mxu0 0
        %1282 = vmatpush1.bf16.msra.mxu0 %v1264
        %1283 = vmatprep.subr.bf16.mxu0 0
        %1284 = vmatpush1.bf16.msra.mxu0 %v1265
        %1285 = vmatprep.subr.bf16.mxu0 0
        %1286 = vmatpush1.bf16.msra.mxu0 %v1266
        %1287 = vmatprep.subr.bf16.mxu0 0
        %1288 = vmatpush1.bf16.msra.mxu0 %v1267
        %1289 = vmatprep.subr.bf16.mxu0 0
        %1290 = vmatpush1.bf16.msra.mxu0 %v1268
        %1291 = vmatprep.subr.bf16.mxu0 0
        %1292 = vmatpush1.bf16.msra.mxu0 %v1269
        %1293 = vmatprep.subr.bf16.mxu0 0
        %1294 = vmatpush1.bf16.msra.mxu0 %v1270
        %1295 = vmatprep.subr.bf16.mxu0 0
        %1296 = vmatpush1.bf16.msra.mxu0 0
        %1297 = vmatprep.subr.bf16.mxu0 0
        %1298 = vmatpush1.bf16.msra.mxu0 0
        %1299 = vmatprep.subr.bf16.mxu0 0
        %1300 = vmatpush1.bf16.msra.mxu0 0
        %1301 = vmatprep.subr.bf16.mxu0 0
        %1302 = vmatpush1.bf16.msra.mxu0 0
        %1303 = vmatprep.subr.bf16.mxu0 0
        %1304 = vmatpush1.bf16.msra.mxu0 0
        %1305 = vmatprep.subr.bf16.mxu0 0
        %1306 = vmatpush1.bf16.msra.mxu0 0
        %1307 = vmatprep.subr.bf16.mxu0 0
        %1308 = vmatpush1.bf16.msra.mxu0 0
        %1309 = vmatprep.subr.bf16.mxu0 0
        %1310 = vmatpush1.bf16.msra.mxu0 0
        %1311 = vmatprep.mubr.bf16.mxu0 0
        %1312 = vmatmul.mubr.bf16.gmra.mrb[0].mxu0 %v1207
        %v1313 = vpop.f32.mrb[0].mxu0
        %v1314 = vadd.f32 %v1229, %v1313
        %v1315 = vpop.f32.mrb[0].mxu0
        %v1316 = vpop.f32.mrb[0].mxu0
        %v1317 = vpop.f32.mrb[0].mxu0
        %1318 = vdwg.mxu0
        %v1319 = vadd.f32 %v1314, %v1138
        %v1320 = vld [vmem:[%s10] sm:$0x1]
        %v1321 = vld [vmem:[%s11] sm:$0x1]
        %v1322 = vsel %vm452, %v1319, 0.0
        %1323 = vadd.xlane.f32.xlu0 %v1322
        %v1324 = vpop.xlane.xlu0 %1323
        %v1325 = vmul.f32 %v1324, %v1114
        %v1326 = vsub.f32 %v1319, %v1325
        %v1327 = vmul.f32 %v1326, %v1326
        %v1328 = vsel %vm452, %v1327, 0.0
        %1329 = vadd.xlane.f32.xlu0 %v1328
        %v1330 = vpop.xlane.xlu0 %1329
        %v1331 = vmul.f32 %v1330, %v1114
        %v1332 = vadd.f32 %v1331, 1e-05
        %v1333 = vrsqrt.pop %v1332
        %v1334 = vmul.f32 %v1326, %v1333
        %v1336 = vlaneseq
        %v1337 = vshrl.u32 %v1336, 7
        %v1338 = vsub.s32 0, %v1337
        %v1339 = vrot.slane %v1320, %v1338
        %v1341 = vmul.f32 %v1334, %v1339
        %v1343 = vlaneseq
        %v1344 = vshrl.u32 %v1343, 7
        %v1345 = vsub.s32 0, %v1344
        %v1346 = vrot.slane %v1321, %v1345
        %v1348 = vadd.f32 %v1341, %v1346
        %1349 = vst.msk [vmem:[%s404] sm:$0xff] %vm452, %v1348
        %s1350 = sand.u32 %s291, 1
        %s1351 = scalar_lea.sflag [#allocation3], %s1350
        %s1352 = sand.u32 %s291, 1
        %s1353 = smul.addr %s1352, 8
        %s1354 = scalar_lea.vmem [#allocation2], %s1353
        // Predicated region
        $region69: #{tpu_custom_call.1} parent=67 // pred_check
          %p1355 = pneg %p301
        $region70: #{tpu_custom_call.1} parent=67 // pred_check_branch
          %1357 = sbr.rel (%p1355) target = $region72
        $region71: #{tpu_custom_call.1} parent=67 // pred_region
          %s1359 = ssub.s32 128, 128
          %1360 = vsyncadd %s1351, %s1359
          %s1361 = smul.addr %s26, 128
          %s1362 = scalar_lea.hbm %s12, %s1361
          %s1364 = sshll.u32 %s1354, 4
          %s1365 = int_to_ptr.vmem [resolvable:$true] %s1364
          %1367 = dma.vmem_to_hbm [thread:$0]  %s1365, 128, %s1362, %s1351
        $region72: #{tpu_custom_call.1} parent=67 // pred_fallthru
          _
      $region68: #{tpu_custom_call.1} parent=5 // pred_fallthru
        _
      %p1368 = scmp.le.s32.totalorder 2, %s21
      // Predicated region
      $region73: #{tpu_custom_call.1} parent=5 // pred_check
        %p1369 = pneg %p1368
      $region74: #{tpu_custom_call.1} parent=5 // pred_check_branch
        %1371 = sbr.rel (%p1369) target = $region76
      $region75: #{tpu_custom_call.1} parent=5 // pred_region
        %s1372 = ssub.s32 %s21, 2
        // Predicated region
        $region77: #{tpu_custom_call.1} parent=75 // pred_check
          %p1373 = pneg %p307
        $region78: #{tpu_custom_call.1} parent=75 // pred_check_branch
          %1375 = sbr.rel (%p1373) target = $region80
        $region79: #{tpu_custom_call.1} parent=75 // pred_region
          %s1376 = sand.u32 %s292, 1
          %s1377 = scalar_lea.sflag [#allocation3], %s1376
          %s1378 = sand.u32 %s292, 1
          %s1379 = smul.addr %s1378, 8
          %s1380 = scalar_lea.vmem [#allocation2], %s1379
          %1381 = dma.done %s1377, 128
        $region80: #{tpu_custom_call.1} parent=75 // pred_fallthru
          _
      $region76: #{tpu_custom_call.1} parent=5 // pred_fallthru
        _
    $region6: #{tpu_custom_call.1} parent=1 // loop_footer
      %s25 = sadd.s32 1, %s21
    $region7: #{tpu_custom_call.1} parent=1 // loop_footer_branch
      %20 = sbr.rel target = $region3
    $region8: #{tpu_custom_call.1} parent=1 // loop_exit
      _
    %1382 = vsyncpa [#allocation3], 1
    %s1383 = scalar_lea.sflag [#allocation3], 1
    %1384 = vsyncpa %s1383, 1

</llo_original>
